<compile_context>
chip_gen: v7x
topology: tpu7x:2x2x1
jax: 0.10.0
libtpu: 0.0.40
codegen_flags: <defaults>
</compile_context>

<pallas_src>
import functools

import jax
import jax.numpy as jnp
from jax import lax
from jax.experimental import pallas as pl
from jax.experimental.pallas import tpu as pltpu
import numpy as np

# get_activ('leaky_relu') is external to the snippet; assume the usual GAN slope.
NEG_SLOPE = 0.2


# ---------------------------------------------------------------------------
# Fused stage kernel:
#   conv3x3 (+bias) -> LeakyReLU -> instance norm -> style affine -> noise -> +bias
# ---------------------------------------------------------------------------
def _fused_stage_kernel(xp_ref, w_ref, cb_ref, sstd_ref, smean_ref,
                        n_ref, nw_ref, o_ref, *, height, width):
    # xp_ref:   (1, H+2, W+2, Cin)  zero-padded NHWC input tile (one batch item)
    # w_ref:    (9, Cin, Cout)      bf16 conv weight, one (Cin,Cout) per tap
    # cb_ref:   (1, Cout)           conv bias (f32)
    # sstd_ref: (1, 1, Cout)        precomputed style std for this batch item
    # smean_ref:(1, 1, Cout)        precomputed style mean for this batch item
    # n_ref:    (1, HW, 1)          per-pixel noise (shared across channels)
    # nw_ref:   (1, Cout)           noise layer weight_orig
    # o_ref:    (1, HW, Cout)
    H, W = height, width
    hw = H * W
    cin = w_ref.shape[1]
    cout = o_ref.shape[2]

    # --- 3x3 conv as 9 shifted matmuls; taps sliced in-kernel, bf16 on MXU ---
    acc = jnp.zeros((hw, cout), jnp.float32)
    for idx in range(9):  # static unroll over the 3x3 taps
        ky, kx = idx // 3, idx % 3
        patch = xp_ref[0, ky:ky + H, kx:kx + W, :].reshape(hw, cin)
        acc = acc + jnp.dot(patch.astype(jnp.bfloat16), w_ref[idx],
                            preferred_element_type=jnp.float32)

    cb = cb_ref[...].astype(jnp.float32)               # (1, Cout)
    acc = acc + cb                                     # conv bias
    acc = jnp.where(acc >= 0, acc, NEG_SLOPE * acc)    # LeakyReLU

    # --- instance norm: one-pass stats over HW ---
    inv_hw = jnp.float32(1.0 / hw)
    mean = jnp.sum(acc, axis=0, keepdims=True) * inv_hw            # (1, Cout)
    ex2 = jnp.sum(acc * acc, axis=0, keepdims=True) * inv_hw       # E[x^2]
    var = jnp.maximum(ex2 - mean * mean, 0.0)
    inv_std = lax.rsqrt(var + 1e-8)
    norm = (acc - mean) * inv_std

    # --- style affine + noise + get_bias() ---
    out = norm * sstd_ref[0].astype(jnp.float32) + smean_ref[0].astype(jnp.float32)
    out = out + n_ref[0].astype(jnp.float32) * nw_ref[...].astype(jnp.float32)
    out = out + cb
    o_ref[0] = out.astype(o_ref.dtype)


def style_stage(x_nhwc, w_oihw, b, s_std, s_mean, noise_col, noise_w,
                *, out_dtype=None):
    """One StyleBlock stage.  x_nhwc: (B,H,W,Cin) -> (B, H*W, Cout)."""
    B, H, W, cin = x_nhwc.shape
    oc = w_oihw.shape[0]
    hw = H * W
    if out_dtype is None:
        out_dtype = x_nhwc.dtype   # set to bf16 if the surrounding graph allows

    xp = jnp.pad(x_nhwc, ((0, 0), (1, 1), (1, 1), (0, 0)))       # Conv2d zero pad
    w_taps = (jnp.transpose(w_oihw, (2, 3, 1, 0))
              .reshape(9, cin, oc).astype(jnp.bfloat16))          # bf16 weights
    cb = b.reshape(1, oc).astype(jnp.float32)
    nw = noise_w.reshape(1, oc).astype(jnp.float32)
    sstd = s_std.reshape(B, 1, oc).astype(jnp.float32)
    smean = s_mean.reshape(B, 1, oc).astype(jnp.float32)

    kernel = functools.partial(_fused_stage_kernel, height=H, width=W)
    return pl.pallas_call(
        kernel,
        out_shape=jax.ShapeDtypeStruct((B, hw, oc), out_dtype),
        grid=(B,),
        in_specs=[
            pl.BlockSpec((1, H + 2, W + 2, cin), lambda i: (i, 0, 0, 0)),
            pl.BlockSpec((9, cin, oc), lambda i: (0, 0, 0)),
            pl.BlockSpec((1, oc), lambda i: (0, 0)),
            pl.BlockSpec((1, 1, oc), lambda i: (i, 0, 0)),
            pl.BlockSpec((1, 1, oc), lambda i: (i, 0, 0)),
            pl.BlockSpec((1, hw, 1), lambda i: (i, 0, 0)),
            pl.BlockSpec((1, oc), lambda i: (0, 0)),
        ],
        out_specs=pl.BlockSpec((1, hw, oc), lambda i: (i, 0, 0)),
        compiler_params=pltpu.CompilerParams(
            dimension_semantics=("parallel",),
            vmem_limit_bytes=64 * 1024 * 1024),
    )(xp, w_taps, cb, sstd, smean, noise_col, nw)


# ---------------------------------------------------------------------------
# StyleBlock forward (upsample=False)
# ---------------------------------------------------------------------------
def style_block_forward(x_nchw, style, params, noise1_nchw, noise2_nchw):
    B, _, H, W = x_nchw.shape
    hw = H * W
    x_nhwc = jnp.transpose(x_nchw, (0, 2, 3, 1))

    # SpectralAdaptiveNorm linear layers: tiny (B,S)x(S,C) matmuls done once in
    # plain JAX (in-kernel M=1 matmuls waste the MXU and force per-step DMAs).
    s_std1 = style @ params["style1_w_std"].T + params["style1_b_std"]
    s_mean1 = style @ params["style1_w_mean"].T + params["style1_b_mean"]
    s_std2 = style @ params["style2_w_std"].T + params["style2_b_std"]
    s_mean2 = style @ params["style2_w_mean"].T + params["style2_b_mean"]

    # ----- stage 1 -----
    f = style_stage(x_nhwc, params["conv1_w"], params["conv1_b"],
                    s_std1, s_mean1, noise1_nchw.reshape(B, hw, 1),
                    params["noise1_w"])                       # (B, HW, K)
    k = f.shape[-1]

    # ----- stage 2 -----
    f2 = style_stage(f.reshape(B, H, W, k), params["conv2_w"], params["conv2_b"],
                     s_std2, s_mean2, noise2_nchw.reshape(B, hw, 1),
                     params["noise2_w"])                      # (B, HW, OC)
    oc = f2.shape[-1]
    feat = jnp.transpose(f2.reshape(B, H, W, oc), (0, 3, 1, 2))  # back to NCHW
    return feat, x_nchw


# ---------------------------------------------------------------------------
# Pure-JAX reference mirroring the PyTorch graph.  Conv matmul operands are
# cast to bf16 (f32 accumulation) to match the kernel's mixed precision.
# ---------------------------------------------------------------------------
def _ref_forward(x, style, params, noise1, noise2):
    def conv(xi, w, bb):
        y = lax.conv_general_dilated(
            xi.astype(jnp.bfloat16), w.astype(jnp.bfloat16), (1, 1),
            [(1, 1), (1, 1)],
            dimension_numbers=("NCHW", "OIHW", "NCHW"),
            preferred_element_type=jnp.float32)
        return y + bb[None, :, None, None]

    def lrelu(v):
        return jnp.where(v >= 0, v, NEG_SLOPE * v)

    def adain(st, xi, w_std, b_std, w_mean, b_mean):
        s_std = st @ w_std.T + b_std
        s_mean = st @ w_mean.T + b_mean
        B, C, H, W = xi.shape
        xf = xi.reshape(B, C, H * W)
        mean = xf.mean(2, keepdims=True)
        xc = xf - mean
        std = lax.rsqrt((xc ** 2).mean(2, keepdims=True) + 1e-8)
        norm = (xc * std).reshape(B, C, H, W)
        return norm * s_std[:, :, None, None] + s_mean[:, :, None, None]

    f = lrelu(conv(x, params["conv1_w"], params["conv1_b"]))
    f = adain(style, f, params["style1_w_std"], params["style1_b_std"],
              params["style1_w_mean"], params["style1_b_mean"])
    f = f + noise1 * params["noise1_w"][None, :, None, None] \
          + params["conv1_b"][None, :, None, None]
    f = lrelu(conv(f, params["conv2_w"], params["conv2_b"]))
    f = adain(style, f, params["style2_w_std"], params["style2_b_std"],
              params["style2_w_mean"], params["style2_b_mean"])
    f = f + noise2 * params["noise2_w"][None, :, None, None] \
          + params["conv2_b"][None, :, None, None]
    return f, x


def _spectral_normalize(w):
    # spectral_norm at inference: divide by the top singular value (applied
    # once at parameter construction; power-iteration state not modeled).
    w2 = np.asarray(w).reshape(w.shape[0], -1)
    sigma = np.linalg.svd(w2, compute_uv=False)[0]
    return jnp.asarray(w) / jnp.float32(max(sigma, 1e-12))


if __name__ == "__main__":
    B, IC, OC, H, W = 2, 4, 4, 16, 16
    STYLE_DIM = 8
    K = min(IC, OC)

    key = jax.random.PRNGKey(0)
    keys = jax.random.split(key, 16)

    def init(kk, shape, scale=0.1):
        return scale * jax.random.normal(kk, shape, dtype=jnp.float32)

    params = {
        # SpectralDecoupledConv 1/2 (spectral-normalized conv weight + bias)
        "conv1_w": _spectral_normalize(init(keys[0], (K, IC, 3, 3))),
        "conv1_b": init(keys[1], (K,)),
        "conv2_w": _spectral_normalize(init(keys[2], (OC, K, 3, 3))),
        "conv2_b": init(keys[3], (OC,)),
        # SpectralAdaptiveNorm 1/2 (spectral-normalized linear weights)
        "style1_w_std": _spectral_normalize(init(keys[4], (K, STYLE_DIM))),
        "style1_b_std": init(keys[5], (K,)),
        "style1_w_mean": _spectral_normalize(init(keys[6], (K, STYLE_DIM))),
        "style1_b_mean": init(keys[7], (K,)),
        "style2_w_std": _spectral_normalize(init(keys[8], (OC, STYLE_DIM))),
        "style2_b_std": init(keys[9], (OC,)),
        "style2_w_mean": _spectral_normalize(init(keys[10], (OC, STYLE_DIM))),
        "style2_b_mean": init(keys[11], (OC,)),
        # SpectralNoiseLayer weight_orig (zeros in __init__; use small nonzero
        # values so the noise path is exercised)
        "noise1_w": init(keys[12], (K,), scale=0.05),
        "noise2_w": init(keys[13], (OC,), scale=0.05),
    }

    x = jax.random.normal(keys[14], (B, IC, H, W), dtype=jnp.float32)
    style = jax.random.normal(keys[15], (B, STYLE_DIM), dtype=jnp.float32)
    nk1, nk2 = jax.random.split(jax.random.PRNGKey(42))
    noise1 = jax.random.uniform(nk1, (B, 1, H, W), dtype=jnp.float32)  # torch.rand
    noise2 = jax.random.uniform(nk2, (B, 1, H, W), dtype=jnp.float32)

    feat, x_out = jax.jit(style_block_forward)(x, style, params, noise1, noise2)
    jax.block_until_ready(feat)
    jax.block_until_ready(x_out)

    feat_ref, x_ref_out = _ref_forward(x, style, params, noise1, noise2)
    np.testing.assert_allclose(np.asarray(feat), np.asarray(feat_ref),
                               rtol=1e-2, atol=1e-2)
    np.testing.assert_allclose(np.asarray(x_out), np.asarray(x_ref_out),
                               rtol=1e-6, atol=1e-6)

    print("KERNEL_OK")
</pallas_src>

<mosaic_0001>
module attributes {stable_mosaic.version = 11 : i64} {
  func.func @_fused_stage_kernel(%arg0: i32, %arg1: memref<1x18x18x4xf32, #tpu.memory_space<vmem>>, %arg2: memref<9x4x4xbf16, #tpu.memory_space<vmem>>, %arg3: memref<1x4xf32, #tpu.memory_space<vmem>>, %arg4: memref<1x1x4xf32, #tpu.memory_space<vmem>>, %arg5: memref<1x1x4xf32, #tpu.memory_space<vmem>>, %arg6: memref<1x256x1xf32, #tpu.memory_space<vmem>>, %arg7: memref<1x4xf32, #tpu.memory_space<vmem>>, %arg8: memref<1x256x4xf32, #tpu.memory_space<vmem>>) attributes {dimension_semantics = [#tpu.dimension_semantics<parallel>], iteration_bounds = array<i64: 2>, scalar_prefetch = 0 : i64, scratch_operands = 0 : i64, tpu.core_type = #tpu.core_type<tc>, window_params = [{transform_indices = @transform_0, window_bounds = array<i64: 1, 18, 18, 4>}, {pipeline_mode = #tpu.pipeline_mode<synchronous>, transform_indices = @transform_1, window_bounds = array<i64: 9, 4, 4>}, {pipeline_mode = #tpu.pipeline_mode<synchronous>, transform_indices = @transform_2, window_bounds = array<i64: 1, 4>}, {transform_indices = @transform_3, window_bounds = array<i64: 1, 1, 4>}, {transform_indices = @transform_4, window_bounds = array<i64: 1, 1, 4>}, {transform_indices = @transform_5, window_bounds = array<i64: 1, 256, 1>}, {pipeline_mode = #tpu.pipeline_mode<synchronous>, transform_indices = @transform_6, window_bounds = array<i64: 1, 4>}, {transform_indices = @transform_7, window_bounds = array<i64: 1, 256, 4>}]} {
    %cst = arith.constant 0.000000e+00 : f32
    %0 = vector.broadcast %cst : f32 to vector<256x4xf32>
    %c0 = arith.constant 0 : index
    %c0_0 = arith.constant 0 : index
    %c0_1 = arith.constant 0 : index
    %c0_2 = arith.constant 0 : index
    %1 = vector.load %arg1[%c0, %c0_0, %c0_1, %c0_2] : memref<1x18x18x4xf32, #tpu.memory_space<vmem>>, vector<1x16x16x4xf32>
    %2 = vector.shape_cast %1 : vector<1x16x16x4xf32> to vector<16x16x4xf32>
    %3 = vector.shape_cast %2 : vector<16x16x4xf32> to vector<256x4xf32>
    %4 = arith.truncf %3 : vector<256x4xf32> to vector<256x4xbf16>
    %c0_3 = arith.constant 0 : index
    %c0_4 = arith.constant 0 : index
    %c0_5 = arith.constant 0 : index
    %5 = vector.load %arg2[%c0_3, %c0_4, %c0_5] : memref<9x4x4xbf16, #tpu.memory_space<vmem>>, vector<1x4x4xbf16>
    %6 = vector.shape_cast %5 : vector<1x4x4xbf16> to vector<4x4xbf16>
    %cst_6 = arith.constant dense<0.000000e+00> : vector<256x4xf32>
    %7 = tpu.matmul %4, %6, %cst_6 {dimension_numbers = #tpu.dot_dimension_numbers<[1], [0], [0], [1], [0, 0, 1, 1], [], []>} : vector<256x4xbf16>, vector<4x4xbf16>, vector<256x4xf32> -> vector<256x4xf32>
    %8 = arith.addf %0, %7 : vector<256x4xf32>
    %c0_7 = arith.constant 0 : index
    %c0_8 = arith.constant 0 : index
    %c1 = arith.constant 1 : index
    %c0_9 = arith.constant 0 : index
    %9 = vector.load %arg1[%c0_7, %c0_8, %c1, %c0_9] : memref<1x18x18x4xf32, #tpu.memory_space<vmem>>, vector<1x16x16x4xf32>
    %10 = vector.shape_cast %9 : vector<1x16x16x4xf32> to vector<16x16x4xf32>
    %11 = vector.shape_cast %10 : vector<16x16x4xf32> to vector<256x4xf32>
    %12 = arith.truncf %11 : vector<256x4xf32> to vector<256x4xbf16>
    %c1_10 = arith.constant 1 : index
    %c0_11 = arith.constant 0 : index
    %c0_12 = arith.constant 0 : index
    %13 = vector.load %arg2[%c1_10, %c0_11, %c0_12] : memref<9x4x4xbf16, #tpu.memory_space<vmem>>, vector<1x4x4xbf16>
    %14 = vector.shape_cast %13 : vector<1x4x4xbf16> to vector<4x4xbf16>
    %cst_13 = arith.constant dense<0.000000e+00> : vector<256x4xf32>
    %15 = tpu.matmul %12, %14, %cst_13 {dimension_numbers = #tpu.dot_dimension_numbers<[1], [0], [0], [1], [0, 0, 1, 1], [], []>} : vector<256x4xbf16>, vector<4x4xbf16>, vector<256x4xf32> -> vector<256x4xf32>
    %16 = arith.addf %8, %15 : vector<256x4xf32>
    %c0_14 = arith.constant 0 : index
    %c0_15 = arith.constant 0 : index
    %c2 = arith.constant 2 : index
    %c0_16 = arith.constant 0 : index
    %17 = vector.load %arg1[%c0_14, %c0_15, %c2, %c0_16] : memref<1x18x18x4xf32, #tpu.memory_space<vmem>>, vector<1x16x16x4xf32>
    %18 = vector.shape_cast %17 : vector<1x16x16x4xf32> to vector<16x16x4xf32>
    %19 = vector.shape_cast %18 : vector<16x16x4xf32> to vector<256x4xf32>
    %20 = arith.truncf %19 : vector<256x4xf32> to vector<256x4xbf16>
    %c2_17 = arith.constant 2 : index
    %c0_18 = arith.constant 0 : index
    %c0_19 = arith.constant 0 : index
    %21 = vector.load %arg2[%c2_17, %c0_18, %c0_19] : memref<9x4x4xbf16, #tpu.memory_space<vmem>>, vector<1x4x4xbf16>
    %22 = vector.shape_cast %21 : vector<1x4x4xbf16> to vector<4x4xbf16>
    %cst_20 = arith.constant dense<0.000000e+00> : vector<256x4xf32>
    %23 = tpu.matmul %20, %22, %cst_20 {dimension_numbers = #tpu.dot_dimension_numbers<[1], [0], [0], [1], [0, 0, 1, 1], [], []>} : vector<256x4xbf16>, vector<4x4xbf16>, vector<256x4xf32> -> vector<256x4xf32>
    %24 = arith.addf %16, %23 : vector<256x4xf32>
    %c0_21 = arith.constant 0 : index
    %c1_22 = arith.constant 1 : index
    %c0_23 = arith.constant 0 : index
    %c0_24 = arith.constant 0 : index
    %25 = vector.load %arg1[%c0_21, %c1_22, %c0_23, %c0_24] : memref<1x18x18x4xf32, #tpu.memory_space<vmem>>, vector<1x16x16x4xf32>
    %26 = vector.shape_cast %25 : vector<1x16x16x4xf32> to vector<16x16x4xf32>
    %27 = vector.shape_cast %26 : vector<16x16x4xf32> to vector<256x4xf32>
    %28 = arith.truncf %27 : vector<256x4xf32> to vector<256x4xbf16>
    %c3 = arith.constant 3 : index
    %c0_25 = arith.constant 0 : index
    %c0_26 = arith.constant 0 : index
    %29 = vector.load %arg2[%c3, %c0_25, %c0_26] : memref<9x4x4xbf16, #tpu.memory_space<vmem>>, vector<1x4x4xbf16>
    %30 = vector.shape_cast %29 : vector<1x4x4xbf16> to vector<4x4xbf16>
    %cst_27 = arith.constant dense<0.000000e+00> : vector<256x4xf32>
    %31 = tpu.matmul %28, %30, %cst_27 {dimension_numbers = #tpu.dot_dimension_numbers<[1], [0], [0], [1], [0, 0, 1, 1], [], []>} : vector<256x4xbf16>, vector<4x4xbf16>, vector<256x4xf32> -> vector<256x4xf32>
    %32 = arith.addf %24, %31 : vector<256x4xf32>
    %c0_28 = arith.constant 0 : index
    %c1_29 = arith.constant 1 : index
    %c1_30 = arith.constant 1 : index
    %c0_31 = arith.constant 0 : index
    %33 = vector.load %arg1[%c0_28, %c1_29, %c1_30, %c0_31] : memref<1x18x18x4xf32, #tpu.memory_space<vmem>>, vector<1x16x16x4xf32>
    %34 = vector.shape_cast %33 : vector<1x16x16x4xf32> to vector<16x16x4xf32>
    %35 = vector.shape_cast %34 : vector<16x16x4xf32> to vector<256x4xf32>
    %36 = arith.truncf %35 : vector<256x4xf32> to vector<256x4xbf16>
    %c4 = arith.constant 4 : index
    %c0_32 = arith.constant 0 : index
    %c0_33 = arith.constant 0 : index
    %37 = vector.load %arg2[%c4, %c0_32, %c0_33] : memref<9x4x4xbf16, #tpu.memory_space<vmem>>, vector<1x4x4xbf16>
    %38 = vector.shape_cast %37 : vector<1x4x4xbf16> to vector<4x4xbf16>
    %cst_34 = arith.constant dense<0.000000e+00> : vector<256x4xf32>
    %39 = tpu.matmul %36, %38, %cst_34 {dimension_numbers = #tpu.dot_dimension_numbers<[1], [0], [0], [1], [0, 0, 1, 1], [], []>} : vector<256x4xbf16>, vector<4x4xbf16>, vector<256x4xf32> -> vector<256x4xf32>
    %40 = arith.addf %32, %39 : vector<256x4xf32>
    %c0_35 = arith.constant 0 : index
    %c1_36 = arith.constant 1 : index
    %c2_37 = arith.constant 2 : index
    %c0_38 = arith.constant 0 : index
    %41 = vector.load %arg1[%c0_35, %c1_36, %c2_37, %c0_38] : memref<1x18x18x4xf32, #tpu.memory_space<vmem>>, vector<1x16x16x4xf32>
    %42 = vector.shape_cast %41 : vector<1x16x16x4xf32> to vector<16x16x4xf32>
    %43 = vector.shape_cast %42 : vector<16x16x4xf32> to vector<256x4xf32>
    %44 = arith.truncf %43 : vector<256x4xf32> to vector<256x4xbf16>
    %c5 = arith.constant 5 : index
    %c0_39 = arith.constant 0 : index
    %c0_40 = arith.constant 0 : index
    %45 = vector.load %arg2[%c5, %c0_39, %c0_40] : memref<9x4x4xbf16, #tpu.memory_space<vmem>>, vector<1x4x4xbf16>
    %46 = vector.shape_cast %45 : vector<1x4x4xbf16> to vector<4x4xbf16>
    %cst_41 = arith.constant dense<0.000000e+00> : vector<256x4xf32>
    %47 = tpu.matmul %44, %46, %cst_41 {dimension_numbers = #tpu.dot_dimension_numbers<[1], [0], [0], [1], [0, 0, 1, 1], [], []>} : vector<256x4xbf16>, vector<4x4xbf16>, vector<256x4xf32> -> vector<256x4xf32>
    %48 = arith.addf %40, %47 : vector<256x4xf32>
    %c0_42 = arith.constant 0 : index
    %c2_43 = arith.constant 2 : index
    %c0_44 = arith.constant 0 : index
    %c0_45 = arith.constant 0 : index
    %49 = vector.load %arg1[%c0_42, %c2_43, %c0_44, %c0_45] : memref<1x18x18x4xf32, #tpu.memory_space<vmem>>, vector<1x16x16x4xf32>
    %50 = vector.shape_cast %49 : vector<1x16x16x4xf32> to vector<16x16x4xf32>
    %51 = vector.shape_cast %50 : vector<16x16x4xf32> to vector<256x4xf32>
    %52 = arith.truncf %51 : vector<256x4xf32> to vector<256x4xbf16>
    %c6 = arith.constant 6 : index
    %c0_46 = arith.constant 0 : index
    %c0_47 = arith.constant 0 : index
    %53 = vector.load %arg2[%c6, %c0_46, %c0_47] : memref<9x4x4xbf16, #tpu.memory_space<vmem>>, vector<1x4x4xbf16>
    %54 = vector.shape_cast %53 : vector<1x4x4xbf16> to vector<4x4xbf16>
    %cst_48 = arith.constant dense<0.000000e+00> : vector<256x4xf32>
    %55 = tpu.matmul %52, %54, %cst_48 {dimension_numbers = #tpu.dot_dimension_numbers<[1], [0], [0], [1], [0, 0, 1, 1], [], []>} : vector<256x4xbf16>, vector<4x4xbf16>, vector<256x4xf32> -> vector<256x4xf32>
    %56 = arith.addf %48, %55 : vector<256x4xf32>
    %c0_49 = arith.constant 0 : index
    %c2_50 = arith.constant 2 : index
    %c1_51 = arith.constant 1 : index
    %c0_52 = arith.constant 0 : index
    %57 = vector.load %arg1[%c0_49, %c2_50, %c1_51, %c0_52] : memref<1x18x18x4xf32, #tpu.memory_space<vmem>>, vector<1x16x16x4xf32>
    %58 = vector.shape_cast %57 : vector<1x16x16x4xf32> to vector<16x16x4xf32>
    %59 = vector.shape_cast %58 : vector<16x16x4xf32> to vector<256x4xf32>
    %60 = arith.truncf %59 : vector<256x4xf32> to vector<256x4xbf16>
    %c7 = arith.constant 7 : index
    %c0_53 = arith.constant 0 : index
    %c0_54 = arith.constant 0 : index
    %61 = vector.load %arg2[%c7, %c0_53, %c0_54] : memref<9x4x4xbf16, #tpu.memory_space<vmem>>, vector<1x4x4xbf16>
    %62 = vector.shape_cast %61 : vector<1x4x4xbf16> to vector<4x4xbf16>
    %cst_55 = arith.constant dense<0.000000e+00> : vector<256x4xf32>
    %63 = tpu.matmul %60, %62, %cst_55 {dimension_numbers = #tpu.dot_dimension_numbers<[1], [0], [0], [1], [0, 0, 1, 1], [], []>} : vector<256x4xbf16>, vector<4x4xbf16>, vector<256x4xf32> -> vector<256x4xf32>
    %64 = arith.addf %56, %63 : vector<256x4xf32>
    %c0_56 = arith.constant 0 : index
    %c2_57 = arith.constant 2 : index
    %c2_58 = arith.constant 2 : index
    %c0_59 = arith.constant 0 : index
    %65 = vector.load %arg1[%c0_56, %c2_57, %c2_58, %c0_59] : memref<1x18x18x4xf32, #tpu.memory_space<vmem>>, vector<1x16x16x4xf32>
    %66 = vector.shape_cast %65 : vector<1x16x16x4xf32> to vector<16x16x4xf32>
    %67 = vector.shape_cast %66 : vector<16x16x4xf32> to vector<256x4xf32>
    %68 = arith.truncf %67 : vector<256x4xf32> to vector<256x4xbf16>
    %c8 = arith.constant 8 : index
    %c0_60 = arith.constant 0 : index
    %c0_61 = arith.constant 0 : index
    %69 = vector.load %arg2[%c8, %c0_60, %c0_61] : memref<9x4x4xbf16, #tpu.memory_space<vmem>>, vector<1x4x4xbf16>
    %70 = vector.shape_cast %69 : vector<1x4x4xbf16> to vector<4x4xbf16>
    %cst_62 = arith.constant dense<0.000000e+00> : vector<256x4xf32>
    %71 = tpu.matmul %68, %70, %cst_62 {dimension_numbers = #tpu.dot_dimension_numbers<[1], [0], [0], [1], [0, 0, 1, 1], [], []>} : vector<256x4xbf16>, vector<4x4xbf16>, vector<256x4xf32> -> vector<256x4xf32>
    %72 = arith.addf %64, %71 : vector<256x4xf32>
    %c0_63 = arith.constant 0 : index
    %c0_64 = arith.constant 0 : index
    %73 = vector.load %arg3[%c0_63, %c0_64] : memref<1x4xf32, #tpu.memory_space<vmem>>, vector<1x4xf32>
    %74 = vector.broadcast %73 : vector<1x4xf32> to vector<256x4xf32>
    %75 = arith.addf %72, %74 : vector<256x4xf32>
    %cst_65 = arith.constant 0.000000e+00 : f32
    %76 = vector.broadcast %cst_65 : f32 to vector<256x4xf32>
    %77 = arith.cmpf oge, %75, %76 : vector<256x4xf32>
    %cst_66 = arith.constant 2.000000e-01 : f32
    %78 = vector.broadcast %cst_66 : f32 to vector<256x4xf32>
    %79 = arith.mulf %78, %75 : vector<256x4xf32>
    %80 = arith.select %77, %75, %79 : vector<256x4xi1>, vector<256x4xf32>
    %cst_67 = arith.constant dense<0.000000e+00> : vector<4xf32>
    %81 = vector.multi_reduction <add>, %80, %cst_67 [0] : vector<256x4xf32> to vector<4xf32>
    %82 = vector.shape_cast %81 : vector<4xf32> to vector<1x4xf32>
    %cst_68 = arith.constant 3.906250e-03 : f32
    %83 = vector.broadcast %cst_68 : f32 to vector<1x4xf32>
    %84 = arith.mulf %82, %83 : vector<1x4xf32>
    %85 = arith.mulf %80, %80 : vector<256x4xf32>
    %cst_69 = arith.constant dense<0.000000e+00> : vector<4xf32>
    %86 = vector.multi_reduction <add>, %85, %cst_69 [0] : vector<256x4xf32> to vector<4xf32>
    %87 = vector.shape_cast %86 : vector<4xf32> to vector<1x4xf32>
    %cst_70 = arith.constant 3.906250e-03 : f32
    %88 = vector.broadcast %cst_70 : f32 to vector<1x4xf32>
    %89 = arith.mulf %87, %88 : vector<1x4xf32>
    %90 = arith.mulf %84, %84 : vector<1x4xf32>
    %91 = arith.subf %89, %90 : vector<1x4xf32>
    %cst_71 = arith.constant 0.000000e+00 : f32
    %92 = vector.broadcast %cst_71 : f32 to vector<1x4xf32>
    %93 = arith.maximumf %91, %92 : vector<1x4xf32>
    %cst_72 = arith.constant 9.99999993E-9 : f32
    %94 = vector.broadcast %cst_72 : f32 to vector<1x4xf32>
    %95 = arith.addf %93, %94 : vector<1x4xf32>
    %96 = math.rsqrt %95 : vector<1x4xf32>
    %97 = vector.broadcast %84 : vector<1x4xf32> to vector<256x4xf32>
    %98 = arith.subf %80, %97 : vector<256x4xf32>
    %99 = vector.broadcast %96 : vector<1x4xf32> to vector<256x4xf32>
    %100 = arith.mulf %98, %99 : vector<256x4xf32>
    %c0_73 = arith.constant 0 : index
    %c0_74 = arith.constant 0 : index
    %c0_75 = arith.constant 0 : index
    %101 = vector.load %arg4[%c0_73, %c0_74, %c0_75] : memref<1x1x4xf32, #tpu.memory_space<vmem>>, vector<1x1x4xf32>
    %102 = vector.shape_cast %101 : vector<1x1x4xf32> to vector<1x4xf32>
    %103 = vector.broadcast %102 : vector<1x4xf32> to vector<256x4xf32>
    %104 = arith.mulf %100, %103 : vector<256x4xf32>
    %c0_76 = arith.constant 0 : index
    %c0_77 = arith.constant 0 : index
    %c0_78 = arith.constant 0 : index
    %105 = vector.load %arg5[%c0_76, %c0_77, %c0_78] : memref<1x1x4xf32, #tpu.memory_space<vmem>>, vector<1x1x4xf32>
    %106 = vector.shape_cast %105 : vector<1x1x4xf32> to vector<1x4xf32>
    %107 = vector.broadcast %106 : vector<1x4xf32> to vector<256x4xf32>
    %108 = arith.addf %104, %107 : vector<256x4xf32>
    %c0_79 = arith.constant 0 : index
    %c0_80 = arith.constant 0 : index
    %c0_81 = arith.constant 0 : index
    %109 = vector.load %arg6[%c0_79, %c0_80, %c0_81] : memref<1x256x1xf32, #tpu.memory_space<vmem>>, vector<1x256x1xf32>
    %110 = vector.shape_cast %109 : vector<1x256x1xf32> to vector<256x1xf32>
    %c0_82 = arith.constant 0 : index
    %c0_83 = arith.constant 0 : index
    %111 = vector.load %arg7[%c0_82, %c0_83] : memref<1x4xf32, #tpu.memory_space<vmem>>, vector<1x4xf32>
    %112 = vector.broadcast %110 : vector<256x1xf32> to vector<256x4xf32>
    %113 = vector.broadcast %111 : vector<1x4xf32> to vector<256x4xf32>
    %114 = arith.mulf %112, %113 : vector<256x4xf32>
    %115 = arith.addf %108, %114 : vector<256x4xf32>
    %116 = vector.broadcast %73 : vector<1x4xf32> to vector<256x4xf32>
    %117 = arith.addf %115, %116 : vector<256x4xf32>
    %c0_84 = arith.constant 0 : index
    %c0_85 = arith.constant 0 : index
    %c0_86 = arith.constant 0 : index
    %118 = vector.load %arg8[%c0_84, %c0_85, %c0_86] : memref<1x256x4xf32, #tpu.memory_space<vmem>>, vector<1x256x4xf32>
    %119 = vector.shape_cast %118 : vector<1x256x4xf32> to vector<256x4xf32>
    %120 = vector.shape_cast %117 : vector<256x4xf32> to vector<1x256x4xf32>
    tpu.vector_store %arg8[%c0_84, %c0_85, %c0_86], %120 {strides = array<i32>} : memref<1x256x4xf32, #tpu.memory_space<vmem>>, vector<1x256x4xf32>,
    return
  }
  func.func @transform_0(%arg0: i32) -> (i32, i32, i32, i32) {
    %c0_i32 = arith.constant 0 : i32
    %c0_i32_0 = arith.constant 0 : i32
    %c0_i32_1 = arith.constant 0 : i32
    %c0_i32_2 = arith.constant 0 : i32
    return %arg0, %c0_i32, %c0_i32_0, %c0_i32_1 : i32, i32, i32, i32
  }
  func.func @transform_1(%arg0: i32) -> (i32, i32, i32) {
    %c0_i32 = arith.constant 0 : i32
    %c0_i32_0 = arith.constant 0 : i32
    %c0_i32_1 = arith.constant 0 : i32
    %c0_i32_2 = arith.constant 0 : i32
    return %c0_i32, %c0_i32_0, %c0_i32_1 : i32, i32, i32
  }
  func.func @transform_2(%arg0: i32) -> (i32, i32) {
    %c0_i32 = arith.constant 0 : i32
    %c0_i32_0 = arith.constant 0 : i32
    %c0_i32_1 = arith.constant 0 : i32
    return %c0_i32, %c0_i32_0 : i32, i32
  }
  func.func @transform_3(%arg0: i32) -> (i32, i32, i32) {
    %c0_i32 = arith.constant 0 : i32
    %c0_i32_0 = arith.constant 0 : i32
    %c0_i32_1 = arith.constant 0 : i32
    return %arg0, %c0_i32, %c0_i32_0 : i32, i32, i32
  }
  func.func @transform_4(%arg0: i32) -> (i32, i32, i32) {
    %c0_i32 = arith.constant 0 : i32
    %c0_i32_0 = arith.constant 0 : i32
    %c0_i32_1 = arith.constant 0 : i32
    return %arg0, %c0_i32, %c0_i32_0 : i32, i32, i32
  }
  func.func @transform_5(%arg0: i32) -> (i32, i32, i32) {
    %c0_i32 = arith.constant 0 : i32
    %c0_i32_0 = arith.constant 0 : i32
    %c0_i32_1 = arith.constant 0 : i32
    return %arg0, %c0_i32, %c0_i32_0 : i32, i32, i32
  }
  func.func @transform_6(%arg0: i32) -> (i32, i32) {
    %c0_i32 = arith.constant 0 : i32
    %c0_i32_0 = arith.constant 0 : i32
    %c0_i32_1 = arith.constant 0 : i32
    return %c0_i32, %c0_i32_0 : i32, i32
  }
  func.func @transform_7(%arg0: i32) -> (i32, i32, i32) {
    %c0_i32 = arith.constant 0 : i32
    %c0_i32_0 = arith.constant 0 : i32
    %c0_i32_1 = arith.constant 0 : i32
    return %arg0, %c0_i32, %c0_i32_0 : i32, i32, i32
  }
}

</mosaic_0001>

<llo_original>
// kernel: style_block_forward.2
$region0: #{style_block_forward.2}
  #allocation0 [shape = 'u32[]', space=smem, size = 0x4, offset = 0x4, fixed_abs, tag = 'smem constant byte address 0x4 - core index']
  #allocation1 [shape = 'u32[144,128]{1,0:T(1,128)}', space=vmem, size = 0x12000, scoped, tag = 'internal scratch']
  %s0 = inlined_call_operand.hbm [shape: f32[2,18,18,4], index: 0, kind: input, shape index: {}]
  %s1 = inlined_call_operand.hbm [shape: bf16[9,4,4], index: 1, kind: input, shape index: {}]
  %s2 = inlined_call_operand.hbm [shape: f32[1,4], index: 2, kind: input, shape index: {}]
  %s3 = inlined_call_operand.hbm [shape: f32[2,1,4], index: 3, kind: input, shape index: {}]
  %s4 = inlined_call_operand.hbm [shape: f32[2,1,4], index: 4, kind: input, shape index: {}]
  %s5 = inlined_call_operand.hbm [shape: f32[2,256,1], index: 5, kind: input, shape index: {}]
  %s6 = inlined_call_operand.hbm [shape: f32[1,4], index: 6, kind: input, shape index: {}]
  %s7 = inlined_call_operand.hbm [shape: f32[2,256,4], index: 7, kind: output, shape index: {}]
  %s8 = sld [smem:[#allocation0]]
  $region89: #{style_block_forward.2} parent=0
    _
  %s10 = ssub.s32 1, %s8
  %s11 = scalar_select 0, %s10, %s8
  $region1: #{style_block_forward.2} parent=0
    #allocation2 [shape = 'u8[442368]{0}', space=vmem, size = 0x6c000, scoped, tag = 'input window, operand 0']
    #allocation3 [shape = 's32[2]{0}', space=sflag, size = 0x8, scoped, tag = 'scoped memory for style_block_forward.2']
    #allocation4 [shape = 's32[2]{0}', space=sflag, size = 0x8, scoped, tag = 'scoped memory for style_block_forward.2']
    #allocation5 [shape = 'u8[9216]{0}', space=vmem, size = 0x2400, scoped, tag = 'input window, operand 1, single buffered']
    #allocation6 [shape = 's32[1]{0}', space=sflag, size = 0x4, scoped, tag = 'scoped memory for style_block_forward.2']
    #allocation7 [shape = 'u8[512]{0}', space=vmem, size = 0x400, scoped, tag = 'input window, operand 2, single buffered']
    #allocation8 [shape = 'u8[1024]{0}', space=vmem, size = 0x400, scoped, tag = 'input window, operand 3']
    #allocation9 [shape = 's32[2]{0}', space=sflag, size = 0x8, scoped, tag = 'scoped memory for style_block_forward.2']
    #allocation10 [shape = 'u8[1024]{0}', space=vmem, size = 0x400, scoped, tag = 'input window, operand 4']
    #allocation11 [shape = 'u8[262144]{0}', space=vmem, size = 0x40000, scoped, tag = 'input window, operand 5']
    #allocation12 [shape = 's32[2]{0}', space=sflag, size = 0x8, scoped, tag = 'scoped memory for style_block_forward.2']
    #allocation13 [shape = 'u8[512]{0}', space=vmem, size = 0x400, scoped, tag = 'input window, operand 6, single buffered']
    #allocation14 [shape = 'u8[262144]{0}', space=vmem, size = 0x40000, scoped, tag = 'output window, operand 0']
    %12 = vsyncpa [#allocation3], 0
    %s13 = scalar_lea.sflag [#allocation3], 1
    %14 = vsyncpa %s13, 0
    %15 = vsyncpa [#allocation6], 0
    %16 = vsyncpa [#allocation9], 0
    %s17 = scalar_lea.sflag [#allocation9], 1
    %18 = vsyncpa %s17, 0
    %19 = vsyncpa [#allocation12], 0
    %s20 = scalar_lea.sflag [#allocation12], 1
    %21 = vsyncpa %s20, 0
    %22 = vsyncpa [#allocation4], 0
    %s23 = scalar_lea.sflag [#allocation4], 1
    %24 = vsyncpa %s23, 0
    loop: start=0, step=1, limit=4
    $region2: #{style_block_forward.2} parent=1 // loop_pre_header
      _
    $region3: #{style_block_forward.2} parent=1 // loop_header
      %s26 = sphi 0, %s30
      %p27 = scmp.ge.s32.totalorder %s26, 4
      %s36 = sphi 0, %s38
      %s39 = sphi 0, %s36
      %s40 = sphi 0, %s39
      %s56 = sphi 0, %s40
      %s60 = sphi 0, %s60
      %s62 = sphi 0, %s60
      %s63 = sphi 0, %s62
      %s77 = sphi 0, %s63
      %s81 = sphi 0, %s81
      %s83 = sphi 0, %s81
      %s84 = sphi 0, %s83
      %s98 = sphi 0, %s84
      %s104 = sphi 0, %s106
      %s107 = sphi 0, %s104
      %s108 = sphi 0, %s107
      %s124 = sphi 0, %s108
      %s130 = sphi 0, %s132
      %s133 = sphi 0, %s130
      %s134 = sphi 0, %s133
      %s150 = sphi 0, %s134
      %s156 = sphi 0, %s158
      %s159 = sphi 0, %s156
      %s160 = sphi 0, %s159
      %s176 = sphi 0, %s160
      %s180 = sphi 0, %s180
      %s182 = sphi 0, %s180
      %s183 = sphi 0, %s182
      %s197 = sphi 0, %s183
      %s203 = sphi 0, %s205
      %s206 = sphi 0, %s203
      %s207 = sphi 0, %s206
      %s223 = sphi 0, %s207
    $region4: #{style_block_forward.2} parent=1 // loop_header_branch
      %29 = sbr.rel (%p27) target = $region8
    $region5: #{style_block_forward.2} parent=1 // loop_body
      %s31 = ssub.s32 %s26, 1
      %s32 = ssub.s32 %s26, 2
      %s33 = sadd.s32 %s26, 1
      %s34 = ssub.s32 %s26, %s33
      %p35 = scmp.eq.s32.totalorder %s34, 0
      %s37 = sadd.s32 %s36, 1
      %s38 = scalar_select %p35, %s36, %s37
      %p41 = pneg %p35
      %p42 = scmp.eq.s32.totalorder %s26, 1
      %p43 = por %p41, %p42
      %p44 = scmp.ne.s32.totalorder %s36, %s39
      %p45 = scmp.eq.s32.totalorder %s26, 0
      %p46 = por %p44, %p45
      %p47 = scmp.ne.s32.totalorder %s36, %s39
      %p48 = scmp.eq.s32.totalorder %s31, 1
      %p49 = por %p47, %p48
      %p50 = scmp.ne.s32.totalorder %s39, %s40
      %p51 = scmp.eq.s32.totalorder %s31, 0
      %p52 = por %p50, %p51
      %p53 = scmp.ne.s32.totalorder %s39, %s40
      %p54 = scmp.eq.s32.totalorder %s32, 1
      %p55 = por %p53, %p54
      %p57 = scmp.ne.s32.totalorder %s40, %s56
      %p58 = scmp.eq.s32.totalorder %s32, 0
      %p59 = por %p57, %p58
      %s61 = sadd.s32 %s60, 1
      %p64 = scmp.eq.s32.totalorder %s26, 1
      %p65 = scmp.ne.s32.totalorder %s60, %s62
      %p66 = scmp.eq.s32.totalorder %s26, 0
      %p67 = por %p65, %p66
      %p68 = scmp.ne.s32.totalorder %s60, %s62
      %p69 = scmp.eq.s32.totalorder %s31, 1
      %p70 = por %p68, %p69
      %p71 = scmp.ne.s32.totalorder %s62, %s63
      %p72 = scmp.eq.s32.totalorder %s31, 0
      %p73 = por %p71, %p72
      %p74 = scmp.ne.s32.totalorder %s62, %s63
      %p75 = scmp.eq.s32.totalorder %s32, 1
      %p76 = por %p74, %p75
      %p78 = scmp.ne.s32.totalorder %s63, %s77
      %p79 = scmp.eq.s32.totalorder %s32, 0
      %p80 = por %p78, %p79
      %s82 = sadd.s32 %s81, 1
      %p85 = scmp.eq.s32.totalorder %s26, 1
      %p86 = scmp.ne.s32.totalorder %s81, %s83
      %p87 = scmp.eq.s32.totalorder %s26, 0
      %p88 = por %p86, %p87
      %p89 = scmp.ne.s32.totalorder %s81, %s83
      %p90 = scmp.eq.s32.totalorder %s31, 1
      %p91 = por %p89, %p90
      %p92 = scmp.ne.s32.totalorder %s83, %s84
      %p93 = scmp.eq.s32.totalorder %s31, 0
      %p94 = por %p92, %p93
      %p95 = scmp.ne.s32.totalorder %s83, %s84
      %p96 = scmp.eq.s32.totalorder %s32, 1
      %p97 = por %p95, %p96
      %p99 = scmp.ne.s32.totalorder %s84, %s98
      %p100 = scmp.eq.s32.totalorder %s32, 0
      %p101 = por %p99, %p100
      %s102 = ssub.s32 %s26, %s33
      %p103 = scmp.eq.s32.totalorder %s102, 0
      %s105 = sadd.s32 %s104, 1
      %s106 = scalar_select %p103, %s104, %s105
      %p109 = pneg %p103
      %p110 = scmp.eq.s32.totalorder %s26, 1
      %p111 = por %p109, %p110
      %p112 = scmp.ne.s32.totalorder %s104, %s107
      %p113 = scmp.eq.s32.totalorder %s26, 0
      %p114 = por %p112, %p113
      %p115 = scmp.ne.s32.totalorder %s104, %s107
      %p116 = scmp.eq.s32.totalorder %s31, 1
      %p117 = por %p115, %p116
      %p118 = scmp.ne.s32.totalorder %s107, %s108
      %p119 = scmp.eq.s32.totalorder %s31, 0
      %p120 = por %p118, %p119
      %p121 = scmp.ne.s32.totalorder %s107, %s108
      %p122 = scmp.eq.s32.totalorder %s32, 1
      %p123 = por %p121, %p122
      %p125 = scmp.ne.s32.totalorder %s108, %s124
      %p126 = scmp.eq.s32.totalorder %s32, 0
      %p127 = por %p125, %p126
      %s128 = ssub.s32 %s26, %s33
      %p129 = scmp.eq.s32.totalorder %s128, 0
      %s131 = sadd.s32 %s130, 1
      %s132 = scalar_select %p129, %s130, %s131
      %p135 = pneg %p129
      %p136 = scmp.eq.s32.totalorder %s26, 1
      %p137 = por %p135, %p136
      %p138 = scmp.ne.s32.totalorder %s130, %s133
      %p139 = scmp.eq.s32.totalorder %s26, 0
      %p140 = por %p138, %p139
      %p141 = scmp.ne.s32.totalorder %s130, %s133
      %p142 = scmp.eq.s32.totalorder %s31, 1
      %p143 = por %p141, %p142
      %p144 = scmp.ne.s32.totalorder %s133, %s134
      %p145 = scmp.eq.s32.totalorder %s31, 0
      %p146 = por %p144, %p145
      %p147 = scmp.ne.s32.totalorder %s133, %s134
      %p148 = scmp.eq.s32.totalorder %s32, 1
      %p149 = por %p147, %p148
      %p151 = scmp.ne.s32.totalorder %s134, %s150
      %p152 = scmp.eq.s32.totalorder %s32, 0
      %p153 = por %p151, %p152
      %s154 = ssub.s32 %s26, %s33
      %p155 = scmp.eq.s32.totalorder %s154, 0
      %s157 = sadd.s32 %s156, 1
      %s158 = scalar_select %p155, %s156, %s157
      %p161 = pneg %p155
      %p162 = scmp.eq.s32.totalorder %s26, 1
      %p163 = por %p161, %p162
      %p164 = scmp.ne.s32.totalorder %s156, %s159
      %p165 = scmp.eq.s32.totalorder %s26, 0
      %p166 = por %p164, %p165
      %p167 = scmp.ne.s32.totalorder %s156, %s159
      %p168 = scmp.eq.s32.totalorder %s31, 1
      %p169 = por %p167, %p168
      %p170 = scmp.ne.s32.totalorder %s159, %s160
      %p171 = scmp.eq.s32.totalorder %s31, 0
      %p172 = por %p170, %p171
      %p173 = scmp.ne.s32.totalorder %s159, %s160
      %p174 = scmp.eq.s32.totalorder %s32, 1
      %p175 = por %p173, %p174
      %p177 = scmp.ne.s32.totalorder %s160, %s176
      %p178 = scmp.eq.s32.totalorder %s32, 0
      %p179 = por %p177, %p178
      %s181 = sadd.s32 %s180, 1
      %p184 = scmp.eq.s32.totalorder %s26, 1
      %p185 = scmp.ne.s32.totalorder %s180, %s182
      %p186 = scmp.eq.s32.totalorder %s26, 0
      %p187 = por %p185, %p186
      %p188 = scmp.ne.s32.totalorder %s180, %s182
      %p189 = scmp.eq.s32.totalorder %s31, 1
      %p190 = por %p188, %p189
      %p191 = scmp.ne.s32.totalorder %s182, %s183
      %p192 = scmp.eq.s32.totalorder %s31, 0
      %p193 = por %p191, %p192
      %p194 = scmp.ne.s32.totalorder %s182, %s183
      %p195 = scmp.eq.s32.totalorder %s32, 1
      %p196 = por %p194, %p195
      %p198 = scmp.ne.s32.totalorder %s183, %s197
      %p199 = scmp.eq.s32.totalorder %s32, 0
      %p200 = por %p198, %p199
      %s201 = ssub.s32 %s26, %s33
      %p202 = scmp.eq.s32.totalorder %s201, 0
      %s204 = sadd.s32 %s203, 1
      %s205 = scalar_select %p202, %s203, %s204
      %p208 = pneg %p202
      %p209 = scmp.eq.s32.totalorder %s26, 1
      %p210 = por %p208, %p209
      %p211 = scmp.ne.s32.totalorder %s203, %s206
      %p212 = scmp.eq.s32.totalorder %s26, 0
      %p213 = por %p211, %p212
      %p214 = scmp.ne.s32.totalorder %s203, %s206
      %p215 = scmp.eq.s32.totalorder %s31, 1
      %p216 = por %p214, %p215
      %p217 = scmp.ne.s32.totalorder %s206, %s207
      %p218 = scmp.eq.s32.totalorder %s31, 0
      %p219 = por %p217, %p218
      %p220 = scmp.ne.s32.totalorder %s206, %s207
      %p221 = scmp.eq.s32.totalorder %s32, 1
      %p222 = por %p220, %p221
      %p224 = scmp.ne.s32.totalorder %s207, %s223
      %p225 = scmp.eq.s32.totalorder %s32, 0
      %p226 = por %p224, %p225
      %p227 = scmp.le.s32.totalorder 1, %s26
      %p228 = scmp.lt.s32.totalorder %s26, 3
      %p229 = pnand %p227, %p228
      %p230 = pneg %p229
      // Predicated region
      $region9: #{style_block_forward.2} parent=5 // pred_check
        _
      $region10: #{style_block_forward.2} parent=5 // pred_check_branch
        %232 = sbr.rel (%p229) target = $region12
      $region11: #{style_block_forward.2} parent=5 // pred_region
        %s233 = ssub.s32 %s26, 1
        // Predicated region
        $region13: #{style_block_forward.2} parent=11 // pred_check
          %p234 = pneg %p73
        $region14: #{style_block_forward.2} parent=11 // pred_check_branch
          %236 = sbr.rel (%p234) target = $region16
        $region15: #{style_block_forward.2} parent=11 // pred_region
          %s238 = ssub.s32 288, 288
          %239 = vsyncadd [#allocation6], %s238
          %s240 = sshll.u32 [#allocation5], 4
          %s241 = int_to_ptr.vmem [resolvable:$true] %s240
          %246 = dma.hbm_to_vmem [thread:$0]  %s1, 288, %s241, [#allocation6], 32, 32, 2
        $region16: #{style_block_forward.2} parent=11 // pred_fallthru
          _
        // Predicated region
        $region17: #{style_block_forward.2} parent=11 // pred_check
          %p247 = pneg %p94
        $region18: #{style_block_forward.2} parent=11 // pred_check_branch
          %249 = sbr.rel (%p247) target = $region20
        $region19: #{style_block_forward.2} parent=11 // pred_region
          %s251 = ssub.s32 16, 16
          %252 = vsyncadd [#allocation6], %s251
          %s254 = sshll.u32 [#allocation7], 4
          %s255 = int_to_ptr.vmem [resolvable:$true] %s254
          %257 = dma.hbm_to_vmem [thread:$0]  %s2, 16, %s255, [#allocation6]
        $region20: #{style_block_forward.2} parent=11 // pred_fallthru
          _
        // Predicated region
        $region21: #{style_block_forward.2} parent=11 // pred_check
          %p258 = pneg %p193
        $region22: #{style_block_forward.2} parent=11 // pred_check_branch
          %260 = sbr.rel (%p258) target = $region24
        $region23: #{style_block_forward.2} parent=11 // pred_region
          %s262 = ssub.s32 16, 16
          %263 = vsyncadd [#allocation12], %s262
          %s265 = sshll.u32 [#allocation13], 4
          %s266 = int_to_ptr.vmem [resolvable:$true] %s265
          %268 = dma.hbm_to_vmem [thread:$0]  %s6, 16, %s266, [#allocation12]
        $region24: #{style_block_forward.2} parent=11 // pred_fallthru
          _
      $region12: #{style_block_forward.2} parent=5 // pred_fallthru
        _
      %p269 = scmp.lt.s32.totalorder %s26, 2
      // Predicated region
      $region25: #{style_block_forward.2} parent=5 // pred_check
        %p270 = pneg %p269
      $region26: #{style_block_forward.2} parent=5 // pred_check_branch
        %272 = sbr.rel (%p270) target = $region28
      $region27: #{style_block_forward.2} parent=5 // pred_region
        // Predicated region
        $region29: #{style_block_forward.2} parent=27 // pred_check
          %p273 = pneg %p46
        $region30: #{style_block_forward.2} parent=27 // pred_check_branch
          %275 = sbr.rel (%p273) target = $region32
        $region31: #{style_block_forward.2} parent=27 // pred_region
          %s276 = sand.u32 %s36, 1
          %s277 = scalar_lea.sflag [#allocation3], %s276
          %s278 = sand.u32 %s36, 1
          %s279 = smul.addr %s278, 432
          %s280 = scalar_lea.vmem [#allocation2], %s279
          %s282 = ssub.s32 6912, 6912
          %283 = vsyncadd %s277, %s282
          %s284 = smul.addr %s26, 54
          %s285 = smul.addr %s284, 128
          %s286 = scalar_lea.hbm %s0, %s285
          %s287 = sshll.u32 %s280, 4
          %s288 = int_to_ptr.vmem [resolvable:$true] %s287
          %293 = dma.hbm_to_vmem [thread:$0]  %s286, 6912, %s288, %s277, 128, 128, 8
        $region32: #{style_block_forward.2} parent=27 // pred_fallthru
          _
        // Predicated region
        $region33: #{style_block_forward.2} parent=27 // pred_check
          %p294 = pneg %p114
        $region34: #{style_block_forward.2} parent=27 // pred_check_branch
          %296 = sbr.rel (%p294) target = $region36
        $region35: #{style_block_forward.2} parent=27 // pred_region
          %s297 = sand.u32 %s26, 1
          %s298 = scalar_lea.sflag [#allocation9], %s297
          %s299 = sand.u32 %s104, 1
          %s300 = scalar_lea.vmem [#allocation8], %s299
          %s302 = ssub.s32 16, 16
          %303 = vsyncadd %s298, %s302
          %s304 = smul.addr %s26, 16
          %s305 = scalar_lea.hbm %s3, %s304
          %s307 = sshll.u32 %s300, 4
          %s308 = int_to_ptr.vmem [resolvable:$true] %s307
          %310 = dma.hbm_to_vmem [thread:$0]  %s305, 16, %s308, %s298
        $region36: #{style_block_forward.2} parent=27 // pred_fallthru
          _
        // Predicated region
        $region37: #{style_block_forward.2} parent=27 // pred_check
          %p311 = pneg %p140
        $region38: #{style_block_forward.2} parent=27 // pred_check_branch
          %313 = sbr.rel (%p311) target = $region40
        $region39: #{style_block_forward.2} parent=27 // pred_region
          %s314 = sand.u32 %s26, 1
          %s315 = scalar_lea.sflag [#allocation9], %s314
          %s316 = sand.u32 %s130, 1
          %s317 = scalar_lea.vmem [#allocation10], %s316
          %s319 = ssub.s32 16, 16
          %320 = vsyncadd %s315, %s319
          %s321 = smul.addr %s26, 16
          %s322 = scalar_lea.hbm %s4, %s321
          %s324 = sshll.u32 %s317, 4
          %s325 = int_to_ptr.vmem [resolvable:$true] %s324
          %327 = dma.hbm_to_vmem [thread:$0]  %s322, 16, %s325, %s315
        $region40: #{style_block_forward.2} parent=27 // pred_fallthru
          _
        // Predicated region
        $region41: #{style_block_forward.2} parent=27 // pred_check
          %p328 = pneg %p166
        $region42: #{style_block_forward.2} parent=27 // pred_check_branch
          %330 = sbr.rel (%p328) target = $region44
        $region43: #{style_block_forward.2} parent=27 // pred_region
          %s331 = sand.u32 %s26, 1
          %s332 = scalar_lea.sflag [#allocation12], %s331
          %s333 = sand.u32 %s156, 1
          %s334 = smul.addr %s333, 256
          %s335 = scalar_lea.vmem [#allocation11], %s334
          %s337 = ssub.s32 4096, 4096
          %338 = vsyncadd %s332, %s337
          %s339 = smul.addr %s26, 32
          %s340 = smul.addr %s339, 128
          %s341 = scalar_lea.hbm %s5, %s340
          %s342 = sshll.u32 %s335, 4
          %s343 = int_to_ptr.vmem [resolvable:$true] %s342
          %348 = dma.hbm_to_vmem [thread:$0]  %s341, 4096, %s343, %s332, 128, 128, 8
        $region44: #{style_block_forward.2} parent=27 // pred_fallthru
          _
      $region28: #{style_block_forward.2} parent=5 // pred_fallthru
        _
      %p349 = scmp.le.s32.totalorder 1, %s26
      %p350 = scmp.lt.s32.totalorder %s26, 3
      %p351 = pnand %p349, %p350
      %p352 = pneg %p351
      // Predicated region
      $region45: #{style_block_forward.2} parent=5 // pred_check
        _
      $region46: #{style_block_forward.2} parent=5 // pred_check_branch
        %354 = sbr.rel (%p351) target = $region48
      $region47: #{style_block_forward.2} parent=5 // pred_region
        %s355 = ssub.s32 %s26, 1
        %s356 = sand.u32 %s39, 1
        %s357 = scalar_lea.sflag [#allocation3], %s356
        %s358 = sand.u32 %s39, 1
        %s359 = smul.addr %s358, 432
        %s360 = scalar_lea.vmem [#allocation2], %s359
        // Predicated region
        $region49: #{style_block_forward.2} parent=47 // pred_check
          %p361 = pneg %p52
        $region50: #{style_block_forward.2} parent=47 // pred_check_branch
          %363 = sbr.rel (%p361) target = $region52
        $region51: #{style_block_forward.2} parent=47 // pred_region
          %364 = dma.done %s357, 6912
        $region52: #{style_block_forward.2} parent=47 // pred_fallthru
          _
        // Predicated region
        $region53: #{style_block_forward.2} parent=47 // pred_check
          %p365 = pneg %p73
        $region54: #{style_block_forward.2} parent=47 // pred_check_branch
          %367 = sbr.rel (%p365) target = $region56
        $region55: #{style_block_forward.2} parent=47 // pred_region
          %368 = dma.done [#allocation6], 288
        $region56: #{style_block_forward.2} parent=47 // pred_fallthru
          _
        // Predicated region
        $region57: #{style_block_forward.2} parent=47 // pred_check
          %p369 = pneg %p94
        $region58: #{style_block_forward.2} parent=47 // pred_check_branch
          %371 = sbr.rel (%p369) target = $region60
        $region59: #{style_block_forward.2} parent=47 // pred_region
          %372 = dma.done [#allocation6], 16
        $region60: #{style_block_forward.2} parent=47 // pred_fallthru
          _
        %s373 = sand.u32 %s31, 1
        %s374 = scalar_lea.sflag [#allocation9], %s373
        %s375 = sand.u32 %s107, 1
        %s376 = scalar_lea.vmem [#allocation8], %s375
        // Predicated region
        $region61: #{style_block_forward.2} parent=47 // pred_check
          %p377 = pneg %p120
        $region62: #{style_block_forward.2} parent=47 // pred_check_branch
          %379 = sbr.rel (%p377) target = $region64
        $region63: #{style_block_forward.2} parent=47 // pred_region
          %380 = dma.done %s374, 16
        $region64: #{style_block_forward.2} parent=47 // pred_fallthru
          _
        %s381 = sand.u32 %s31, 1
        %s382 = scalar_lea.sflag [#allocation9], %s381
        %s383 = sand.u32 %s133, 1
        %s384 = scalar_lea.vmem [#allocation10], %s383
        // Predicated region
        $region65: #{style_block_forward.2} parent=47 // pred_check
          %p385 = pneg %p146
        $region66: #{style_block_forward.2} parent=47 // pred_check_branch
          %387 = sbr.rel (%p385) target = $region68
        $region67: #{style_block_forward.2} parent=47 // pred_region
          %388 = dma.done %s382, 16
        $region68: #{style_block_forward.2} parent=47 // pred_fallthru
          _
        %s389 = sand.u32 %s31, 1
        %s390 = scalar_lea.sflag [#allocation12], %s389
        %s391 = sand.u32 %s159, 1
        %s392 = smul.addr %s391, 256
        %s393 = scalar_lea.vmem [#allocation11], %s392
        // Predicated region
        $region69: #{style_block_forward.2} parent=47 // pred_check
          %p394 = pneg %p172
        $region70: #{style_block_forward.2} parent=47 // pred_check_branch
          %396 = sbr.rel (%p394) target = $region72
        $region71: #{style_block_forward.2} parent=47 // pred_region
          %397 = dma.done %s390, 4096
        $region72: #{style_block_forward.2} parent=47 // pred_fallthru
          _
        // Predicated region
        $region73: #{style_block_forward.2} parent=47 // pred_check
          %p398 = pneg %p193
        $region74: #{style_block_forward.2} parent=47 // pred_check_branch
          %400 = sbr.rel (%p398) target = $region76
        $region75: #{style_block_forward.2} parent=47 // pred_region
          %401 = dma.done [#allocation12], 16
        $region76: #{style_block_forward.2} parent=47 // pred_fallthru
          _
        %s402 = sand.u32 %s39, 1
        %s403 = scalar_lea.sflag [#allocation3], %s402
        %s404 = sand.u32 %s39, 1
        %s405 = smul.addr %s404, 432
        %s406 = scalar_lea.vmem [#allocation2], %s405
        %p407 = pneg %p52
        %p408 = pneg %p49
        %p409 = pneg %p73
        %p410 = pneg %p70
        %p411 = pneg %p94
        %p412 = pneg %p91
        %s413 = sand.u32 %s31, 1
        %s414 = scalar_lea.sflag [#allocation9], %s413
        %s415 = sand.u32 %s107, 1
        %s416 = scalar_lea.vmem [#allocation8], %s415
        %p417 = pneg %p120
        %p418 = pneg %p117
        %s419 = sand.u32 %s31, 1
        %s420 = scalar_lea.sflag [#allocation9], %s419
        %s421 = sand.u32 %s133, 1
        %s422 = scalar_lea.vmem [#allocation10], %s421
        %p423 = pneg %p146
        %p424 = pneg %p143
        %s425 = sand.u32 %s31, 1
        %s426 = scalar_lea.sflag [#allocation12], %s425
        %s427 = sand.u32 %s159, 1
        %s428 = smul.addr %s427, 256
        %s429 = scalar_lea.vmem [#allocation11], %s428
        %p430 = pneg %p172
        %p431 = pneg %p169
        %p432 = pneg %p193
        %p433 = pneg %p190
        %p434 = pneg %p219
        %p435 = pneg %p216
        %s436 = sand.u32 %s206, 1
        %s437 = scalar_lea.sflag [#allocation4], %s436
        %s438 = sand.u32 %s206, 1
        %s439 = smul.addr %s438, 256
        %s440 = scalar_lea.vmem [#allocation14], %s439
        %v442 = vld [vmem:[%s360] sm:$0xff]
        %v443 = vld [vmem:[%s360 + $0x8] sm:$0xff]
        %v444 = vld [vmem:[%s360 + $0x18] sm:$0xff]
        %v445 = vld [vmem:[%s360 + $0x20] sm:$0xff]
        %v446 = vld [vmem:[%s360 + $0x30] sm:$0xff]
        %v447 = vld [vmem:[%s360 + $0x38] sm:$0xff]
        %v448 = vld [vmem:[%s360 + $0x48] sm:$0xff]
        %v449 = vld [vmem:[%s360 + $0x50] sm:$0xff]
        %v450 = vld [vmem:[%s360 + $0x60] sm:$0xff]
        %v451 = vld [vmem:[%s360 + $0x68] sm:$0xff]
        %v452 = vld [vmem:[%s360 + $0x78] sm:$0xff]
        %v453 = vld [vmem:[%s360 + $0x80] sm:$0xff]
        %v454 = vld [vmem:[%s360 + $0x90] sm:$0xff]
        %v455 = vld [vmem:[%s360 + $0x98] sm:$0xff]
        %v456 = vld [vmem:[%s360 + $0xa8] sm:$0xff]
        %v457 = vld [vmem:[%s360 + $0xb0] sm:$0xff]
        %v458 = vld [vmem:[%s360 + $0xc0] sm:$0xff]
        %v459 = vld [vmem:[%s360 + $0xc8] sm:$0xff]
        %v460 = vld [vmem:[%s360 + $0xd8] sm:$0xff]
        %v461 = vld [vmem:[%s360 + $0xe0] sm:$0xff]
        %v462 = vld [vmem:[%s360 + $0xf0] sm:$0xff]
        %v463 = vld [vmem:[%s360 + $0xf8] sm:$0xff]
        %v464 = vld [vmem:[%s360 + $0x108] sm:$0xff]
        %v465 = vld [vmem:[%s360 + $0x110] sm:$0xff]
        %v466 = vld [vmem:[%s360 + $0x120] sm:$0xff]
        %v467 = vld [vmem:[%s360 + $0x128] sm:$0xff]
        %v468 = vld [vmem:[%s360 + $0x138] sm:$0xff]
        %v469 = vld [vmem:[%s360 + $0x140] sm:$0xff]
        %v470 = vld [vmem:[%s360 + $0x150] sm:$0xff]
        %v471 = vld [vmem:[%s360 + $0x158] sm:$0xff]
        %v472 = vld [vmem:[%s360 + $0x168] sm:$0xff]
        %v473 = vld [vmem:[%s360 + $0x170] sm:$0xff]
        %v474 = vpack.c.bf16 %v443, %v442
        %v475 = vpack.c.bf16 %v445, %v444
        %v476 = vpack.c.bf16 %v447, %v446
        %v477 = vpack.c.bf16 %v449, %v448
        %v478 = vpack.c.bf16 %v451, %v450
        %v479 = vpack.c.bf16 %v453, %v452
        %v480 = vpack.c.bf16 %v455, %v454
        %v481 = vpack.c.bf16 %v457, %v456
        %v482 = vpack.c.bf16 %v459, %v458
        %v483 = vpack.c.bf16 %v461, %v460
        %v484 = vpack.c.bf16 %v463, %v462
        %v485 = vpack.c.bf16 %v465, %v464
        %v486 = vpack.c.bf16 %v467, %v466
        %v487 = vpack.c.bf16 %v469, %v468
        %v488 = vpack.c.bf16 %v471, %v470
        %v489 = vpack.c.bf16 %v473, %v472
        %v490 = vld [vmem:[#allocation5] sm:$0x3]
        %v491 = vld [vmem:[%s360 + $0x1] sm:$0xff]
        %v492 = vld [vmem:[%s360 + $0x9] sm:$0xff]
        %v493 = vld [vmem:[%s360 + $0x19] sm:$0xff]
        %v494 = vld [vmem:[%s360 + $0x21] sm:$0xff]
        %v495 = vld [vmem:[%s360 + $0x31] sm:$0xff]
        %v496 = vld [vmem:[%s360 + $0x39] sm:$0xff]
        %v497 = vld [vmem:[%s360 + $0x49] sm:$0xff]
        %v498 = vld [vmem:[%s360 + $0x51] sm:$0xff]
        %v499 = vld [vmem:[%s360 + $0x61] sm:$0xff]
        %v500 = vld [vmem:[%s360 + $0x69] sm:$0xff]
        %v501 = vld [vmem:[%s360 + $0x79] sm:$0xff]
        %v502 = vld [vmem:[%s360 + $0x81] sm:$0xff]
        %v503 = vld [vmem:[%s360 + $0x91] sm:$0xff]
        %v504 = vld [vmem:[%s360 + $0x99] sm:$0xff]
        %v505 = vld [vmem:[%s360 + $0xa9] sm:$0xff]
        %v506 = vld [vmem:[%s360 + $0xb1] sm:$0xff]
        %v507 = vld [vmem:[%s360 + $0xc1] sm:$0xff]
        %v508 = vld [vmem:[%s360 + $0xc9] sm:$0xff]
        %v509 = vld [vmem:[%s360 + $0xd9] sm:$0xff]
        %v510 = vld [vmem:[%s360 + $0xe1] sm:$0xff]
        %v511 = vld [vmem:[%s360 + $0xf1] sm:$0xff]
        %v512 = vld [vmem:[%s360 + $0xf9] sm:$0xff]
        %v513 = vld [vmem:[%s360 + $0x109] sm:$0xff]
        %v514 = vld [vmem:[%s360 + $0x111] sm:$0xff]
        %v515 = vld [vmem:[%s360 + $0x121] sm:$0xff]
        %v516 = vld [vmem:[%s360 + $0x129] sm:$0xff]
        %v517 = vld [vmem:[%s360 + $0x139] sm:$0xff]
        %v518 = vld [vmem:[%s360 + $0x141] sm:$0xff]
        %v519 = vld [vmem:[%s360 + $0x151] sm:$0xff]
        %v520 = vld [vmem:[%s360 + $0x159] sm:$0xff]
        %v521 = vld [vmem:[%s360 + $0x169] sm:$0xff]
        %v522 = vld [vmem:[%s360 + $0x171] sm:$0xff]
        %v523 = vpack.c.bf16 %v492, %v491
        %v524 = vpack.c.bf16 %v494, %v493
        %v525 = vpack.c.bf16 %v496, %v495
        %v526 = vpack.c.bf16 %v498, %v497
        %v527 = vpack.c.bf16 %v500, %v499
        %v528 = vpack.c.bf16 %v502, %v501
        %v529 = vpack.c.bf16 %v504, %v503
        %v530 = vpack.c.bf16 %v506, %v505
        %v531 = vpack.c.bf16 %v508, %v507
        %v532 = vpack.c.bf16 %v510, %v509
        %v533 = vpack.c.bf16 %v512, %v511
        %v534 = vpack.c.bf16 %v514, %v513
        %v535 = vpack.c.bf16 %v516, %v515
        %v536 = vpack.c.bf16 %v518, %v517
        %v537 = vpack.c.bf16 %v520, %v519
        %v538 = vpack.c.bf16 %v522, %v521
        %s539 = scalar_lea.vmem [#allocation5], 2
        %v540 = vld [vmem:[%s539] sm:$0x3]
        %vm541 = vcmask 31744
        %v543 = vsel %vm541, %v523, 0
        %v546 = vsel %vm541, %v524, 0
        %v549 = vsel %vm541, %v525, 0
        %v552 = vsel %vm541, %v526, 0
        %v555 = vsel %vm541, %v527, 0
        %v558 = vsel %vm541, %v528, 0
        %v561 = vsel %vm541, %v529, 0
        %v564 = vsel %vm541, %v530, 0
        %v567 = vsel %vm541, %v531, 0
        %v570 = vsel %vm541, %v532, 0
        %v573 = vsel %vm541, %v533, 0
        %v576 = vsel %vm541, %v534, 0
        %v579 = vsel %vm541, %v535, 0
        %v582 = vsel %vm541, %v536, 0
        %v585 = vsel %vm541, %v537, 0
        %v588 = vsel %vm541, %v538, 0
        %vm590 = vcmask 1041408
        %v592 = vsel %vm590, %v540, 0
        %594 = vmatprep.subr.bf16.mxu0 0
        %595 = vmatpush1.bf16.msra.mxu0 %v592
        %596 = vmatprep.subr.bf16.mxu0 0
        %597 = vmatpush1.bf16.msra.mxu0 0
        %598 = vmatprep.subr.bf16.mxu0 0
        %599 = vmatpush1.bf16.msra.mxu0 0
        %600 = vmatprep.subr.bf16.mxu0 0
        %601 = vmatpush1.bf16.msra.mxu0 0
        %602 = vmatprep.subr.bf16.mxu0 0
        %603 = vmatpush1.bf16.msra.mxu0 0
        %604 = vmatprep.subr.bf16.mxu0 0
        %605 = vmatpush1.bf16.msra.mxu0 0
        %606 = vmatprep.subr.bf16.mxu0 0
        %607 = vmatpush1.bf16.msra.mxu0 0
        %608 = vmatprep.subr.bf16.mxu0 0
        %609 = vmatpush1.bf16.msra.mxu0 0
        %610 = vmatprep.subr.bf16.mxu0 0
        %611 = vmatpush1.bf16.msra.mxu0 0
        %612 = vmatprep.subr.bf16.mxu0 0
        %613 = vmatpush1.bf16.msra.mxu0 0
        %614 = vmatprep.subr.bf16.mxu0 0
        %615 = vmatpush1.bf16.msra.mxu0 0
        %616 = vmatprep.subr.bf16.mxu0 0
        %617 = vmatpush1.bf16.msra.mxu0 0
        %618 = vmatprep.subr.bf16.mxu0 0
        %619 = vmatpush1.bf16.msra.mxu0 0
        %620 = vmatprep.subr.bf16.mxu0 0
        %621 = vmatpush1.bf16.msra.mxu0 0
        %622 = vmatprep.subr.bf16.mxu0 0
        %623 = vmatpush1.bf16.msra.mxu0 0
        %624 = vmatprep.subr.bf16.mxu0 0
        %625 = vmatpush1.bf16.msra.mxu0 0
        %626 = vmatprep.mubr.bf16.mxu0 0
        %627 = vmatmul.mubr.bf16.gmra.mrb[0].mxu0 %v543
        %v628 = vpop.f32.mrb[0].mxu0
        %v629 = vadd.f32 0.0, %v628
        %v630 = vpop.f32.mrb[0].mxu0
        %v631 = vpop.f32.mrb[0].mxu0
        %v632 = vadd.f32 0.0, %v631
        %v633 = vpop.f32.mrb[0].mxu0
        %634 = vmatprep.mubr.bf16.mxu0 0
        %635 = vmatmul.mubr.bf16.gmra.mrb[0].mxu0 %v546
        %v636 = vpop.f32.mrb[0].mxu0
        %v637 = vadd.f32 0.0, %v636
        %v638 = vpop.f32.mrb[0].mxu0
        %v639 = vpop.f32.mrb[0].mxu0
        %v640 = vadd.f32 0.0, %v639
        %v641 = vpop.f32.mrb[0].mxu0
        %642 = vmatprep.mubr.bf16.mxu0 0
        %643 = vmatmul.mubr.bf16.gmra.mrb[0].mxu0 %v549
        %v644 = vpop.f32.mrb[0].mxu0
        %v645 = vadd.f32 0.0, %v644
        %v646 = vpop.f32.mrb[0].mxu0
        %v647 = vpop.f32.mrb[0].mxu0
        %v648 = vadd.f32 0.0, %v647
        %v649 = vpop.f32.mrb[0].mxu0
        %650 = vmatprep.mubr.bf16.mxu0 0
        %651 = vmatmul.mubr.bf16.gmra.mrb[0].mxu0 %v552
        %v652 = vpop.f32.mrb[0].mxu0
        %v653 = vadd.f32 0.0, %v652
        %v654 = vpop.f32.mrb[0].mxu0
        %v655 = vpop.f32.mrb[0].mxu0
        %v656 = vadd.f32 0.0, %v655
        %v657 = vpop.f32.mrb[0].mxu0
        %658 = vmatprep.mubr.bf16.mxu0 0
        %659 = vmatmul.mubr.bf16.gmra.mrb[0].mxu0 %v555
        %v660 = vpop.f32.mrb[0].mxu0
        %v661 = vadd.f32 0.0, %v660
        %v662 = vpop.f32.mrb[0].mxu0
        %v663 = vpop.f32.mrb[0].mxu0
        %v664 = vadd.f32 0.0, %v663
        %v665 = vpop.f32.mrb[0].mxu0
        %666 = vmatprep.mubr.bf16.mxu0 0
        %667 = vmatmul.mubr.bf16.gmra.mrb[0].mxu0 %v558
        %v668 = vpop.f32.mrb[0].mxu0
        %v669 = vadd.f32 0.0, %v668
        %v670 = vpop.f32.mrb[0].mxu0
        %v671 = vpop.f32.mrb[0].mxu0
        %v672 = vadd.f32 0.0, %v671
        %v673 = vpop.f32.mrb[0].mxu0
        %674 = vmatprep.mubr.bf16.mxu0 0
        %675 = vmatmul.mubr.bf16.gmra.mrb[0].mxu0 %v561
        %v676 = vpop.f32.mrb[0].mxu0
        %v677 = vadd.f32 0.0, %v676
        %v678 = vpop.f32.mrb[0].mxu0
        %v679 = vpop.f32.mrb[0].mxu0
        %v680 = vadd.f32 0.0, %v679
        %v681 = vpop.f32.mrb[0].mxu0
        %682 = vmatprep.mubr.bf16.mxu0 0
        %683 = vmatmul.mubr.bf16.gmra.mrb[0].mxu0 %v564
        %v684 = vpop.f32.mrb[0].mxu0
        %v685 = vadd.f32 0.0, %v684
        %v686 = vpop.f32.mrb[0].mxu0
        %v687 = vpop.f32.mrb[0].mxu0
        %v688 = vadd.f32 0.0, %v687
        %v689 = vpop.f32.mrb[0].mxu0
        %690 = vmatprep.mubr.bf16.mxu0 0
        %691 = vmatmul.mubr.bf16.gmra.mrb[0].mxu0 %v567
        %v692 = vpop.f32.mrb[0].mxu0
        %v693 = vadd.f32 0.0, %v692
        %v694 = vpop.f32.mrb[0].mxu0
        %v695 = vpop.f32.mrb[0].mxu0
        %v696 = vadd.f32 0.0, %v695
        %v697 = vpop.f32.mrb[0].mxu0
        %698 = vmatprep.mubr.bf16.mxu0 0
        %699 = vmatmul.mubr.bf16.gmra.mrb[0].mxu0 %v570
        %v700 = vpop.f32.mrb[0].mxu0
        %v701 = vadd.f32 0.0, %v700
        %v702 = vpop.f32.mrb[0].mxu0
        %v703 = vpop.f32.mrb[0].mxu0
        %v704 = vadd.f32 0.0, %v703
        %v705 = vpop.f32.mrb[0].mxu0
        %706 = vmatprep.mubr.bf16.mxu0 0
        %707 = vmatmul.mubr.bf16.gmra.mrb[0].mxu0 %v573
        %v708 = vpop.f32.mrb[0].mxu0
        %v709 = vadd.f32 0.0, %v708
        %v710 = vpop.f32.mrb[0].mxu0
        %v711 = vpop.f32.mrb[0].mxu0
        %v712 = vadd.f32 0.0, %v711
        %v713 = vpop.f32.mrb[0].mxu0
        %714 = vmatprep.mubr.bf16.mxu0 0
        %715 = vmatmul.mubr.bf16.gmra.mrb[0].mxu0 %v576
        %v716 = vpop.f32.mrb[0].mxu0
        %v717 = vadd.f32 0.0, %v716
        %v718 = vpop.f32.mrb[0].mxu0
        %v719 = vpop.f32.mrb[0].mxu0
        %v720 = vadd.f32 0.0, %v719
        %v721 = vpop.f32.mrb[0].mxu0
        %722 = vmatprep.mubr.bf16.mxu0 0
        %723 = vmatmul.mubr.bf16.gmra.mrb[0].mxu0 %v579
        %v724 = vpop.f32.mrb[0].mxu0
        %v725 = vadd.f32 0.0, %v724
        %v726 = vpop.f32.mrb[0].mxu0
        %v727 = vpop.f32.mrb[0].mxu0
        %v728 = vadd.f32 0.0, %v727
        %v729 = vpop.f32.mrb[0].mxu0
        %730 = vmatprep.mubr.bf16.mxu0 0
        %731 = vmatmul.mubr.bf16.gmra.mrb[0].mxu0 %v582
        %v732 = vpop.f32.mrb[0].mxu0
        %v733 = vadd.f32 0.0, %v732
        %v734 = vpop.f32.mrb[0].mxu0
        %v735 = vpop.f32.mrb[0].mxu0
        %v736 = vadd.f32 0.0, %v735
        %v737 = vpop.f32.mrb[0].mxu0
        %738 = vmatprep.mubr.bf16.mxu0 0
        %739 = vmatmul.mubr.bf16.gmra.mrb[0].mxu0 %v585
        %v740 = vpop.f32.mrb[0].mxu0
        %v741 = vadd.f32 0.0, %v740
        %v742 = vpop.f32.mrb[0].mxu0
        %v743 = vpop.f32.mrb[0].mxu0
        %v744 = vadd.f32 0.0, %v743
        %v745 = vpop.f32.mrb[0].mxu0
        %746 = vmatprep.mubr.bf16.mxu0 0
        %747 = vmatmul.mubr.bf16.gmra.mrb[0].mxu0 %v588
        %v748 = vpop.f32.mrb[0].mxu0
        %v749 = vadd.f32 0.0, %v748
        %v750 = vpop.f32.mrb[0].mxu0
        %v751 = vpop.f32.mrb[0].mxu0
        %v752 = vadd.f32 0.0, %v751
        %v753 = vpop.f32.mrb[0].mxu0
        %754 = vdwg.mxu0
        %v756 = vsel %vm541, %v474, 0
        %v759 = vsel %vm541, %v475, 0
        %v762 = vsel %vm541, %v476, 0
        %v765 = vsel %vm541, %v477, 0
        %v768 = vsel %vm541, %v478, 0
        %v771 = vsel %vm541, %v479, 0
        %v774 = vsel %vm541, %v480, 0
        %v777 = vsel %vm541, %v481, 0
        %v780 = vsel %vm541, %v482, 0
        %v783 = vsel %vm541, %v483, 0
        %v786 = vsel %vm541, %v484, 0
        %v789 = vsel %vm541, %v485, 0
        %v792 = vsel %vm541, %v486, 0
        %v795 = vsel %vm541, %v487, 0
        %v798 = vsel %vm541, %v488, 0
        %v801 = vsel %vm541, %v489, 0
        %v804 = vsel %vm590, %v490, 0
        %806 = vmatprep.subr.bf16.mxu0 0
        %807 = vmatpush1.bf16.msra.mxu0 %v804
        %808 = vmatprep.subr.bf16.mxu0 0
        %809 = vmatpush1.bf16.msra.mxu0 0
        %810 = vmatprep.subr.bf16.mxu0 0
        %811 = vmatpush1.bf16.msra.mxu0 0
        %812 = vmatprep.subr.bf16.mxu0 0
        %813 = vmatpush1.bf16.msra.mxu0 0
        %814 = vmatprep.subr.bf16.mxu0 0
        %815 = vmatpush1.bf16.msra.mxu0 0
        %816 = vmatprep.subr.bf16.mxu0 0
        %817 = vmatpush1.bf16.msra.mxu0 0
        %818 = vmatprep.subr.bf16.mxu0 0
        %819 = vmatpush1.bf16.msra.mxu0 0
        %820 = vmatprep.subr.bf16.mxu0 0
        %821 = vmatpush1.bf16.msra.mxu0 0
        %822 = vmatprep.subr.bf16.mxu0 0
        %823 = vmatpush1.bf16.msra.mxu0 0
        %824 = vmatprep.subr.bf16.mxu0 0
        %825 = vmatpush1.bf16.msra.mxu0 0
        %826 = vmatprep.subr.bf16.mxu0 0
        %827 = vmatpush1.bf16.msra.mxu0 0
        %828 = vmatprep.subr.bf16.mxu0 0
        %829 = vmatpush1.bf16.msra.mxu0 0
        %830 = vmatprep.subr.bf16.mxu0 0
        %831 = vmatpush1.bf16.msra.mxu0 0
        %832 = vmatprep.subr.bf16.mxu0 0
        %833 = vmatpush1.bf16.msra.mxu0 0
        %834 = vmatprep.subr.bf16.mxu0 0
        %835 = vmatpush1.bf16.msra.mxu0 0
        %836 = vmatprep.subr.bf16.mxu0 0
        %837 = vmatpush1.bf16.msra.mxu0 0
        %838 = vmatprep.mubr.bf16.mxu0 0
        %839 = vmatmul.mubr.bf16.gmra.mrb[0].mxu0 %v756
        %v840 = vpop.f32.mrb[0].mxu0
        %v841 = vadd.f32 %v629, %v840
        %v842 = vpop.f32.mrb[0].mxu0
        %v843 = vpop.f32.mrb[0].mxu0
        %v844 = vadd.f32 %v632, %v843
        %v845 = vpop.f32.mrb[0].mxu0
        %846 = vmatprep.mubr.bf16.mxu0 0
        %847 = vmatmul.mubr.bf16.gmra.mrb[0].mxu0 %v759
        %v848 = vpop.f32.mrb[0].mxu0
        %v849 = vadd.f32 %v637, %v848
        %v850 = vpop.f32.mrb[0].mxu0
        %v851 = vpop.f32.mrb[0].mxu0
        %v852 = vadd.f32 %v640, %v851
        %v853 = vpop.f32.mrb[0].mxu0
        %854 = vmatprep.mubr.bf16.mxu0 0
        %855 = vmatmul.mubr.bf16.gmra.mrb[0].mxu0 %v762
        %v856 = vpop.f32.mrb[0].mxu0
        %v857 = vadd.f32 %v645, %v856
        %v858 = vpop.f32.mrb[0].mxu0
        %v859 = vpop.f32.mrb[0].mxu0
        %v860 = vadd.f32 %v648, %v859
        %v861 = vpop.f32.mrb[0].mxu0
        %862 = vmatprep.mubr.bf16.mxu0 0
        %863 = vmatmul.mubr.bf16.gmra.mrb[0].mxu0 %v765
        %v864 = vpop.f32.mrb[0].mxu0
        %v865 = vadd.f32 %v653, %v864
        %v866 = vpop.f32.mrb[0].mxu0
        %v867 = vpop.f32.mrb[0].mxu0
        %v868 = vadd.f32 %v656, %v867
        %v869 = vpop.f32.mrb[0].mxu0
        %870 = vmatprep.mubr.bf16.mxu0 0
        %871 = vmatmul.mubr.bf16.gmra.mrb[0].mxu0 %v768
        %v872 = vpop.f32.mrb[0].mxu0
        %v873 = vadd.f32 %v661, %v872
        %v874 = vpop.f32.mrb[0].mxu0
        %v875 = vpop.f32.mrb[0].mxu0
        %v876 = vadd.f32 %v664, %v875
        %v877 = vpop.f32.mrb[0].mxu0
        %878 = vmatprep.mubr.bf16.mxu0 0
        %879 = vmatmul.mubr.bf16.gmra.mrb[0].mxu0 %v771
        %v880 = vpop.f32.mrb[0].mxu0
        %v881 = vadd.f32 %v669, %v880
        %v882 = vpop.f32.mrb[0].mxu0
        %v883 = vpop.f32.mrb[0].mxu0
        %v884 = vadd.f32 %v672, %v883
        %v885 = vpop.f32.mrb[0].mxu0
        %886 = vmatprep.mubr.bf16.mxu0 0
        %887 = vmatmul.mubr.bf16.gmra.mrb[0].mxu0 %v774
        %v888 = vpop.f32.mrb[0].mxu0
        %v889 = vadd.f32 %v677, %v888
        %v890 = vpop.f32.mrb[0].mxu0
        %v891 = vpop.f32.mrb[0].mxu0
        %v892 = vadd.f32 %v680, %v891
        %v893 = vpop.f32.mrb[0].mxu0
        %894 = vmatprep.mubr.bf16.mxu0 0
        %895 = vmatmul.mubr.bf16.gmra.mrb[0].mxu0 %v777
        %v896 = vpop.f32.mrb[0].mxu0
        %v897 = vadd.f32 %v685, %v896
        %v898 = vpop.f32.mrb[0].mxu0
        %v899 = vpop.f32.mrb[0].mxu0
        %v900 = vadd.f32 %v688, %v899
        %v901 = vpop.f32.mrb[0].mxu0
        %902 = vmatprep.mubr.bf16.mxu0 0
        %903 = vmatmul.mubr.bf16.gmra.mrb[0].mxu0 %v780
        %v904 = vpop.f32.mrb[0].mxu0
        %v905 = vadd.f32 %v693, %v904
        %v906 = vpop.f32.mrb[0].mxu0
        %v907 = vpop.f32.mrb[0].mxu0
        %v908 = vadd.f32 %v696, %v907
        %v909 = vpop.f32.mrb[0].mxu0
        %910 = vmatprep.mubr.bf16.mxu0 0
        %911 = vmatmul.mubr.bf16.gmra.mrb[0].mxu0 %v783
        %v912 = vpop.f32.mrb[0].mxu0
        %v913 = vadd.f32 %v701, %v912
        %v914 = vpop.f32.mrb[0].mxu0
        %v915 = vpop.f32.mrb[0].mxu0
        %v916 = vadd.f32 %v704, %v915
        %v917 = vpop.f32.mrb[0].mxu0
        %918 = vmatprep.mubr.bf16.mxu0 0
        %919 = vmatmul.mubr.bf16.gmra.mrb[0].mxu0 %v786
        %v920 = vpop.f32.mrb[0].mxu0
        %v921 = vadd.f32 %v709, %v920
        %v922 = vpop.f32.mrb[0].mxu0
        %v923 = vpop.f32.mrb[0].mxu0
        %v924 = vadd.f32 %v712, %v923
        %v925 = vpop.f32.mrb[0].mxu0
        %926 = vmatprep.mubr.bf16.mxu0 0
        %927 = vmatmul.mubr.bf16.gmra.mrb[0].mxu0 %v789
        %v928 = vpop.f32.mrb[0].mxu0
        %v929 = vadd.f32 %v717, %v928
        %v930 = vpop.f32.mrb[0].mxu0
        %v931 = vpop.f32.mrb[0].mxu0
        %v932 = vadd.f32 %v720, %v931
        %v933 = vpop.f32.mrb[0].mxu0
        %934 = vmatprep.mubr.bf16.mxu0 0
        %935 = vmatmul.mubr.bf16.gmra.mrb[0].mxu0 %v792
        %v936 = vpop.f32.mrb[0].mxu0
        %v937 = vadd.f32 %v725, %v936
        %v938 = vpop.f32.mrb[0].mxu0
        %v939 = vpop.f32.mrb[0].mxu0
        %v940 = vadd.f32 %v728, %v939
        %v941 = vpop.f32.mrb[0].mxu0
        %942 = vmatprep.mubr.bf16.mxu0 0
        %943 = vmatmul.mubr.bf16.gmra.mrb[0].mxu0 %v795
        %v944 = vpop.f32.mrb[0].mxu0
        %v945 = vadd.f32 %v733, %v944
        %v946 = vpop.f32.mrb[0].mxu0
        %v947 = vpop.f32.mrb[0].mxu0
        %v948 = vadd.f32 %v736, %v947
        %v949 = vpop.f32.mrb[0].mxu0
        %950 = vmatprep.mubr.bf16.mxu0 0
        %951 = vmatmul.mubr.bf16.gmra.mrb[0].mxu0 %v798
        %v952 = vpop.f32.mrb[0].mxu0
        %v953 = vadd.f32 %v741, %v952
        %v954 = vpop.f32.mrb[0].mxu0
        %v955 = vpop.f32.mrb[0].mxu0
        %v956 = vadd.f32 %v744, %v955
        %v957 = vpop.f32.mrb[0].mxu0
        %958 = vmatprep.mubr.bf16.mxu0 0
        %959 = vmatmul.mubr.bf16.gmra.mrb[0].mxu0 %v801
        %v960 = vpop.f32.mrb[0].mxu0
        %v961 = vadd.f32 %v749, %v960
        %v962 = vpop.f32.mrb[0].mxu0
        %v963 = vpop.f32.mrb[0].mxu0
        %v964 = vadd.f32 %v752, %v963
        %v965 = vpop.f32.mrb[0].mxu0
        %966 = vdwg.mxu0
        %v967 = vld [vmem:[%s360 + $0x2] sm:$0xff]
        %v968 = vld [vmem:[%s360 + $0xa] sm:$0xff]
        %v969 = vld [vmem:[%s360 + $0x1a] sm:$0xff]
        %v970 = vld [vmem:[%s360 + $0x22] sm:$0xff]
        %v971 = vld [vmem:[%s360 + $0x32] sm:$0xff]
        %v972 = vld [vmem:[%s360 + $0x3a] sm:$0xff]
        %v973 = vld [vmem:[%s360 + $0x4a] sm:$0xff]
        %v974 = vld [vmem:[%s360 + $0x52] sm:$0xff]
        %v975 = vld [vmem:[%s360 + $0x62] sm:$0xff]
        %v976 = vld [vmem:[%s360 + $0x6a] sm:$0xff]
        %v977 = vld [vmem:[%s360 + $0x7a] sm:$0xff]
        %v978 = vld [vmem:[%s360 + $0x82] sm:$0xff]
        %v979 = vld [vmem:[%s360 + $0x92] sm:$0xff]
        %v980 = vld [vmem:[%s360 + $0x9a] sm:$0xff]
        %v981 = vld [vmem:[%s360 + $0xaa] sm:$0xff]
        %v982 = vld [vmem:[%s360 + $0xb2] sm:$0xff]
        %v983 = vld [vmem:[%s360 + $0xc2] sm:$0xff]
        %v984 = vld [vmem:[%s360 + $0xca] sm:$0xff]
        %v985 = vld [vmem:[%s360 + $0xda] sm:$0xff]
        %v986 = vld [vmem:[%s360 + $0xe2] sm:$0xff]
        %v987 = vld [vmem:[%s360 + $0xf2] sm:$0xff]
        %v988 = vld [vmem:[%s360 + $0xfa] sm:$0xff]
        %v989 = vld [vmem:[%s360 + $0x10a] sm:$0xff]
        %v990 = vld [vmem:[%s360 + $0x112] sm:$0xff]
        %v991 = vld [vmem:[%s360 + $0x122] sm:$0xff]
        %v992 = vld [vmem:[%s360 + $0x12a] sm:$0xff]
        %v993 = vld [vmem:[%s360 + $0x13a] sm:$0xff]
        %v994 = vld [vmem:[%s360 + $0x142] sm:$0xff]
        %v995 = vld [vmem:[%s360 + $0x152] sm:$0xff]
        %v996 = vld [vmem:[%s360 + $0x15a] sm:$0xff]
        %v997 = vld [vmem:[%s360 + $0x16a] sm:$0xff]
        %v998 = vld [vmem:[%s360 + $0x172] sm:$0xff]
        %v999 = vpack.c.bf16 %v968, %v967
        %v1000 = vpack.c.bf16 %v970, %v969
        %v1001 = vpack.c.bf16 %v972, %v971
        %v1002 = vpack.c.bf16 %v974, %v973
        %v1003 = vpack.c.bf16 %v976, %v975
        %v1004 = vpack.c.bf16 %v978, %v977
        %v1005 = vpack.c.bf16 %v980, %v979
        %v1006 = vpack.c.bf16 %v982, %v981
        %v1007 = vpack.c.bf16 %v984, %v983
        %v1008 = vpack.c.bf16 %v986, %v985
        %v1009 = vpack.c.bf16 %v988, %v987
        %v1010 = vpack.c.bf16 %v990, %v989
        %v1011 = vpack.c.bf16 %v992, %v991
        %v1012 = vpack.c.bf16 %v994, %v993
        %v1013 = vpack.c.bf16 %v996, %v995
        %v1014 = vpack.c.bf16 %v998, %v997
        %s1015 = scalar_lea.vmem [#allocation5], 4
        %v1016 = vld [vmem:[%s1015] sm:$0x3]
        %v1018 = vsel %vm541, %v999, 0
        %v1021 = vsel %vm541, %v1000, 0
        %v1024 = vsel %vm541, %v1001, 0
        %v1027 = vsel %vm541, %v1002, 0
        %v1030 = vsel %vm541, %v1003, 0
        %v1033 = vsel %vm541, %v1004, 0
        %v1036 = vsel %vm541, %v1005, 0
        %v1039 = vsel %vm541, %v1006, 0
        %v1042 = vsel %vm541, %v1007, 0
        %v1045 = vsel %vm541, %v1008, 0
        %v1048 = vsel %vm541, %v1009, 0
        %v1051 = vsel %vm541, %v1010, 0
        %v1054 = vsel %vm541, %v1011, 0
        %v1057 = vsel %vm541, %v1012, 0
        %v1060 = vsel %vm541, %v1013, 0
        %v1063 = vsel %vm541, %v1014, 0
        %v1066 = vsel %vm590, %v1016, 0
        %1068 = vmatprep.subr.bf16.mxu0 0
        %1069 = vmatpush1.bf16.msra.mxu0 %v1066
        %1070 = vmatprep.subr.bf16.mxu0 0
        %1071 = vmatpush1.bf16.msra.mxu0 0
        %1072 = vmatprep.subr.bf16.mxu0 0
        %1073 = vmatpush1.bf16.msra.mxu0 0
        %1074 = vmatprep.subr.bf16.mxu0 0
        %1075 = vmatpush1.bf16.msra.mxu0 0
        %1076 = vmatprep.subr.bf16.mxu0 0
        %1077 = vmatpush1.bf16.msra.mxu0 0
        %1078 = vmatprep.subr.bf16.mxu0 0
        %1079 = vmatpush1.bf16.msra.mxu0 0
        %1080 = vmatprep.subr.bf16.mxu0 0
        %1081 = vmatpush1.bf16.msra.mxu0 0
        %1082 = vmatprep.subr.bf16.mxu0 0
        %1083 = vmatpush1.bf16.msra.mxu0 0
        %1084 = vmatprep.subr.bf16.mxu0 0
        %1085 = vmatpush1.bf16.msra.mxu0 0
        %1086 = vmatprep.subr.bf16.mxu0 0
        %1087 = vmatpush1.bf16.msra.mxu0 0
        %1088 = vmatprep.subr.bf16.mxu0 0
        %1089 = vmatpush1.bf16.msra.mxu0 0
        %1090 = vmatprep.subr.bf16.mxu0 0
        %1091 = vmatpush1.bf16.msra.mxu0 0
        %1092 = vmatprep.subr.bf16.mxu0 0
        %1093 = vmatpush1.bf16.msra.mxu0 0
        %1094 = vmatprep.subr.bf16.mxu0 0
        %1095 = vmatpush1.bf16.msra.mxu0 0
        %1096 = vmatprep.subr.bf16.mxu0 0
        %1097 = vmatpush1.bf16.msra.mxu0 0
        %1098 = vmatprep.subr.bf16.mxu0 0
        %1099 = vmatpush1.bf16.msra.mxu0 0
        %1100 = vmatprep.mubr.bf16.mxu0 0
        %1101 = vmatmul.mubr.bf16.gmra.mrb[0].mxu0 %v1018
        %v1102 = vpop.f32.mrb[0].mxu0
        %v1103 = vadd.f32 0.0, %v1102
        %v1104 = vpop.f32.mrb[0].mxu0
        %v1105 = vpop.f32.mrb[0].mxu0
        %v1106 = vadd.f32 0.0, %v1105
        %v1107 = vpop.f32.mrb[0].mxu0
        %1108 = vmatprep.mubr.bf16.mxu0 0
        %1109 = vmatmul.mubr.bf16.gmra.mrb[0].mxu0 %v1021
        %v1110 = vpop.f32.mrb[0].mxu0
        %v1111 = vadd.f32 0.0, %v1110
        %v1112 = vpop.f32.mrb[0].mxu0
        %v1113 = vpop.f32.mrb[0].mxu0
        %v1114 = vadd.f32 0.0, %v1113
        %v1115 = vpop.f32.mrb[0].mxu0
        %1116 = vmatprep.mubr.bf16.mxu0 0
        %1117 = vmatmul.mubr.bf16.gmra.mrb[0].mxu0 %v1024
        %v1118 = vpop.f32.mrb[0].mxu0
        %v1119 = vadd.f32 0.0, %v1118
        %v1120 = vpop.f32.mrb[0].mxu0
        %v1121 = vpop.f32.mrb[0].mxu0
        %v1122 = vadd.f32 0.0, %v1121
        %v1123 = vpop.f32.mrb[0].mxu0
        %1124 = vmatprep.mubr.bf16.mxu0 0
        %1125 = vmatmul.mubr.bf16.gmra.mrb[0].mxu0 %v1027
        %v1126 = vpop.f32.mrb[0].mxu0
        %v1127 = vadd.f32 0.0, %v1126
        %v1128 = vpop.f32.mrb[0].mxu0
        %v1129 = vpop.f32.mrb[0].mxu0
        %v1130 = vadd.f32 0.0, %v1129
        %v1131 = vpop.f32.mrb[0].mxu0
        %1132 = vmatprep.mubr.bf16.mxu0 0
        %1133 = vmatmul.mubr.bf16.gmra.mrb[0].mxu0 %v1030
        %v1134 = vpop.f32.mrb[0].mxu0
        %v1135 = vadd.f32 0.0, %v1134
        %v1136 = vpop.f32.mrb[0].mxu0
        %v1137 = vpop.f32.mrb[0].mxu0
        %v1138 = vadd.f32 0.0, %v1137
        %v1139 = vpop.f32.mrb[0].mxu0
        %1140 = vmatprep.mubr.bf16.mxu0 0
        %1141 = vmatmul.mubr.bf16.gmra.mrb[0].mxu0 %v1033
        %v1142 = vpop.f32.mrb[0].mxu0
        %v1143 = vadd.f32 0.0, %v1142
        %v1144 = vpop.f32.mrb[0].mxu0
        %v1145 = vpop.f32.mrb[0].mxu0
        %v1146 = vadd.f32 0.0, %v1145
        %v1147 = vpop.f32.mrb[0].mxu0
        %1148 = vmatprep.mubr.bf16.mxu0 0
        %1149 = vmatmul.mubr.bf16.gmra.mrb[0].mxu0 %v1036
        %v1150 = vpop.f32.mrb[0].mxu0
        %v1151 = vadd.f32 0.0, %v1150
        %v1152 = vpop.f32.mrb[0].mxu0
        %v1153 = vpop.f32.mrb[0].mxu0
        %v1154 = vadd.f32 0.0, %v1153
        %v1155 = vpop.f32.mrb[0].mxu0
        %1156 = vmatprep.mubr.bf16.mxu0 0
        %1157 = vmatmul.mubr.bf16.gmra.mrb[0].mxu0 %v1039
        %v1158 = vpop.f32.mrb[0].mxu0
        %v1159 = vadd.f32 0.0, %v1158
        %v1160 = vpop.f32.mrb[0].mxu0
        %v1161 = vpop.f32.mrb[0].mxu0
        %v1162 = vadd.f32 0.0, %v1161
        %v1163 = vpop.f32.mrb[0].mxu0
        %1164 = vmatprep.mubr.bf16.mxu0 0
        %1165 = vmatmul.mubr.bf16.gmra.mrb[0].mxu0 %v1042
        %v1166 = vpop.f32.mrb[0].mxu0
        %v1167 = vadd.f32 0.0, %v1166
        %v1168 = vpop.f32.mrb[0].mxu0
        %v1169 = vpop.f32.mrb[0].mxu0
        %v1170 = vadd.f32 0.0, %v1169
        %v1171 = vpop.f32.mrb[0].mxu0
        %1172 = vmatprep.mubr.bf16.mxu0 0
        %1173 = vmatmul.mubr.bf16.gmra.mrb[0].mxu0 %v1045
        %v1174 = vpop.f32.mrb[0].mxu0
        %v1175 = vadd.f32 0.0, %v1174
        %v1176 = vpop.f32.mrb[0].mxu0
        %v1177 = vpop.f32.mrb[0].mxu0
        %v1178 = vadd.f32 0.0, %v1177
        %v1179 = vpop.f32.mrb[0].mxu0
        %1180 = vmatprep.mubr.bf16.mxu0 0
        %1181 = vmatmul.mubr.bf16.gmra.mrb[0].mxu0 %v1048
        %v1182 = vpop.f32.mrb[0].mxu0
        %v1183 = vadd.f32 0.0, %v1182
        %v1184 = vpop.f32.mrb[0].mxu0
        %v1185 = vpop.f32.mrb[0].mxu0
        %v1186 = vadd.f32 0.0, %v1185
        %v1187 = vpop.f32.mrb[0].mxu0
        %1188 = vmatprep.mubr.bf16.mxu0 0
        %1189 = vmatmul.mubr.bf16.gmra.mrb[0].mxu0 %v1051
        %v1190 = vpop.f32.mrb[0].mxu0
        %v1191 = vadd.f32 0.0, %v1190
        %v1192 = vpop.f32.mrb[0].mxu0
        %v1193 = vpop.f32.mrb[0].mxu0
        %v1194 = vadd.f32 0.0, %v1193
        %v1195 = vpop.f32.mrb[0].mxu0
        %1196 = vmatprep.mubr.bf16.mxu0 0
        %1197 = vmatmul.mubr.bf16.gmra.mrb[0].mxu0 %v1054
        %v1198 = vpop.f32.mrb[0].mxu0
        %v1199 = vadd.f32 0.0, %v1198
        %v1200 = vpop.f32.mrb[0].mxu0
        %v1201 = vpop.f32.mrb[0].mxu0
        %v1202 = vadd.f32 0.0, %v1201
        %v1203 = vpop.f32.mrb[0].mxu0
        %1204 = vmatprep.mubr.bf16.mxu0 0
        %1205 = vmatmul.mubr.bf16.gmra.mrb[0].mxu0 %v1057
        %v1206 = vpop.f32.mrb[0].mxu0
        %v1207 = vadd.f32 0.0, %v1206
        %v1208 = vpop.f32.mrb[0].mxu0
        %v1209 = vpop.f32.mrb[0].mxu0
        %v1210 = vadd.f32 0.0, %v1209
        %v1211 = vpop.f32.mrb[0].mxu0
        %1212 = vmatprep.mubr.bf16.mxu0 0
        %1213 = vmatmul.mubr.bf16.gmra.mrb[0].mxu0 %v1060
        %v1214 = vpop.f32.mrb[0].mxu0
        %v1215 = vadd.f32 0.0, %v1214
        %v1216 = vpop.f32.mrb[0].mxu0
        %v1217 = vpop.f32.mrb[0].mxu0
        %v1218 = vadd.f32 0.0, %v1217
        %v1219 = vpop.f32.mrb[0].mxu0
        %1220 = vmatprep.mubr.bf16.mxu0 0
        %1221 = vmatmul.mubr.bf16.gmra.mrb[0].mxu0 %v1063
        %v1222 = vpop.f32.mrb[0].mxu0
        %v1223 = vadd.f32 0.0, %v1222
        %v1224 = vpop.f32.mrb[0].mxu0
        %v1225 = vpop.f32.mrb[0].mxu0
        %v1226 = vadd.f32 0.0, %v1225
        %v1227 = vpop.f32.mrb[0].mxu0
        %1228 = vdwg.mxu0
        %v1229 = vadd.f32 %v841, %v1103
        %v1230 = vadd.f32 %v844, %v1106
        %v1231 = vadd.f32 %v849, %v1111
        %v1232 = vadd.f32 %v852, %v1114
        %v1233 = vadd.f32 %v857, %v1119
        %v1234 = vadd.f32 %v860, %v1122
        %v1235 = vadd.f32 %v865, %v1127
        %v1236 = vadd.f32 %v868, %v1130
        %v1237 = vadd.f32 %v873, %v1135
        %v1238 = vadd.f32 %v876, %v1138
        %v1239 = vadd.f32 %v881, %v1143
        %v1240 = vadd.f32 %v884, %v1146
        %v1241 = vadd.f32 %v889, %v1151
        %v1242 = vadd.f32 %v892, %v1154
        %v1243 = vadd.f32 %v897, %v1159
        %v1244 = vadd.f32 %v900, %v1162
        %v1245 = vadd.f32 %v905, %v1167
        %v1246 = vadd.f32 %v908, %v1170
        %v1247 = vadd.f32 %v913, %v1175
        %v1248 = vadd.f32 %v916, %v1178
        %v1249 = vadd.f32 %v921, %v1183
        %v1250 = vadd.f32 %v924, %v1186
        %v1251 = vadd.f32 %v929, %v1191
        %v1252 = vadd.f32 %v932, %v1194
        %v1253 = vadd.f32 %v937, %v1199
        %v1254 = vadd.f32 %v940, %v1202
        %v1255 = vadd.f32 %v945, %v1207
        %v1256 = vadd.f32 %v948, %v1210
        %v1257 = vadd.f32 %v953, %v1215
        %v1258 = vadd.f32 %v956, %v1218
        %v1259 = vadd.f32 %v961, %v1223
        %v1260 = vadd.f32 %v964, %v1226
        %s1261 = scalar_lea.vmem %s360, 24 [#allocation2]
        %v1262 = vld [vmem:[%s1261] sm:$0xff]
        %v1263 = vld [vmem:[%s1261 + $0x8] sm:$0xff]
        %v1264 = vld [vmem:[%s1261 + $0x18] sm:$0xff]
        %v1265 = vld [vmem:[%s1261 + $0x20] sm:$0xff]
        %v1266 = vld [vmem:[%s1261 + $0x30] sm:$0xff]
        %v1267 = vld [vmem:[%s1261 + $0x38] sm:$0xff]
        %v1268 = vld [vmem:[%s1261 + $0x48] sm:$0xff]
        %v1269 = vld [vmem:[%s1261 + $0x50] sm:$0xff]
        %v1270 = vld [vmem:[%s1261 + $0x60] sm:$0xff]
        %v1271 = vld [vmem:[%s1261 + $0x68] sm:$0xff]
        %v1272 = vld [vmem:[%s1261 + $0x78] sm:$0xff]
        %v1273 = vld [vmem:[%s1261 + $0x80] sm:$0xff]
        %v1274 = vld [vmem:[%s1261 + $0x90] sm:$0xff]
        %v1275 = vld [vmem:[%s1261 + $0x98] sm:$0xff]
        %v1276 = vld [vmem:[%s1261 + $0xa8] sm:$0xff]
        %v1277 = vld [vmem:[%s1261 + $0xb0] sm:$0xff]
        %v1278 = vld [vmem:[%s1261 + $0xc0] sm:$0xff]
        %v1279 = vld [vmem:[%s1261 + $0xc8] sm:$0xff]
        %v1280 = vld [vmem:[%s1261 + $0xd8] sm:$0xff]
        %v1281 = vld [vmem:[%s1261 + $0xe0] sm:$0xff]
        %v1282 = vld [vmem:[%s1261 + $0xf0] sm:$0xff]
        %v1283 = vld [vmem:[%s1261 + $0xf8] sm:$0xff]
        %v1284 = vld [vmem:[%s1261 + $0x108] sm:$0xff]
        %v1285 = vld [vmem:[%s1261 + $0x110] sm:$0xff]
        %v1286 = vld [vmem:[%s1261 + $0x120] sm:$0xff]
        %v1287 = vld [vmem:[%s1261 + $0x128] sm:$0xff]
        %v1288 = vld [vmem:[%s1261 + $0x138] sm:$0xff]
        %v1289 = vld [vmem:[%s1261 + $0x140] sm:$0xff]
        %v1290 = vld [vmem:[%s1261 + $0x150] sm:$0xff]
        %v1291 = vld [vmem:[%s1261 + $0x158] sm:$0xff]
        %v1292 = vld [vmem:[%s1261 + $0x168] sm:$0xff]
        %v1293 = vld [vmem:[%s1261 + $0x170] sm:$0xff]
        %v1294 = vpack.c.bf16 %v1263, %v1262
        %v1295 = vpack.c.bf16 %v1265, %v1264
        %v1296 = vpack.c.bf16 %v1267, %v1266
        %v1297 = vpack.c.bf16 %v1269, %v1268
        %v1298 = vpack.c.bf16 %v1271, %v1270
        %v1299 = vpack.c.bf16 %v1273, %v1272
        %v1300 = vpack.c.bf16 %v1275, %v1274
        %v1301 = vpack.c.bf16 %v1277, %v1276
        %v1302 = vpack.c.bf16 %v1279, %v1278
        %v1303 = vpack.c.bf16 %v1281, %v1280
        %v1304 = vpack.c.bf16 %v1283, %v1282
        %v1305 = vpack.c.bf16 %v1285, %v1284
        %v1306 = vpack.c.bf16 %v1287, %v1286
        %v1307 = vpack.c.bf16 %v1289, %v1288
        %v1308 = vpack.c.bf16 %v1291, %v1290
        %v1309 = vpack.c.bf16 %v1293, %v1292
        %s1310 = scalar_lea.vmem [#allocation5], 6
        %v1311 = vld [vmem:[%s1310] sm:$0x3]
        %v1313 = vsel %vm541, %v1294, 0
        %v1316 = vsel %vm541, %v1295, 0
        %v1319 = vsel %vm541, %v1296, 0
        %v1322 = vsel %vm541, %v1297, 0
        %v1325 = vsel %vm541, %v1298, 0
        %v1328 = vsel %vm541, %v1299, 0
        %v1331 = vsel %vm541, %v1300, 0
        %v1334 = vsel %vm541, %v1301, 0
        %v1337 = vsel %vm541, %v1302, 0
        %v1340 = vsel %vm541, %v1303, 0
        %v1343 = vsel %vm541, %v1304, 0
        %v1346 = vsel %vm541, %v1305, 0
        %v1349 = vsel %vm541, %v1306, 0
        %v1352 = vsel %vm541, %v1307, 0
        %v1355 = vsel %vm541, %v1308, 0
        %v1358 = vsel %vm541, %v1309, 0
        %v1361 = vsel %vm590, %v1311, 0
        %1363 = vmatprep.subr.bf16.mxu0 0
        %1364 = vmatpush1.bf16.msra.mxu0 %v1361
        %1365 = vmatprep.subr.bf16.mxu0 0
        %1366 = vmatpush1.bf16.msra.mxu0 0
        %1367 = vmatprep.subr.bf16.mxu0 0
        %1368 = vmatpush1.bf16.msra.mxu0 0
        %1369 = vmatprep.subr.bf16.mxu0 0
        %1370 = vmatpush1.bf16.msra.mxu0 0
        %1371 = vmatprep.subr.bf16.mxu0 0
        %1372 = vmatpush1.bf16.msra.mxu0 0
        %1373 = vmatprep.subr.bf16.mxu0 0
        %1374 = vmatpush1.bf16.msra.mxu0 0
        %1375 = vmatprep.subr.bf16.mxu0 0
        %1376 = vmatpush1.bf16.msra.mxu0 0
        %1377 = vmatprep.subr.bf16.mxu0 0
        %1378 = vmatpush1.bf16.msra.mxu0 0
        %1379 = vmatprep.subr.bf16.mxu0 0
        %1380 = vmatpush1.bf16.msra.mxu0 0
        %1381 = vmatprep.subr.bf16.mxu0 0
        %1382 = vmatpush1.bf16.msra.mxu0 0
        %1383 = vmatprep.subr.bf16.mxu0 0
        %1384 = vmatpush1.bf16.msra.mxu0 0
        %1385 = vmatprep.subr.bf16.mxu0 0
        %1386 = vmatpush1.bf16.msra.mxu0 0
        %1387 = vmatprep.subr.bf16.mxu0 0
        %1388 = vmatpush1.bf16.msra.mxu0 0
        %1389 = vmatprep.subr.bf16.mxu0 0
        %1390 = vmatpush1.bf16.msra.mxu0 0
        %1391 = vmatprep.subr.bf16.mxu0 0
        %1392 = vmatpush1.bf16.msra.mxu0 0
        %1393 = vmatprep.subr.bf16.mxu0 0
        %1394 = vmatpush1.bf16.msra.mxu0 0
        %1395 = vmatprep.mubr.bf16.mxu0 0
        %1396 = vmatmul.mubr.bf16.gmra.mrb[0].mxu0 %v1313
        %v1397 = vpop.f32.mrb[0].mxu0
        %v1398 = vadd.f32 0.0, %v1397
        %v1399 = vpop.f32.mrb[0].mxu0
        %v1400 = vpop.f32.mrb[0].mxu0
        %v1401 = vadd.f32 0.0, %v1400
        %v1402 = vpop.f32.mrb[0].mxu0
        %1403 = vmatprep.mubr.bf16.mxu0 0
        %1404 = vmatmul.mubr.bf16.gmra.mrb[0].mxu0 %v1316
        %v1405 = vpop.f32.mrb[0].mxu0
        %v1406 = vadd.f32 0.0, %v1405
        %v1407 = vpop.f32.mrb[0].mxu0
        %v1408 = vpop.f32.mrb[0].mxu0
        %v1409 = vadd.f32 0.0, %v1408
        %v1410 = vpop.f32.mrb[0].mxu0
        %1411 = vmatprep.mubr.bf16.mxu0 0
        %1412 = vmatmul.mubr.bf16.gmra.mrb[0].mxu0 %v1319
        %v1413 = vpop.f32.mrb[0].mxu0
        %v1414 = vadd.f32 0.0, %v1413
        %v1415 = vpop.f32.mrb[0].mxu0
        %v1416 = vpop.f32.mrb[0].mxu0
        %v1417 = vadd.f32 0.0, %v1416
        %v1418 = vpop.f32.mrb[0].mxu0
        %1419 = vmatprep.mubr.bf16.mxu0 0
        %1420 = vmatmul.mubr.bf16.gmra.mrb[0].mxu0 %v1322
        %v1421 = vpop.f32.mrb[0].mxu0
        %v1422 = vadd.f32 0.0, %v1421
        %v1423 = vpop.f32.mrb[0].mxu0
        %v1424 = vpop.f32.mrb[0].mxu0
        %v1425 = vadd.f32 0.0, %v1424
        %v1426 = vpop.f32.mrb[0].mxu0
        %1427 = vmatprep.mubr.bf16.mxu0 0
        %1428 = vmatmul.mubr.bf16.gmra.mrb[0].mxu0 %v1325
        %v1429 = vpop.f32.mrb[0].mxu0
        %v1430 = vadd.f32 0.0, %v1429
        %v1431 = vpop.f32.mrb[0].mxu0
        %v1432 = vpop.f32.mrb[0].mxu0
        %v1433 = vadd.f32 0.0, %v1432
        %v1434 = vpop.f32.mrb[0].mxu0
        %1435 = vmatprep.mubr.bf16.mxu0 0
        %1436 = vmatmul.mubr.bf16.gmra.mrb[0].mxu0 %v1328
        %v1437 = vpop.f32.mrb[0].mxu0
        %v1438 = vadd.f32 0.0, %v1437
        %v1439 = vpop.f32.mrb[0].mxu0
        %v1440 = vpop.f32.mrb[0].mxu0
        %v1441 = vadd.f32 0.0, %v1440
        %v1442 = vpop.f32.mrb[0].mxu0
        %1443 = vmatprep.mubr.bf16.mxu0 0
        %1444 = vmatmul.mubr.bf16.gmra.mrb[0].mxu0 %v1331
        %v1445 = vpop.f32.mrb[0].mxu0
        %v1446 = vadd.f32 0.0, %v1445
        %v1447 = vpop.f32.mrb[0].mxu0
        %v1448 = vpop.f32.mrb[0].mxu0
        %v1449 = vadd.f32 0.0, %v1448
        %v1450 = vpop.f32.mrb[0].mxu0
        %1451 = vmatprep.mubr.bf16.mxu0 0
        %1452 = vmatmul.mubr.bf16.gmra.mrb[0].mxu0 %v1334
        %v1453 = vpop.f32.mrb[0].mxu0
        %v1454 = vadd.f32 0.0, %v1453
        %v1455 = vpop.f32.mrb[0].mxu0
        %v1456 = vpop.f32.mrb[0].mxu0
        %v1457 = vadd.f32 0.0, %v1456
        %v1458 = vpop.f32.mrb[0].mxu0
        %1459 = vmatprep.mubr.bf16.mxu0 0
        %1460 = vmatmul.mubr.bf16.gmra.mrb[0].mxu0 %v1337
        %v1461 = vpop.f32.mrb[0].mxu0
        %v1462 = vadd.f32 0.0, %v1461
        %v1463 = vpop.f32.mrb[0].mxu0
        %v1464 = vpop.f32.mrb[0].mxu0
        %v1465 = vadd.f32 0.0, %v1464
        %v1466 = vpop.f32.mrb[0].mxu0
        %1467 = vmatprep.mubr.bf16.mxu0 0
        %1468 = vmatmul.mubr.bf16.gmra.mrb[0].mxu0 %v1340
        %v1469 = vpop.f32.mrb[0].mxu0
        %v1470 = vadd.f32 0.0, %v1469
        %v1471 = vpop.f32.mrb[0].mxu0
        %v1472 = vpop.f32.mrb[0].mxu0
        %v1473 = vadd.f32 0.0, %v1472
        %v1474 = vpop.f32.mrb[0].mxu0
        %1475 = vmatprep.mubr.bf16.mxu0 0
        %1476 = vmatmul.mubr.bf16.gmra.mrb[0].mxu0 %v1343
        %v1477 = vpop.f32.mrb[0].mxu0
        %v1478 = vadd.f32 0.0, %v1477
        %v1479 = vpop.f32.mrb[0].mxu0
        %v1480 = vpop.f32.mrb[0].mxu0
        %v1481 = vadd.f32 0.0, %v1480
        %v1482 = vpop.f32.mrb[0].mxu0
        %1483 = vmatprep.mubr.bf16.mxu0 0
        %1484 = vmatmul.mubr.bf16.gmra.mrb[0].mxu0 %v1346
        %v1485 = vpop.f32.mrb[0].mxu0
        %v1486 = vadd.f32 0.0, %v1485
        %v1487 = vpop.f32.mrb[0].mxu0
        %v1488 = vpop.f32.mrb[0].mxu0
        %v1489 = vadd.f32 0.0, %v1488
        %v1490 = vpop.f32.mrb[0].mxu0
        %1491 = vmatprep.mubr.bf16.mxu0 0
        %1492 = vmatmul.mubr.bf16.gmra.mrb[0].mxu0 %v1349
        %v1493 = vpop.f32.mrb[0].mxu0
        %v1494 = vadd.f32 0.0, %v1493
        %v1495 = vpop.f32.mrb[0].mxu0
        %v1496 = vpop.f32.mrb[0].mxu0
        %v1497 = vadd.f32 0.0, %v1496
        %v1498 = vpop.f32.mrb[0].mxu0
        %1499 = vmatprep.mubr.bf16.mxu0 0
        %1500 = vmatmul.mubr.bf16.gmra.mrb[0].mxu0 %v1352
        %v1501 = vpop.f32.mrb[0].mxu0
        %v1502 = vadd.f32 0.0, %v1501
        %v1503 = vpop.f32.mrb[0].mxu0
        %v1504 = vpop.f32.mrb[0].mxu0
        %v1505 = vadd.f32 0.0, %v1504
        %v1506 = vpop.f32.mrb[0].mxu0
        %1507 = vmatprep.mubr.bf16.mxu0 0
        %1508 = vmatmul.mubr.bf16.gmra.mrb[0].mxu0 %v1355
        %v1509 = vpop.f32.mrb[0].mxu0
        %v1510 = vadd.f32 0.0, %v1509
        %v1511 = vpop.f32.mrb[0].mxu0
        %v1512 = vpop.f32.mrb[0].mxu0
        %v1513 = vadd.f32 0.0, %v1512
        %v1514 = vpop.f32.mrb[0].mxu0
        %1515 = vmatprep.mubr.bf16.mxu0 0
        %1516 = vmatmul.mubr.bf16.gmra.mrb[0].mxu0 %v1358
        %v1517 = vpop.f32.mrb[0].mxu0
        %v1518 = vadd.f32 0.0, %v1517
        %v1519 = vpop.f32.mrb[0].mxu0
        %v1520 = vpop.f32.mrb[0].mxu0
        %v1521 = vadd.f32 0.0, %v1520
        %v1522 = vpop.f32.mrb[0].mxu0
        %1523 = vdwg.mxu0
        %v1524 = vadd.f32 %v1229, %v1398
        %v1525 = vadd.f32 %v1230, %v1401
        %v1526 = vadd.f32 %v1231, %v1406
        %v1527 = vadd.f32 %v1232, %v1409
        %v1528 = vadd.f32 %v1233, %v1414
        %v1529 = vadd.f32 %v1234, %v1417
        %v1530 = vadd.f32 %v1235, %v1422
        %v1531 = vadd.f32 %v1236, %v1425
        %v1532 = vadd.f32 %v1237, %v1430
        %v1533 = vadd.f32 %v1238, %v1433
        %v1534 = vadd.f32 %v1239, %v1438
        %v1535 = vadd.f32 %v1240, %v1441
        %v1536 = vadd.f32 %v1241, %v1446
        %v1537 = vadd.f32 %v1242, %v1449
        %v1538 = vadd.f32 %v1243, %v1454
        %v1539 = vadd.f32 %v1244, %v1457
        %v1540 = vadd.f32 %v1245, %v1462
        %v1541 = vadd.f32 %v1246, %v1465
        %v1542 = vadd.f32 %v1247, %v1470
        %v1543 = vadd.f32 %v1248, %v1473
        %v1544 = vadd.f32 %v1249, %v1478
        %v1545 = vadd.f32 %v1250, %v1481
        %v1546 = vadd.f32 %v1251, %v1486
        %v1547 = vadd.f32 %v1252, %v1489
        %v1548 = vadd.f32 %v1253, %v1494
        %v1549 = vadd.f32 %v1254, %v1497
        %v1550 = vadd.f32 %v1255, %v1502
        %v1551 = vadd.f32 %v1256, %v1505
        %v1552 = vadd.f32 %v1257, %v1510
        %v1553 = vadd.f32 %v1258, %v1513
        %v1554 = vadd.f32 %v1259, %v1518
        %v1555 = vadd.f32 %v1260, %v1521
        %v1556 = vld [vmem:[%s1261 + $0x1] sm:$0xff]
        %v1557 = vld [vmem:[%s1261 + $0x9] sm:$0xff]
        %v1558 = vld [vmem:[%s1261 + $0x19] sm:$0xff]
        %v1559 = vld [vmem:[%s1261 + $0x21] sm:$0xff]
        %v1560 = vld [vmem:[%s1261 + $0x31] sm:$0xff]
        %v1561 = vld [vmem:[%s1261 + $0x39] sm:$0xff]
        %v1562 = vld [vmem:[%s1261 + $0x49] sm:$0xff]
        %v1563 = vld [vmem:[%s1261 + $0x51] sm:$0xff]
        %v1564 = vld [vmem:[%s1261 + $0x61] sm:$0xff]
        %v1565 = vld [vmem:[%s1261 + $0x69] sm:$0xff]
        %v1566 = vld [vmem:[%s1261 + $0x79] sm:$0xff]
        %v1567 = vld [vmem:[%s1261 + $0x81] sm:$0xff]
        %v1568 = vld [vmem:[%s1261 + $0x91] sm:$0xff]
        %v1569 = vld [vmem:[%s1261 + $0x99] sm:$0xff]
        %v1570 = vld [vmem:[%s1261 + $0xa9] sm:$0xff]
        %v1571 = vld [vmem:[%s1261 + $0xb1] sm:$0xff]
        %v1572 = vld [vmem:[%s1261 + $0xc1] sm:$0xff]
        %v1573 = vld [vmem:[%s1261 + $0xc9] sm:$0xff]
        %v1574 = vld [vmem:[%s1261 + $0xd9] sm:$0xff]
        %v1575 = vld [vmem:[%s1261 + $0xe1] sm:$0xff]
        %v1576 = vld [vmem:[%s1261 + $0xf1] sm:$0xff]
        %v1577 = vld [vmem:[%s1261 + $0xf9] sm:$0xff]
        %v1578 = vld [vmem:[%s1261 + $0x109] sm:$0xff]
        %v1579 = vld [vmem:[%s1261 + $0x111] sm:$0xff]
        %v1580 = vld [vmem:[%s1261 + $0x121] sm:$0xff]
        %v1581 = vld [vmem:[%s1261 + $0x129] sm:$0xff]
        %v1582 = vld [vmem:[%s1261 + $0x139] sm:$0xff]
        %v1583 = vld [vmem:[%s1261 + $0x141] sm:$0xff]
        %v1584 = vld [vmem:[%s1261 + $0x151] sm:$0xff]
        %v1585 = vld [vmem:[%s1261 + $0x159] sm:$0xff]
        %v1586 = vld [vmem:[%s1261 + $0x169] sm:$0xff]
        %v1587 = vld [vmem:[%s1261 + $0x171] sm:$0xff]
        %v1588 = vpack.c.bf16 %v1557, %v1556
        %v1589 = vpack.c.bf16 %v1559, %v1558
        %v1590 = vpack.c.bf16 %v1561, %v1560
        %v1591 = vpack.c.bf16 %v1563, %v1562
        %v1592 = vpack.c.bf16 %v1565, %v1564
        %v1593 = vpack.c.bf16 %v1567, %v1566
        %v1594 = vpack.c.bf16 %v1569, %v1568
        %v1595 = vpack.c.bf16 %v1571, %v1570
        %v1596 = vpack.c.bf16 %v1573, %v1572
        %v1597 = vpack.c.bf16 %v1575, %v1574
        %v1598 = vpack.c.bf16 %v1577, %v1576
        %v1599 = vpack.c.bf16 %v1579, %v1578
        %v1600 = vpack.c.bf16 %v1581, %v1580
        %v1601 = vpack.c.bf16 %v1583, %v1582
        %v1602 = vpack.c.bf16 %v1585, %v1584
        %v1603 = vpack.c.bf16 %v1587, %v1586
        %s1604 = scalar_lea.vmem [#allocation5], 8
        %v1605 = vld [vmem:[%s1604] sm:$0x3]
        %v1607 = vsel %vm541, %v1588, 0
        %v1610 = vsel %vm541, %v1589, 0
        %v1613 = vsel %vm541, %v1590, 0
        %v1616 = vsel %vm541, %v1591, 0
        %v1619 = vsel %vm541, %v1592, 0
        %v1622 = vsel %vm541, %v1593, 0
        %v1625 = vsel %vm541, %v1594, 0
        %v1628 = vsel %vm541, %v1595, 0
        %v1631 = vsel %vm541, %v1596, 0
        %v1634 = vsel %vm541, %v1597, 0
        %v1637 = vsel %vm541, %v1598, 0
        %v1640 = vsel %vm541, %v1599, 0
        %v1643 = vsel %vm541, %v1600, 0
        %v1646 = vsel %vm541, %v1601, 0
        %v1649 = vsel %vm541, %v1602, 0
        %v1652 = vsel %vm541, %v1603, 0
        %v1655 = vsel %vm590, %v1605, 0
        %1657 = vmatprep.subr.bf16.mxu0 0
        %1658 = vmatpush1.bf16.msra.mxu0 %v1655
        %1659 = vmatprep.subr.bf16.mxu0 0
        %1660 = vmatpush1.bf16.msra.mxu0 0
        %1661 = vmatprep.subr.bf16.mxu0 0
        %1662 = vmatpush1.bf16.msra.mxu0 0
        %1663 = vmatprep.subr.bf16.mxu0 0
        %1664 = vmatpush1.bf16.msra.mxu0 0
        %1665 = vmatprep.subr.bf16.mxu0 0
        %1666 = vmatpush1.bf16.msra.mxu0 0
        %1667 = vmatprep.subr.bf16.mxu0 0
        %1668 = vmatpush1.bf16.msra.mxu0 0
        %1669 = vmatprep.subr.bf16.mxu0 0
        %1670 = vmatpush1.bf16.msra.mxu0 0
        %1671 = vmatprep.subr.bf16.mxu0 0
        %1672 = vmatpush1.bf16.msra.mxu0 0
        %1673 = vmatprep.subr.bf16.mxu0 0
        %1674 = vmatpush1.bf16.msra.mxu0 0
        %1675 = vmatprep.subr.bf16.mxu0 0
        %1676 = vmatpush1.bf16.msra.mxu0 0
        %1677 = vmatprep.subr.bf16.mxu0 0
        %1678 = vmatpush1.bf16.msra.mxu0 0
        %1679 = vmatprep.subr.bf16.mxu0 0
        %1680 = vmatpush1.bf16.msra.mxu0 0
        %1681 = vmatprep.subr.bf16.mxu0 0
        %1682 = vmatpush1.bf16.msra.mxu0 0
        %1683 = vmatprep.subr.bf16.mxu0 0
        %1684 = vmatpush1.bf16.msra.mxu0 0
        %1685 = vmatprep.subr.bf16.mxu0 0
        %1686 = vmatpush1.bf16.msra.mxu0 0
        %1687 = vmatprep.subr.bf16.mxu0 0
        %1688 = vmatpush1.bf16.msra.mxu0 0
        %1689 = vmatprep.mubr.bf16.mxu0 0
        %1690 = vmatmul.mubr.bf16.gmra.mrb[0].mxu0 %v1607
        %v1691 = vpop.f32.mrb[0].mxu0
        %v1692 = vadd.f32 0.0, %v1691
        %v1693 = vpop.f32.mrb[0].mxu0
        %v1694 = vpop.f32.mrb[0].mxu0
        %v1695 = vadd.f32 0.0, %v1694
        %v1696 = vpop.f32.mrb[0].mxu0
        %1697 = vmatprep.mubr.bf16.mxu0 0
        %1698 = vmatmul.mubr.bf16.gmra.mrb[0].mxu0 %v1610
        %v1699 = vpop.f32.mrb[0].mxu0
        %v1700 = vadd.f32 0.0, %v1699
        %v1701 = vpop.f32.mrb[0].mxu0
        %v1702 = vpop.f32.mrb[0].mxu0
        %v1703 = vadd.f32 0.0, %v1702
        %v1704 = vpop.f32.mrb[0].mxu0
        %1705 = vmatprep.mubr.bf16.mxu0 0
        %1706 = vmatmul.mubr.bf16.gmra.mrb[0].mxu0 %v1613
        %v1707 = vpop.f32.mrb[0].mxu0
        %v1708 = vadd.f32 0.0, %v1707
        %v1709 = vpop.f32.mrb[0].mxu0
        %v1710 = vpop.f32.mrb[0].mxu0
        %v1711 = vadd.f32 0.0, %v1710
        %v1712 = vpop.f32.mrb[0].mxu0
        %1713 = vmatprep.mubr.bf16.mxu0 0
        %1714 = vmatmul.mubr.bf16.gmra.mrb[0].mxu0 %v1616
        %v1715 = vpop.f32.mrb[0].mxu0
        %v1716 = vadd.f32 0.0, %v1715
        %v1717 = vpop.f32.mrb[0].mxu0
        %v1718 = vpop.f32.mrb[0].mxu0
        %v1719 = vadd.f32 0.0, %v1718
        %v1720 = vpop.f32.mrb[0].mxu0
        %1721 = vmatprep.mubr.bf16.mxu0 0
        %1722 = vmatmul.mubr.bf16.gmra.mrb[0].mxu0 %v1619
        %v1723 = vpop.f32.mrb[0].mxu0
        %v1724 = vadd.f32 0.0, %v1723
        %v1725 = vpop.f32.mrb[0].mxu0
        %v1726 = vpop.f32.mrb[0].mxu0
        %v1727 = vadd.f32 0.0, %v1726
        %v1728 = vpop.f32.mrb[0].mxu0
        %1729 = vmatprep.mubr.bf16.mxu0 0
        %1730 = vmatmul.mubr.bf16.gmra.mrb[0].mxu0 %v1622
        %v1731 = vpop.f32.mrb[0].mxu0
        %v1732 = vadd.f32 0.0, %v1731
        %v1733 = vpop.f32.mrb[0].mxu0
        %v1734 = vpop.f32.mrb[0].mxu0
        %v1735 = vadd.f32 0.0, %v1734
        %v1736 = vpop.f32.mrb[0].mxu0
        %1737 = vmatprep.mubr.bf16.mxu0 0
        %1738 = vmatmul.mubr.bf16.gmra.mrb[0].mxu0 %v1625
        %v1739 = vpop.f32.mrb[0].mxu0
        %v1740 = vadd.f32 0.0, %v1739
        %v1741 = vpop.f32.mrb[0].mxu0
        %v1742 = vpop.f32.mrb[0].mxu0
        %v1743 = vadd.f32 0.0, %v1742
        %v1744 = vpop.f32.mrb[0].mxu0
        %1745 = vmatprep.mubr.bf16.mxu0 0
        %1746 = vmatmul.mubr.bf16.gmra.mrb[0].mxu0 %v1628
        %v1747 = vpop.f32.mrb[0].mxu0
        %v1748 = vadd.f32 0.0, %v1747
        %v1749 = vpop.f32.mrb[0].mxu0
        %v1750 = vpop.f32.mrb[0].mxu0
        %v1751 = vadd.f32 0.0, %v1750
        %v1752 = vpop.f32.mrb[0].mxu0
        %1753 = vmatprep.mubr.bf16.mxu0 0
        %1754 = vmatmul.mubr.bf16.gmra.mrb[0].mxu0 %v1631
        %v1755 = vpop.f32.mrb[0].mxu0
        %v1756 = vadd.f32 0.0, %v1755
        %v1757 = vpop.f32.mrb[0].mxu0
        %v1758 = vpop.f32.mrb[0].mxu0
        %v1759 = vadd.f32 0.0, %v1758
        %v1760 = vpop.f32.mrb[0].mxu0
        %1761 = vmatprep.mubr.bf16.mxu0 0
        %1762 = vmatmul.mubr.bf16.gmra.mrb[0].mxu0 %v1634
        %v1763 = vpop.f32.mrb[0].mxu0
        %v1764 = vadd.f32 0.0, %v1763
        %v1765 = vpop.f32.mrb[0].mxu0
        %v1766 = vpop.f32.mrb[0].mxu0
        %v1767 = vadd.f32 0.0, %v1766
        %v1768 = vpop.f32.mrb[0].mxu0
        %1769 = vmatprep.mubr.bf16.mxu0 0
        %1770 = vmatmul.mubr.bf16.gmra.mrb[0].mxu0 %v1637
        %v1771 = vpop.f32.mrb[0].mxu0
        %v1772 = vadd.f32 0.0, %v1771
        %v1773 = vpop.f32.mrb[0].mxu0
        %v1774 = vpop.f32.mrb[0].mxu0
        %v1775 = vadd.f32 0.0, %v1774
        %v1776 = vpop.f32.mrb[0].mxu0
        %1777 = vmatprep.mubr.bf16.mxu0 0
        %1778 = vmatmul.mubr.bf16.gmra.mrb[0].mxu0 %v1640
        %v1779 = vpop.f32.mrb[0].mxu0
        %v1780 = vadd.f32 0.0, %v1779
        %v1781 = vpop.f32.mrb[0].mxu0
        %v1782 = vpop.f32.mrb[0].mxu0
        %v1783 = vadd.f32 0.0, %v1782
        %v1784 = vpop.f32.mrb[0].mxu0
        %1785 = vmatprep.mubr.bf16.mxu0 0
        %1786 = vmatmul.mubr.bf16.gmra.mrb[0].mxu0 %v1643
        %v1787 = vpop.f32.mrb[0].mxu0
        %v1788 = vadd.f32 0.0, %v1787
        %v1789 = vpop.f32.mrb[0].mxu0
        %v1790 = vpop.f32.mrb[0].mxu0
        %v1791 = vadd.f32 0.0, %v1790
        %v1792 = vpop.f32.mrb[0].mxu0
        %1793 = vmatprep.mubr.bf16.mxu0 0
        %1794 = vmatmul.mubr.bf16.gmra.mrb[0].mxu0 %v1646
        %v1795 = vpop.f32.mrb[0].mxu0
        %v1796 = vadd.f32 0.0, %v1795
        %v1797 = vpop.f32.mrb[0].mxu0
        %v1798 = vpop.f32.mrb[0].mxu0
        %v1799 = vadd.f32 0.0, %v1798
        %v1800 = vpop.f32.mrb[0].mxu0
        %1801 = vmatprep.mubr.bf16.mxu0 0
        %1802 = vmatmul.mubr.bf16.gmra.mrb[0].mxu0 %v1649
        %v1803 = vpop.f32.mrb[0].mxu0
        %v1804 = vadd.f32 0.0, %v1803
        %v1805 = vpop.f32.mrb[0].mxu0
        %v1806 = vpop.f32.mrb[0].mxu0
        %v1807 = vadd.f32 0.0, %v1806
        %v1808 = vpop.f32.mrb[0].mxu0
        %1809 = vmatprep.mubr.bf16.mxu0 0
        %1810 = vmatmul.mubr.bf16.gmra.mrb[0].mxu0 %v1652
        %v1811 = vpop.f32.mrb[0].mxu0
        %v1812 = vadd.f32 0.0, %v1811
        %v1813 = vpop.f32.mrb[0].mxu0
        %v1814 = vpop.f32.mrb[0].mxu0
        %v1815 = vadd.f32 0.0, %v1814
        %v1816 = vpop.f32.mrb[0].mxu0
        %1817 = vdwg.mxu0
        %v1818 = vadd.f32 %v1524, %v1692
        %v1819 = vadd.f32 %v1525, %v1695
        %v1820 = vadd.f32 %v1526, %v1700
        %v1821 = vadd.f32 %v1527, %v1703
        %v1822 = vadd.f32 %v1528, %v1708
        %v1823 = vadd.f32 %v1529, %v1711
        %v1824 = vadd.f32 %v1530, %v1716
        %v1825 = vadd.f32 %v1531, %v1719
        %v1826 = vadd.f32 %v1532, %v1724
        %v1827 = vadd.f32 %v1533, %v1727
        %v1828 = vadd.f32 %v1534, %v1732
        %v1829 = vadd.f32 %v1535, %v1735
        %v1830 = vadd.f32 %v1536, %v1740
        %v1831 = vadd.f32 %v1537, %v1743
        %v1832 = vadd.f32 %v1538, %v1748
        %v1833 = vadd.f32 %v1539, %v1751
        %v1834 = vadd.f32 %v1540, %v1756
        %v1835 = vadd.f32 %v1541, %v1759
        %v1836 = vadd.f32 %v1542, %v1764
        %v1837 = vadd.f32 %v1543, %v1767
        %v1838 = vadd.f32 %v1544, %v1772
        %v1839 = vadd.f32 %v1545, %v1775
        %v1840 = vadd.f32 %v1546, %v1780
        %v1841 = vadd.f32 %v1547, %v1783
        %v1842 = vadd.f32 %v1548, %v1788
        %v1843 = vadd.f32 %v1549, %v1791
        %v1844 = vadd.f32 %v1550, %v1796
        %v1845 = vadd.f32 %v1551, %v1799
        %v1846 = vadd.f32 %v1552, %v1804
        %v1847 = vadd.f32 %v1553, %v1807
        %v1848 = vadd.f32 %v1554, %v1812
        %v1849 = vadd.f32 %v1555, %v1815
        %v1850 = vld [vmem:[%s1261 + $0x2] sm:$0xff]
        %v1851 = vld [vmem:[%s1261 + $0xa] sm:$0xff]
        %v1852 = vld [vmem:[%s1261 + $0x1a] sm:$0xff]
        %v1853 = vld [vmem:[%s1261 + $0x22] sm:$0xff]
        %v1854 = vld [vmem:[%s1261 + $0x32] sm:$0xff]
        %v1855 = vld [vmem:[%s1261 + $0x3a] sm:$0xff]
        %v1856 = vld [vmem:[%s1261 + $0x4a] sm:$0xff]
        %v1857 = vld [vmem:[%s1261 + $0x52] sm:$0xff]
        %v1858 = vld [vmem:[%s1261 + $0x62] sm:$0xff]
        %v1859 = vld [vmem:[%s1261 + $0x6a] sm:$0xff]
        %v1860 = vld [vmem:[%s1261 + $0x7a] sm:$0xff]
        %v1861 = vld [vmem:[%s1261 + $0x82] sm:$0xff]
        %v1862 = vld [vmem:[%s1261 + $0x92] sm:$0xff]
        %v1863 = vld [vmem:[%s1261 + $0x9a] sm:$0xff]
        %v1864 = vld [vmem:[%s1261 + $0xaa] sm:$0xff]
        %v1865 = vld [vmem:[%s1261 + $0xb2] sm:$0xff]
        %v1866 = vld [vmem:[%s1261 + $0xc2] sm:$0xff]
        %v1867 = vld [vmem:[%s1261 + $0xca] sm:$0xff]
        %v1868 = vld [vmem:[%s1261 + $0xda] sm:$0xff]
        %v1869 = vld [vmem:[%s1261 + $0xe2] sm:$0xff]
        %v1870 = vld [vmem:[%s1261 + $0xf2] sm:$0xff]
        %v1871 = vld [vmem:[%s1261 + $0xfa] sm:$0xff]
        %v1872 = vld [vmem:[%s1261 + $0x10a] sm:$0xff]
        %v1873 = vld [vmem:[%s1261 + $0x112] sm:$0xff]
        %v1874 = vld [vmem:[%s1261 + $0x122] sm:$0xff]
        %v1875 = vld [vmem:[%s1261 + $0x12a] sm:$0xff]
        %v1876 = vld [vmem:[%s1261 + $0x13a] sm:$0xff]
        %v1877 = vld [vmem:[%s1261 + $0x142] sm:$0xff]
        %v1878 = vld [vmem:[%s1261 + $0x152] sm:$0xff]
        %v1879 = vld [vmem:[%s1261 + $0x15a] sm:$0xff]
        %v1880 = vld [vmem:[%s1261 + $0x16a] sm:$0xff]
        %v1881 = vld [vmem:[%s1261 + $0x172] sm:$0xff]
        %v1882 = vpack.c.bf16 %v1851, %v1850
        %v1883 = vpack.c.bf16 %v1853, %v1852
        %v1884 = vpack.c.bf16 %v1855, %v1854
        %v1885 = vpack.c.bf16 %v1857, %v1856
        %v1886 = vpack.c.bf16 %v1859, %v1858
        %v1887 = vpack.c.bf16 %v1861, %v1860
        %v1888 = vpack.c.bf16 %v1863, %v1862
        %v1889 = vpack.c.bf16 %v1865, %v1864
        %v1890 = vpack.c.bf16 %v1867, %v1866
        %v1891 = vpack.c.bf16 %v1869, %v1868
        %v1892 = vpack.c.bf16 %v1871, %v1870
        %v1893 = vpack.c.bf16 %v1873, %v1872
        %v1894 = vpack.c.bf16 %v1875, %v1874
        %v1895 = vpack.c.bf16 %v1877, %v1876
        %v1896 = vpack.c.bf16 %v1879, %v1878
        %v1897 = vpack.c.bf16 %v1881, %v1880
        %s1898 = scalar_lea.vmem [#allocation5], 10
        %v1899 = vld [vmem:[%s1898] sm:$0x3]
        %v1901 = vsel %vm541, %v1882, 0
        %v1904 = vsel %vm541, %v1883, 0
        %v1907 = vsel %vm541, %v1884, 0
        %v1910 = vsel %vm541, %v1885, 0
        %v1913 = vsel %vm541, %v1886, 0
        %v1916 = vsel %vm541, %v1887, 0
        %v1919 = vsel %vm541, %v1888, 0
        %v1922 = vsel %vm541, %v1889, 0
        %v1925 = vsel %vm541, %v1890, 0
        %v1928 = vsel %vm541, %v1891, 0
        %v1931 = vsel %vm541, %v1892, 0
        %v1934 = vsel %vm541, %v1893, 0
        %v1937 = vsel %vm541, %v1894, 0
        %v1940 = vsel %vm541, %v1895, 0
        %v1943 = vsel %vm541, %v1896, 0
        %v1946 = vsel %vm541, %v1897, 0
        %v1949 = vsel %vm590, %v1899, 0
        %1951 = vmatprep.subr.bf16.mxu0 0
        %1952 = vmatpush1.bf16.msra.mxu0 %v1949
        %1953 = vmatprep.subr.bf16.mxu0 0
        %1954 = vmatpush1.bf16.msra.mxu0 0
        %1955 = vmatprep.subr.bf16.mxu0 0
        %1956 = vmatpush1.bf16.msra.mxu0 0
        %1957 = vmatprep.subr.bf16.mxu0 0
        %1958 = vmatpush1.bf16.msra.mxu0 0
        %1959 = vmatprep.subr.bf16.mxu0 0
        %1960 = vmatpush1.bf16.msra.mxu0 0
        %1961 = vmatprep.subr.bf16.mxu0 0
        %1962 = vmatpush1.bf16.msra.mxu0 0
        %1963 = vmatprep.subr.bf16.mxu0 0
        %1964 = vmatpush1.bf16.msra.mxu0 0
        %1965 = vmatprep.subr.bf16.mxu0 0
        %1966 = vmatpush1.bf16.msra.mxu0 0
        %1967 = vmatprep.subr.bf16.mxu0 0
        %1968 = vmatpush1.bf16.msra.mxu0 0
        %1969 = vmatprep.subr.bf16.mxu0 0
        %1970 = vmatpush1.bf16.msra.mxu0 0
        %1971 = vmatprep.subr.bf16.mxu0 0
        %1972 = vmatpush1.bf16.msra.mxu0 0
        %1973 = vmatprep.subr.bf16.mxu0 0
        %1974 = vmatpush1.bf16.msra.mxu0 0
        %1975 = vmatprep.subr.bf16.mxu0 0
        %1976 = vmatpush1.bf16.msra.mxu0 0
        %1977 = vmatprep.subr.bf16.mxu0 0
        %1978 = vmatpush1.bf16.msra.mxu0 0
        %1979 = vmatprep.subr.bf16.mxu0 0
        %1980 = vmatpush1.bf16.msra.mxu0 0
        %1981 = vmatprep.subr.bf16.mxu0 0
        %1982 = vmatpush1.bf16.msra.mxu0 0
        %1983 = vmatprep.mubr.bf16.mxu0 0
        %1984 = vmatmul.mubr.bf16.gmra.mrb[0].mxu0 %v1901
        %v1985 = vpop.f32.mrb[0].mxu0
        %v1986 = vadd.f32 0.0, %v1985
        %v1987 = vpop.f32.mrb[0].mxu0
        %v1988 = vpop.f32.mrb[0].mxu0
        %v1989 = vadd.f32 0.0, %v1988
        %v1990 = vpop.f32.mrb[0].mxu0
        %1991 = vmatprep.mubr.bf16.mxu0 0
        %1992 = vmatmul.mubr.bf16.gmra.mrb[0].mxu0 %v1904
        %v1993 = vpop.f32.mrb[0].mxu0
        %v1994 = vadd.f32 0.0, %v1993
        %v1995 = vpop.f32.mrb[0].mxu0
        %v1996 = vpop.f32.mrb[0].mxu0
        %v1997 = vadd.f32 0.0, %v1996
        %v1998 = vpop.f32.mrb[0].mxu0
        %1999 = vmatprep.mubr.bf16.mxu0 0
        %2000 = vmatmul.mubr.bf16.gmra.mrb[0].mxu0 %v1907
        %v2001 = vpop.f32.mrb[0].mxu0
        %v2002 = vadd.f32 0.0, %v2001
        %v2003 = vpop.f32.mrb[0].mxu0
        %v2004 = vpop.f32.mrb[0].mxu0
        %v2005 = vadd.f32 0.0, %v2004
        %v2006 = vpop.f32.mrb[0].mxu0
        %2007 = vmatprep.mubr.bf16.mxu0 0
        %2008 = vmatmul.mubr.bf16.gmra.mrb[0].mxu0 %v1910
        %v2009 = vpop.f32.mrb[0].mxu0
        %v2010 = vadd.f32 0.0, %v2009
        %v2011 = vpop.f32.mrb[0].mxu0
        %v2012 = vpop.f32.mrb[0].mxu0
        %v2013 = vadd.f32 0.0, %v2012
        %v2014 = vpop.f32.mrb[0].mxu0
        %2015 = vmatprep.mubr.bf16.mxu0 0
        %2016 = vmatmul.mubr.bf16.gmra.mrb[0].mxu0 %v1913
        %v2017 = vpop.f32.mrb[0].mxu0
        %v2018 = vadd.f32 0.0, %v2017
        %v2019 = vpop.f32.mrb[0].mxu0
        %v2020 = vpop.f32.mrb[0].mxu0
        %v2021 = vadd.f32 0.0, %v2020
        %v2022 = vpop.f32.mrb[0].mxu0
        %2023 = vmatprep.mubr.bf16.mxu0 0
        %2024 = vmatmul.mubr.bf16.gmra.mrb[0].mxu0 %v1916
        %v2025 = vpop.f32.mrb[0].mxu0
        %v2026 = vadd.f32 0.0, %v2025
        %v2027 = vpop.f32.mrb[0].mxu0
        %v2028 = vpop.f32.mrb[0].mxu0
        %v2029 = vadd.f32 0.0, %v2028
        %v2030 = vpop.f32.mrb[0].mxu0
        %2031 = vmatprep.mubr.bf16.mxu0 0
        %2032 = vmatmul.mubr.bf16.gmra.mrb[0].mxu0 %v1919
        %v2033 = vpop.f32.mrb[0].mxu0
        %v2034 = vadd.f32 0.0, %v2033
        %v2035 = vpop.f32.mrb[0].mxu0
        %v2036 = vpop.f32.mrb[0].mxu0
        %v2037 = vadd.f32 0.0, %v2036
        %v2038 = vpop.f32.mrb[0].mxu0
        %2039 = vmatprep.mubr.bf16.mxu0 0
        %2040 = vmatmul.mubr.bf16.gmra.mrb[0].mxu0 %v1922
        %v2041 = vpop.f32.mrb[0].mxu0
        %v2042 = vadd.f32 0.0, %v2041
        %v2043 = vpop.f32.mrb[0].mxu0
        %v2044 = vpop.f32.mrb[0].mxu0
        %v2045 = vadd.f32 0.0, %v2044
        %v2046 = vpop.f32.mrb[0].mxu0
        %2047 = vmatprep.mubr.bf16.mxu0 0
        %2048 = vmatmul.mubr.bf16.gmra.mrb[0].mxu0 %v1925
        %v2049 = vpop.f32.mrb[0].mxu0
        %v2050 = vadd.f32 0.0, %v2049
        %v2051 = vpop.f32.mrb[0].mxu0
        %v2052 = vpop.f32.mrb[0].mxu0
        %v2053 = vadd.f32 0.0, %v2052
        %v2054 = vpop.f32.mrb[0].mxu0
        %2055 = vmatprep.mubr.bf16.mxu0 0
        %2056 = vmatmul.mubr.bf16.gmra.mrb[0].mxu0 %v1928
        %v2057 = vpop.f32.mrb[0].mxu0
        %v2058 = vadd.f32 0.0, %v2057
        %v2059 = vpop.f32.mrb[0].mxu0
        %v2060 = vpop.f32.mrb[0].mxu0
        %v2061 = vadd.f32 0.0, %v2060
        %v2062 = vpop.f32.mrb[0].mxu0
        %2063 = vmatprep.mubr.bf16.mxu0 0
        %2064 = vmatmul.mubr.bf16.gmra.mrb[0].mxu0 %v1931
        %v2065 = vpop.f32.mrb[0].mxu0
        %v2066 = vadd.f32 0.0, %v2065
        %v2067 = vpop.f32.mrb[0].mxu0
        %v2068 = vpop.f32.mrb[0].mxu0
        %v2069 = vadd.f32 0.0, %v2068
        %v2070 = vpop.f32.mrb[0].mxu0
        %2071 = vmatprep.mubr.bf16.mxu0 0
        %2072 = vmatmul.mubr.bf16.gmra.mrb[0].mxu0 %v1934
        %v2073 = vpop.f32.mrb[0].mxu0
        %v2074 = vadd.f32 0.0, %v2073
        %v2075 = vpop.f32.mrb[0].mxu0
        %v2076 = vpop.f32.mrb[0].mxu0
        %v2077 = vadd.f32 0.0, %v2076
        %v2078 = vpop.f32.mrb[0].mxu0
        %2079 = vmatprep.mubr.bf16.mxu0 0
        %2080 = vmatmul.mubr.bf16.gmra.mrb[0].mxu0 %v1937
        %v2081 = vpop.f32.mrb[0].mxu0
        %v2082 = vadd.f32 0.0, %v2081
        %v2083 = vpop.f32.mrb[0].mxu0
        %v2084 = vpop.f32.mrb[0].mxu0
        %v2085 = vadd.f32 0.0, %v2084
        %v2086 = vpop.f32.mrb[0].mxu0
        %2087 = vmatprep.mubr.bf16.mxu0 0
        %2088 = vmatmul.mubr.bf16.gmra.mrb[0].mxu0 %v1940
        %v2089 = vpop.f32.mrb[0].mxu0
        %v2090 = vadd.f32 0.0, %v2089
        %v2091 = vpop.f32.mrb[0].mxu0
        %v2092 = vpop.f32.mrb[0].mxu0
        %v2093 = vadd.f32 0.0, %v2092
        %v2094 = vpop.f32.mrb[0].mxu0
        %2095 = vmatprep.mubr.bf16.mxu0 0
        %2096 = vmatmul.mubr.bf16.gmra.mrb[0].mxu0 %v1943
        %v2097 = vpop.f32.mrb[0].mxu0
        %v2098 = vadd.f32 0.0, %v2097
        %v2099 = vpop.f32.mrb[0].mxu0
        %v2100 = vpop.f32.mrb[0].mxu0
        %v2101 = vadd.f32 0.0, %v2100
        %v2102 = vpop.f32.mrb[0].mxu0
        %2103 = vmatprep.mubr.bf16.mxu0 0
        %2104 = vmatmul.mubr.bf16.gmra.mrb[0].mxu0 %v1946
        %v2105 = vpop.f32.mrb[0].mxu0
        %v2106 = vadd.f32 0.0, %v2105
        %v2107 = vpop.f32.mrb[0].mxu0
        %v2108 = vpop.f32.mrb[0].mxu0
        %v2109 = vadd.f32 0.0, %v2108
        %v2110 = vpop.f32.mrb[0].mxu0
        %2111 = vdwg.mxu0
        %v2112 = vadd.f32 %v1818, %v1986
        %v2113 = vadd.f32 %v1819, %v1989
        %v2114 = vadd.f32 %v1820, %v1994
        %v2115 = vadd.f32 %v1821, %v1997
        %v2116 = vadd.f32 %v1822, %v2002
        %v2117 = vadd.f32 %v1823, %v2005
        %v2118 = vadd.f32 %v1824, %v2010
        %v2119 = vadd.f32 %v1825, %v2013
        %v2120 = vadd.f32 %v1826, %v2018
        %v2121 = vadd.f32 %v1827, %v2021
        %v2122 = vadd.f32 %v1828, %v2026
        %v2123 = vadd.f32 %v1829, %v2029
        %v2124 = vadd.f32 %v1830, %v2034
        %v2125 = vadd.f32 %v1831, %v2037
        %v2126 = vadd.f32 %v1832, %v2042
        %v2127 = vadd.f32 %v1833, %v2045
        %v2128 = vadd.f32 %v1834, %v2050
        %v2129 = vadd.f32 %v1835, %v2053
        %v2130 = vadd.f32 %v1836, %v2058
        %v2131 = vadd.f32 %v1837, %v2061
        %v2132 = vadd.f32 %v1838, %v2066
        %v2133 = vadd.f32 %v1839, %v2069
        %v2134 = vadd.f32 %v1840, %v2074
        %v2135 = vadd.f32 %v1841, %v2077
        %v2136 = vadd.f32 %v1842, %v2082
        %v2137 = vadd.f32 %v1843, %v2085
        %v2138 = vadd.f32 %v1844, %v2090
        %v2139 = vadd.f32 %v1845, %v2093
        %v2140 = vadd.f32 %v1846, %v2098
        %v2141 = vadd.f32 %v1847, %v2101
        %v2142 = vadd.f32 %v1848, %v2106
        %v2143 = vadd.f32 %v1849, %v2109
        %s2144 = scalar_lea.vmem %s360, 48 [#allocation2]
        %v2145 = vld [vmem:[%s2144] sm:$0xff]
        %v2146 = vld [vmem:[%s2144 + $0x8] sm:$0xff]
        %v2147 = vld [vmem:[%s2144 + $0x18] sm:$0xff]
        %v2148 = vld [vmem:[%s2144 + $0x20] sm:$0xff]
        %v2149 = vld [vmem:[%s2144 + $0x30] sm:$0xff]
        %v2150 = vld [vmem:[%s2144 + $0x38] sm:$0xff]
        %v2151 = vld [vmem:[%s2144 + $0x48] sm:$0xff]
        %v2152 = vld [vmem:[%s2144 + $0x50] sm:$0xff]
        %v2153 = vld [vmem:[%s2144 + $0x60] sm:$0xff]
        %v2154 = vld [vmem:[%s2144 + $0x68] sm:$0xff]
        %v2155 = vld [vmem:[%s2144 + $0x78] sm:$0xff]
        %v2156 = vld [vmem:[%s2144 + $0x80] sm:$0xff]
        %v2157 = vld [vmem:[%s2144 + $0x90] sm:$0xff]
        %v2158 = vld [vmem:[%s2144 + $0x98] sm:$0xff]
        %v2159 = vld [vmem:[%s2144 + $0xa8] sm:$0xff]
        %v2160 = vld [vmem:[%s2144 + $0xb0] sm:$0xff]
        %v2161 = vld [vmem:[%s2144 + $0xc0] sm:$0xff]
        %v2162 = vld [vmem:[%s2144 + $0xc8] sm:$0xff]
        %v2163 = vld [vmem:[%s2144 + $0xd8] sm:$0xff]
        %v2164 = vld [vmem:[%s2144 + $0xe0] sm:$0xff]
        %v2165 = vld [vmem:[%s2144 + $0xf0] sm:$0xff]
        %v2166 = vld [vmem:[%s2144 + $0xf8] sm:$0xff]
        %v2167 = vld [vmem:[%s2144 + $0x108] sm:$0xff]
        %v2168 = vld [vmem:[%s2144 + $0x110] sm:$0xff]
        %v2169 = vld [vmem:[%s2144 + $0x120] sm:$0xff]
        %v2170 = vld [vmem:[%s2144 + $0x128] sm:$0xff]
        %v2171 = vld [vmem:[%s2144 + $0x138] sm:$0xff]
        %v2172 = vld [vmem:[%s2144 + $0x140] sm:$0xff]
        %v2173 = vld [vmem:[%s2144 + $0x150] sm:$0xff]
        %v2174 = vld [vmem:[%s2144 + $0x158] sm:$0xff]
        %v2175 = vld [vmem:[%s2144 + $0x168] sm:$0xff]
        %v2176 = vld [vmem:[%s2144 + $0x170] sm:$0xff]
        %v2177 = vpack.c.bf16 %v2146, %v2145
        %v2178 = vpack.c.bf16 %v2148, %v2147
        %v2179 = vpack.c.bf16 %v2150, %v2149
        %v2180 = vpack.c.bf16 %v2152, %v2151
        %v2181 = vpack.c.bf16 %v2154, %v2153
        %v2182 = vpack.c.bf16 %v2156, %v2155
        %v2183 = vpack.c.bf16 %v2158, %v2157
        %v2184 = vpack.c.bf16 %v2160, %v2159
        %v2185 = vpack.c.bf16 %v2162, %v2161
        %v2186 = vpack.c.bf16 %v2164, %v2163
        %v2187 = vpack.c.bf16 %v2166, %v2165
        %v2188 = vpack.c.bf16 %v2168, %v2167
        %v2189 = vpack.c.bf16 %v2170, %v2169
        %v2190 = vpack.c.bf16 %v2172, %v2171
        %v2191 = vpack.c.bf16 %v2174, %v2173
        %v2192 = vpack.c.bf16 %v2176, %v2175
        %s2193 = scalar_lea.vmem [#allocation5], 12
        %v2194 = vld [vmem:[%s2193] sm:$0x3]
        %v2196 = vsel %vm541, %v2177, 0
        %v2199 = vsel %vm541, %v2178, 0
        %v2202 = vsel %vm541, %v2179, 0
        %v2205 = vsel %vm541, %v2180, 0
        %v2208 = vsel %vm541, %v2181, 0
        %v2211 = vsel %vm541, %v2182, 0
        %v2214 = vsel %vm541, %v2183, 0
        %v2217 = vsel %vm541, %v2184, 0
        %v2220 = vsel %vm541, %v2185, 0
        %v2223 = vsel %vm541, %v2186, 0
        %v2226 = vsel %vm541, %v2187, 0
        %v2229 = vsel %vm541, %v2188, 0
        %v2232 = vsel %vm541, %v2189, 0
        %v2235 = vsel %vm541, %v2190, 0
        %v2238 = vsel %vm541, %v2191, 0
        %v2241 = vsel %vm541, %v2192, 0
        %v2244 = vsel %vm590, %v2194, 0
        %2246 = vmatprep.subr.bf16.mxu0 0
        %2247 = vmatpush1.bf16.msra.mxu0 %v2244
        %2248 = vmatprep.subr.bf16.mxu0 0
        %2249 = vmatpush1.bf16.msra.mxu0 0
        %2250 = vmatprep.subr.bf16.mxu0 0
        %2251 = vmatpush1.bf16.msra.mxu0 0
        %2252 = vmatprep.subr.bf16.mxu0 0
        %2253 = vmatpush1.bf16.msra.mxu0 0
        %2254 = vmatprep.subr.bf16.mxu0 0
        %2255 = vmatpush1.bf16.msra.mxu0 0
        %2256 = vmatprep.subr.bf16.mxu0 0
        %2257 = vmatpush1.bf16.msra.mxu0 0
        %2258 = vmatprep.subr.bf16.mxu0 0
        %2259 = vmatpush1.bf16.msra.mxu0 0
        %2260 = vmatprep.subr.bf16.mxu0 0
        %2261 = vmatpush1.bf16.msra.mxu0 0
        %2262 = vmatprep.subr.bf16.mxu0 0
        %2263 = vmatpush1.bf16.msra.mxu0 0
        %2264 = vmatprep.subr.bf16.mxu0 0
        %2265 = vmatpush1.bf16.msra.mxu0 0
        %2266 = vmatprep.subr.bf16.mxu0 0
        %2267 = vmatpush1.bf16.msra.mxu0 0
        %2268 = vmatprep.subr.bf16.mxu0 0
        %2269 = vmatpush1.bf16.msra.mxu0 0
        %2270 = vmatprep.subr.bf16.mxu0 0
        %2271 = vmatpush1.bf16.msra.mxu0 0
        %2272 = vmatprep.subr.bf16.mxu0 0
        %2273 = vmatpush1.bf16.msra.mxu0 0
        %2274 = vmatprep.subr.bf16.mxu0 0
        %2275 = vmatpush1.bf16.msra.mxu0 0
        %2276 = vmatprep.subr.bf16.mxu0 0
        %2277 = vmatpush1.bf16.msra.mxu0 0
        %2278 = vmatprep.mubr.bf16.mxu0 0
        %2279 = vmatmul.mubr.bf16.gmra.mrb[0].mxu0 %v2196
        %v2280 = vpop.f32.mrb[0].mxu0
        %v2281 = vadd.f32 0.0, %v2280
        %v2282 = vpop.f32.mrb[0].mxu0
        %v2283 = vpop.f32.mrb[0].mxu0
        %v2284 = vadd.f32 0.0, %v2283
        %v2285 = vpop.f32.mrb[0].mxu0
        %2286 = vmatprep.mubr.bf16.mxu0 0
        %2287 = vmatmul.mubr.bf16.gmra.mrb[0].mxu0 %v2199
        %v2288 = vpop.f32.mrb[0].mxu0
        %v2289 = vadd.f32 0.0, %v2288
        %v2290 = vpop.f32.mrb[0].mxu0
        %v2291 = vpop.f32.mrb[0].mxu0
        %v2292 = vadd.f32 0.0, %v2291
        %v2293 = vpop.f32.mrb[0].mxu0
        %2294 = vmatprep.mubr.bf16.mxu0 0
        %2295 = vmatmul.mubr.bf16.gmra.mrb[0].mxu0 %v2202
        %v2296 = vpop.f32.mrb[0].mxu0
        %v2297 = vadd.f32 0.0, %v2296
        %v2298 = vpop.f32.mrb[0].mxu0
        %v2299 = vpop.f32.mrb[0].mxu0
        %v2300 = vadd.f32 0.0, %v2299
        %v2301 = vpop.f32.mrb[0].mxu0
        %2302 = vmatprep.mubr.bf16.mxu0 0
        %2303 = vmatmul.mubr.bf16.gmra.mrb[0].mxu0 %v2205
        %v2304 = vpop.f32.mrb[0].mxu0
        %v2305 = vadd.f32 0.0, %v2304
        %v2306 = vpop.f32.mrb[0].mxu0
        %v2307 = vpop.f32.mrb[0].mxu0
        %v2308 = vadd.f32 0.0, %v2307
        %v2309 = vpop.f32.mrb[0].mxu0
        %2310 = vmatprep.mubr.bf16.mxu0 0
        %2311 = vmatmul.mubr.bf16.gmra.mrb[0].mxu0 %v2208
        %v2312 = vpop.f32.mrb[0].mxu0
        %v2313 = vadd.f32 0.0, %v2312
        %v2314 = vpop.f32.mrb[0].mxu0
        %v2315 = vpop.f32.mrb[0].mxu0
        %v2316 = vadd.f32 0.0, %v2315
        %v2317 = vpop.f32.mrb[0].mxu0
        %2318 = vmatprep.mubr.bf16.mxu0 0
        %2319 = vmatmul.mubr.bf16.gmra.mrb[0].mxu0 %v2211
        %v2320 = vpop.f32.mrb[0].mxu0
        %v2321 = vadd.f32 0.0, %v2320
        %v2322 = vpop.f32.mrb[0].mxu0
        %v2323 = vpop.f32.mrb[0].mxu0
        %v2324 = vadd.f32 0.0, %v2323
        %v2325 = vpop.f32.mrb[0].mxu0
        %2326 = vmatprep.mubr.bf16.mxu0 0
        %2327 = vmatmul.mubr.bf16.gmra.mrb[0].mxu0 %v2214
        %v2328 = vpop.f32.mrb[0].mxu0
        %v2329 = vadd.f32 0.0, %v2328
        %v2330 = vpop.f32.mrb[0].mxu0
        %v2331 = vpop.f32.mrb[0].mxu0
        %v2332 = vadd.f32 0.0, %v2331
        %v2333 = vpop.f32.mrb[0].mxu0
        %2334 = vmatprep.mubr.bf16.mxu0 0
        %2335 = vmatmul.mubr.bf16.gmra.mrb[0].mxu0 %v2217
        %v2336 = vpop.f32.mrb[0].mxu0
        %v2337 = vadd.f32 0.0, %v2336
        %v2338 = vpop.f32.mrb[0].mxu0
        %v2339 = vpop.f32.mrb[0].mxu0
        %v2340 = vadd.f32 0.0, %v2339
        %v2341 = vpop.f32.mrb[0].mxu0
        %2342 = vmatprep.mubr.bf16.mxu0 0
        %2343 = vmatmul.mubr.bf16.gmra.mrb[0].mxu0 %v2220
        %v2344 = vpop.f32.mrb[0].mxu0
        %v2345 = vadd.f32 0.0, %v2344
        %v2346 = vpop.f32.mrb[0].mxu0
        %v2347 = vpop.f32.mrb[0].mxu0
        %v2348 = vadd.f32 0.0, %v2347
        %v2349 = vpop.f32.mrb[0].mxu0
        %2350 = vmatprep.mubr.bf16.mxu0 0
        %2351 = vmatmul.mubr.bf16.gmra.mrb[0].mxu0 %v2223
        %v2352 = vpop.f32.mrb[0].mxu0
        %v2353 = vadd.f32 0.0, %v2352
        %v2354 = vpop.f32.mrb[0].mxu0
        %v2355 = vpop.f32.mrb[0].mxu0
        %v2356 = vadd.f32 0.0, %v2355
        %v2357 = vpop.f32.mrb[0].mxu0
        %2358 = vmatprep.mubr.bf16.mxu0 0
        %2359 = vmatmul.mubr.bf16.gmra.mrb[0].mxu0 %v2226
        %v2360 = vpop.f32.mrb[0].mxu0
        %v2361 = vadd.f32 0.0, %v2360
        %v2362 = vpop.f32.mrb[0].mxu0
        %v2363 = vpop.f32.mrb[0].mxu0
        %v2364 = vadd.f32 0.0, %v2363
        %v2365 = vpop.f32.mrb[0].mxu0
        %2366 = vmatprep.mubr.bf16.mxu0 0
        %2367 = vmatmul.mubr.bf16.gmra.mrb[0].mxu0 %v2229
        %v2368 = vpop.f32.mrb[0].mxu0
        %v2369 = vadd.f32 0.0, %v2368
        %v2370 = vpop.f32.mrb[0].mxu0
        %v2371 = vpop.f32.mrb[0].mxu0
        %v2372 = vadd.f32 0.0, %v2371
        %v2373 = vpop.f32.mrb[0].mxu0
        %2374 = vmatprep.mubr.bf16.mxu0 0
        %2375 = vmatmul.mubr.bf16.gmra.mrb[0].mxu0 %v2232
        %v2376 = vpop.f32.mrb[0].mxu0
        %v2377 = vadd.f32 0.0, %v2376
        %v2378 = vpop.f32.mrb[0].mxu0
        %v2379 = vpop.f32.mrb[0].mxu0
        %v2380 = vadd.f32 0.0, %v2379
        %v2381 = vpop.f32.mrb[0].mxu0
        %2382 = vmatprep.mubr.bf16.mxu0 0
        %2383 = vmatmul.mubr.bf16.gmra.mrb[0].mxu0 %v2235
        %v2384 = vpop.f32.mrb[0].mxu0
        %v2385 = vadd.f32 0.0, %v2384
        %v2386 = vpop.f32.mrb[0].mxu0
        %v2387 = vpop.f32.mrb[0].mxu0
        %v2388 = vadd.f32 0.0, %v2387
        %v2389 = vpop.f32.mrb[0].mxu0
        %2390 = vmatprep.mubr.bf16.mxu0 0
        %2391 = vmatmul.mubr.bf16.gmra.mrb[0].mxu0 %v2238
        %v2392 = vpop.f32.mrb[0].mxu0
        %v2393 = vadd.f32 0.0, %v2392
        %v2394 = vpop.f32.mrb[0].mxu0
        %v2395 = vpop.f32.mrb[0].mxu0
        %v2396 = vadd.f32 0.0, %v2395
        %v2397 = vpop.f32.mrb[0].mxu0
        %2398 = vmatprep.mubr.bf16.mxu0 0
        %2399 = vmatmul.mubr.bf16.gmra.mrb[0].mxu0 %v2241
        %v2400 = vpop.f32.mrb[0].mxu0
        %v2401 = vadd.f32 0.0, %v2400
        %v2402 = vpop.f32.mrb[0].mxu0
        %v2403 = vpop.f32.mrb[0].mxu0
        %v2404 = vadd.f32 0.0, %v2403
        %v2405 = vpop.f32.mrb[0].mxu0
        %2406 = vdwg.mxu0
        %v2407 = vadd.f32 %v2112, %v2281
        %v2408 = vadd.f32 %v2113, %v2284
        %v2409 = vadd.f32 %v2114, %v2289
        %v2410 = vadd.f32 %v2115, %v2292
        %v2411 = vadd.f32 %v2116, %v2297
        %v2412 = vadd.f32 %v2117, %v2300
        %v2413 = vadd.f32 %v2118, %v2305
        %v2414 = vadd.f32 %v2119, %v2308
        %v2415 = vadd.f32 %v2120, %v2313
        %v2416 = vadd.f32 %v2121, %v2316
        %v2417 = vadd.f32 %v2122, %v2321
        %v2418 = vadd.f32 %v2123, %v2324
        %v2419 = vadd.f32 %v2124, %v2329
        %v2420 = vadd.f32 %v2125, %v2332
        %v2421 = vadd.f32 %v2126, %v2337
        %v2422 = vadd.f32 %v2127, %v2340
        %v2423 = vadd.f32 %v2128, %v2345
        %v2424 = vadd.f32 %v2129, %v2348
        %v2425 = vadd.f32 %v2130, %v2353
        %v2426 = vadd.f32 %v2131, %v2356
        %v2427 = vadd.f32 %v2132, %v2361
        %v2428 = vadd.f32 %v2133, %v2364
        %v2429 = vadd.f32 %v2134, %v2369
        %v2430 = vadd.f32 %v2135, %v2372
        %v2431 = vadd.f32 %v2136, %v2377
        %v2432 = vadd.f32 %v2137, %v2380
        %v2433 = vadd.f32 %v2138, %v2385
        %v2434 = vadd.f32 %v2139, %v2388
        %v2435 = vadd.f32 %v2140, %v2393
        %v2436 = vadd.f32 %v2141, %v2396
        %v2437 = vadd.f32 %v2142, %v2401
        %v2438 = vadd.f32 %v2143, %v2404
        %v2439 = vld [vmem:[%s2144 + $0x1] sm:$0xff]
        %v2440 = vld [vmem:[%s2144 + $0x9] sm:$0xff]
        %v2441 = vld [vmem:[%s2144 + $0x19] sm:$0xff]
        %v2442 = vld [vmem:[%s2144 + $0x21] sm:$0xff]
        %v2443 = vld [vmem:[%s2144 + $0x31] sm:$0xff]
        %v2444 = vld [vmem:[%s2144 + $0x39] sm:$0xff]
        %v2445 = vld [vmem:[%s2144 + $0x49] sm:$0xff]
        %v2446 = vld [vmem:[%s2144 + $0x51] sm:$0xff]
        %v2447 = vld [vmem:[%s2144 + $0x61] sm:$0xff]
        %v2448 = vld [vmem:[%s2144 + $0x69] sm:$0xff]
        %v2449 = vld [vmem:[%s2144 + $0x79] sm:$0xff]
        %v2450 = vld [vmem:[%s2144 + $0x81] sm:$0xff]
        %v2451 = vld [vmem:[%s2144 + $0x91] sm:$0xff]
        %v2452 = vld [vmem:[%s2144 + $0x99] sm:$0xff]
        %v2453 = vld [vmem:[%s2144 + $0xa9] sm:$0xff]
        %v2454 = vld [vmem:[%s2144 + $0xb1] sm:$0xff]
        %v2455 = vld [vmem:[%s2144 + $0xc1] sm:$0xff]
        %v2456 = vld [vmem:[%s2144 + $0xc9] sm:$0xff]
        %v2457 = vld [vmem:[%s2144 + $0xd9] sm:$0xff]
        %v2458 = vld [vmem:[%s2144 + $0xe1] sm:$0xff]
        %v2459 = vld [vmem:[%s2144 + $0xf1] sm:$0xff]
        %v2460 = vld [vmem:[%s2144 + $0xf9] sm:$0xff]
        %v2461 = vld [vmem:[%s2144 + $0x109] sm:$0xff]
        %v2462 = vld [vmem:[%s2144 + $0x111] sm:$0xff]
        %v2463 = vld [vmem:[%s2144 + $0x121] sm:$0xff]
        %v2464 = vld [vmem:[%s2144 + $0x129] sm:$0xff]
        %v2465 = vld [vmem:[%s2144 + $0x139] sm:$0xff]
        %v2466 = vld [vmem:[%s2144 + $0x141] sm:$0xff]
        %v2467 = vld [vmem:[%s2144 + $0x151] sm:$0xff]
        %v2468 = vld [vmem:[%s2144 + $0x159] sm:$0xff]
        %v2469 = vld [vmem:[%s2144 + $0x169] sm:$0xff]
        %v2470 = vld [vmem:[%s2144 + $0x171] sm:$0xff]
        %v2471 = vpack.c.bf16 %v2440, %v2439
        %v2472 = vpack.c.bf16 %v2442, %v2441
        %v2473 = vpack.c.bf16 %v2444, %v2443
        %v2474 = vpack.c.bf16 %v2446, %v2445
        %v2475 = vpack.c.bf16 %v2448, %v2447
        %v2476 = vpack.c.bf16 %v2450, %v2449
        %v2477 = vpack.c.bf16 %v2452, %v2451
        %v2478 = vpack.c.bf16 %v2454, %v2453
        %v2479 = vpack.c.bf16 %v2456, %v2455
        %v2480 = vpack.c.bf16 %v2458, %v2457
        %v2481 = vpack.c.bf16 %v2460, %v2459
        %v2482 = vpack.c.bf16 %v2462, %v2461
        %v2483 = vpack.c.bf16 %v2464, %v2463
        %v2484 = vpack.c.bf16 %v2466, %v2465
        %v2485 = vpack.c.bf16 %v2468, %v2467
        %v2486 = vpack.c.bf16 %v2470, %v2469
        %s2487 = scalar_lea.vmem [#allocation5], 14
        %v2488 = vld [vmem:[%s2487] sm:$0x3]
        %v2490 = vsel %vm541, %v2471, 0
        %v2493 = vsel %vm541, %v2472, 0
        %v2496 = vsel %vm541, %v2473, 0
        %v2499 = vsel %vm541, %v2474, 0
        %v2502 = vsel %vm541, %v2475, 0
        %v2505 = vsel %vm541, %v2476, 0
        %v2508 = vsel %vm541, %v2477, 0
        %v2511 = vsel %vm541, %v2478, 0
        %v2514 = vsel %vm541, %v2479, 0
        %v2517 = vsel %vm541, %v2480, 0
        %v2520 = vsel %vm541, %v2481, 0
        %v2523 = vsel %vm541, %v2482, 0
        %v2526 = vsel %vm541, %v2483, 0
        %v2529 = vsel %vm541, %v2484, 0
        %v2532 = vsel %vm541, %v2485, 0
        %v2535 = vsel %vm541, %v2486, 0
        %v2538 = vsel %vm590, %v2488, 0
        %2540 = vmatprep.subr.bf16.mxu0 0
        %2541 = vmatpush1.bf16.msra.mxu0 %v2538
        %2542 = vmatprep.subr.bf16.mxu0 0
        %2543 = vmatpush1.bf16.msra.mxu0 0
        %2544 = vmatprep.subr.bf16.mxu0 0
        %2545 = vmatpush1.bf16.msra.mxu0 0
        %2546 = vmatprep.subr.bf16.mxu0 0
        %2547 = vmatpush1.bf16.msra.mxu0 0
        %2548 = vmatprep.subr.bf16.mxu0 0
        %2549 = vmatpush1.bf16.msra.mxu0 0
        %2550 = vmatprep.subr.bf16.mxu0 0
        %2551 = vmatpush1.bf16.msra.mxu0 0
        %2552 = vmatprep.subr.bf16.mxu0 0
        %2553 = vmatpush1.bf16.msra.mxu0 0
        %2554 = vmatprep.subr.bf16.mxu0 0
        %2555 = vmatpush1.bf16.msra.mxu0 0
        %2556 = vmatprep.subr.bf16.mxu0 0
        %2557 = vmatpush1.bf16.msra.mxu0 0
        %2558 = vmatprep.subr.bf16.mxu0 0
        %2559 = vmatpush1.bf16.msra.mxu0 0
        %2560 = vmatprep.subr.bf16.mxu0 0
        %2561 = vmatpush1.bf16.msra.mxu0 0
        %2562 = vmatprep.subr.bf16.mxu0 0
        %2563 = vmatpush1.bf16.msra.mxu0 0
        %2564 = vmatprep.subr.bf16.mxu0 0
        %2565 = vmatpush1.bf16.msra.mxu0 0
        %2566 = vmatprep.subr.bf16.mxu0 0
        %2567 = vmatpush1.bf16.msra.mxu0 0
        %2568 = vmatprep.subr.bf16.mxu0 0
        %2569 = vmatpush1.bf16.msra.mxu0 0
        %2570 = vmatprep.subr.bf16.mxu0 0
        %2571 = vmatpush1.bf16.msra.mxu0 0
        %2572 = vmatprep.mubr.bf16.mxu0 0
        %2573 = vmatmul.mubr.bf16.gmra.mrb[0].mxu0 %v2490
        %v2574 = vpop.f32.mrb[0].mxu0
        %v2575 = vadd.f32 0.0, %v2574
        %v2576 = vpop.f32.mrb[0].mxu0
        %v2577 = vpop.f32.mrb[0].mxu0
        %v2578 = vadd.f32 0.0, %v2577
        %v2579 = vpop.f32.mrb[0].mxu0
        %2580 = vmatprep.mubr.bf16.mxu0 0
        %2581 = vmatmul.mubr.bf16.gmra.mrb[0].mxu0 %v2493
        %v2582 = vpop.f32.mrb[0].mxu0
        %v2583 = vadd.f32 0.0, %v2582
        %v2584 = vpop.f32.mrb[0].mxu0
        %v2585 = vpop.f32.mrb[0].mxu0
        %v2586 = vadd.f32 0.0, %v2585
        %v2587 = vpop.f32.mrb[0].mxu0
        %2588 = vmatprep.mubr.bf16.mxu0 0
        %2589 = vmatmul.mubr.bf16.gmra.mrb[0].mxu0 %v2496
        %v2590 = vpop.f32.mrb[0].mxu0
        %v2591 = vadd.f32 0.0, %v2590
        %v2592 = vpop.f32.mrb[0].mxu0
        %v2593 = vpop.f32.mrb[0].mxu0
        %v2594 = vadd.f32 0.0, %v2593
        %v2595 = vpop.f32.mrb[0].mxu0
        %2596 = vmatprep.mubr.bf16.mxu0 0
        %2597 = vmatmul.mubr.bf16.gmra.mrb[0].mxu0 %v2499
        %v2598 = vpop.f32.mrb[0].mxu0
        %v2599 = vadd.f32 0.0, %v2598
        %v2600 = vpop.f32.mrb[0].mxu0
        %v2601 = vpop.f32.mrb[0].mxu0
        %v2602 = vadd.f32 0.0, %v2601
        %v2603 = vpop.f32.mrb[0].mxu0
        %2604 = vmatprep.mubr.bf16.mxu0 0
        %2605 = vmatmul.mubr.bf16.gmra.mrb[0].mxu0 %v2502
        %v2606 = vpop.f32.mrb[0].mxu0
        %v2607 = vadd.f32 0.0, %v2606
        %v2608 = vpop.f32.mrb[0].mxu0
        %v2609 = vpop.f32.mrb[0].mxu0
        %v2610 = vadd.f32 0.0, %v2609
        %v2611 = vpop.f32.mrb[0].mxu0
        %2612 = vmatprep.mubr.bf16.mxu0 0
        %2613 = vmatmul.mubr.bf16.gmra.mrb[0].mxu0 %v2505
        %v2614 = vpop.f32.mrb[0].mxu0
        %v2615 = vadd.f32 0.0, %v2614
        %v2616 = vpop.f32.mrb[0].mxu0
        %v2617 = vpop.f32.mrb[0].mxu0
        %v2618 = vadd.f32 0.0, %v2617
        %v2619 = vpop.f32.mrb[0].mxu0
        %2620 = vmatprep.mubr.bf16.mxu0 0
        %2621 = vmatmul.mubr.bf16.gmra.mrb[0].mxu0 %v2508
        %v2622 = vpop.f32.mrb[0].mxu0
        %v2623 = vadd.f32 0.0, %v2622
        %v2624 = vpop.f32.mrb[0].mxu0
        %v2625 = vpop.f32.mrb[0].mxu0
        %v2626 = vadd.f32 0.0, %v2625
        %v2627 = vpop.f32.mrb[0].mxu0
        %2628 = vmatprep.mubr.bf16.mxu0 0
        %2629 = vmatmul.mubr.bf16.gmra.mrb[0].mxu0 %v2511
        %v2630 = vpop.f32.mrb[0].mxu0
        %v2631 = vadd.f32 0.0, %v2630
        %v2632 = vpop.f32.mrb[0].mxu0
        %v2633 = vpop.f32.mrb[0].mxu0
        %v2634 = vadd.f32 0.0, %v2633
        %v2635 = vpop.f32.mrb[0].mxu0
        %2636 = vmatprep.mubr.bf16.mxu0 0
        %2637 = vmatmul.mubr.bf16.gmra.mrb[0].mxu0 %v2514
        %v2638 = vpop.f32.mrb[0].mxu0
        %v2639 = vadd.f32 0.0, %v2638
        %v2640 = vpop.f32.mrb[0].mxu0
        %v2641 = vpop.f32.mrb[0].mxu0
        %v2642 = vadd.f32 0.0, %v2641
        %v2643 = vpop.f32.mrb[0].mxu0
        %2644 = vmatprep.mubr.bf16.mxu0 0
        %2645 = vmatmul.mubr.bf16.gmra.mrb[0].mxu0 %v2517
        %v2646 = vpop.f32.mrb[0].mxu0
        %v2647 = vadd.f32 0.0, %v2646
        %v2648 = vpop.f32.mrb[0].mxu0
        %v2649 = vpop.f32.mrb[0].mxu0
        %v2650 = vadd.f32 0.0, %v2649
        %v2651 = vpop.f32.mrb[0].mxu0
        %2652 = vmatprep.mubr.bf16.mxu0 0
        %2653 = vmatmul.mubr.bf16.gmra.mrb[0].mxu0 %v2520
        %v2654 = vpop.f32.mrb[0].mxu0
        %v2655 = vadd.f32 0.0, %v2654
        %v2656 = vpop.f32.mrb[0].mxu0
        %v2657 = vpop.f32.mrb[0].mxu0
        %v2658 = vadd.f32 0.0, %v2657
        %v2659 = vpop.f32.mrb[0].mxu0
        %2660 = vmatprep.mubr.bf16.mxu0 0
        %2661 = vmatmul.mubr.bf16.gmra.mrb[0].mxu0 %v2523
        %v2662 = vpop.f32.mrb[0].mxu0
        %v2663 = vadd.f32 0.0, %v2662
        %v2664 = vpop.f32.mrb[0].mxu0
        %v2665 = vpop.f32.mrb[0].mxu0
        %v2666 = vadd.f32 0.0, %v2665
        %v2667 = vpop.f32.mrb[0].mxu0
        %2668 = vmatprep.mubr.bf16.mxu0 0
        %2669 = vmatmul.mubr.bf16.gmra.mrb[0].mxu0 %v2526
        %v2670 = vpop.f32.mrb[0].mxu0
        %v2671 = vadd.f32 0.0, %v2670
        %v2672 = vpop.f32.mrb[0].mxu0
        %v2673 = vpop.f32.mrb[0].mxu0
        %v2674 = vadd.f32 0.0, %v2673
        %v2675 = vpop.f32.mrb[0].mxu0
        %2676 = vmatprep.mubr.bf16.mxu0 0
        %2677 = vmatmul.mubr.bf16.gmra.mrb[0].mxu0 %v2529
        %v2678 = vpop.f32.mrb[0].mxu0
        %v2679 = vadd.f32 0.0, %v2678
        %v2680 = vpop.f32.mrb[0].mxu0
        %v2681 = vpop.f32.mrb[0].mxu0
        %v2682 = vadd.f32 0.0, %v2681
        %v2683 = vpop.f32.mrb[0].mxu0
        %2684 = vmatprep.mubr.bf16.mxu0 0
        %2685 = vmatmul.mubr.bf16.gmra.mrb[0].mxu0 %v2532
        %v2686 = vpop.f32.mrb[0].mxu0
        %v2687 = vadd.f32 0.0, %v2686
        %v2688 = vpop.f32.mrb[0].mxu0
        %v2689 = vpop.f32.mrb[0].mxu0
        %v2690 = vadd.f32 0.0, %v2689
        %v2691 = vpop.f32.mrb[0].mxu0
        %2692 = vmatprep.mubr.bf16.mxu0 0
        %2693 = vmatmul.mubr.bf16.gmra.mrb[0].mxu0 %v2535
        %v2694 = vpop.f32.mrb[0].mxu0
        %v2695 = vadd.f32 0.0, %v2694
        %v2696 = vpop.f32.mrb[0].mxu0
        %v2697 = vpop.f32.mrb[0].mxu0
        %v2698 = vadd.f32 0.0, %v2697
        %v2699 = vpop.f32.mrb[0].mxu0
        %2700 = vdwg.mxu0
        %v2701 = vadd.f32 %v2407, %v2575
        %v2702 = vadd.f32 %v2408, %v2578
        %v2703 = vadd.f32 %v2409, %v2583
        %v2704 = vadd.f32 %v2410, %v2586
        %v2705 = vadd.f32 %v2411, %v2591
        %v2706 = vadd.f32 %v2412, %v2594
        %v2707 = vadd.f32 %v2413, %v2599
        %v2708 = vadd.f32 %v2414, %v2602
        %v2709 = vadd.f32 %v2415, %v2607
        %v2710 = vadd.f32 %v2416, %v2610
        %v2711 = vadd.f32 %v2417, %v2615
        %v2712 = vadd.f32 %v2418, %v2618
        %v2713 = vadd.f32 %v2419, %v2623
        %v2714 = vadd.f32 %v2420, %v2626
        %v2715 = vadd.f32 %v2421, %v2631
        %v2716 = vadd.f32 %v2422, %v2634
        %v2717 = vadd.f32 %v2423, %v2639
        %v2718 = vadd.f32 %v2424, %v2642
        %v2719 = vadd.f32 %v2425, %v2647
        %v2720 = vadd.f32 %v2426, %v2650
        %v2721 = vadd.f32 %v2427, %v2655
        %v2722 = vadd.f32 %v2428, %v2658
        %v2723 = vadd.f32 %v2429, %v2663
        %v2724 = vadd.f32 %v2430, %v2666
        %v2725 = vadd.f32 %v2431, %v2671
        %v2726 = vadd.f32 %v2432, %v2674
        %v2727 = vadd.f32 %v2433, %v2679
        %v2728 = vadd.f32 %v2434, %v2682
        %v2729 = vadd.f32 %v2435, %v2687
        %v2730 = vadd.f32 %v2436, %v2690
        %v2731 = vadd.f32 %v2437, %v2695
        %v2732 = vadd.f32 %v2438, %v2698
        %v2733 = vld [vmem:[%s2144 + $0x2] sm:$0xff]
        %v2734 = vld [vmem:[%s2144 + $0xa] sm:$0xff]
        %v2735 = vld [vmem:[%s2144 + $0x1a] sm:$0xff]
        %v2736 = vld [vmem:[%s2144 + $0x22] sm:$0xff]
        %v2737 = vld [vmem:[%s2144 + $0x32] sm:$0xff]
        %v2738 = vld [vmem:[%s2144 + $0x3a] sm:$0xff]
        %v2739 = vld [vmem:[%s2144 + $0x4a] sm:$0xff]
        %v2740 = vld [vmem:[%s2144 + $0x52] sm:$0xff]
        %v2741 = vld [vmem:[%s2144 + $0x62] sm:$0xff]
        %v2742 = vld [vmem:[%s2144 + $0x6a] sm:$0xff]
        %v2743 = vld [vmem:[%s2144 + $0x7a] sm:$0xff]
        %v2744 = vld [vmem:[%s2144 + $0x82] sm:$0xff]
        %v2745 = vld [vmem:[%s2144 + $0x92] sm:$0xff]
        %v2746 = vld [vmem:[%s2144 + $0x9a] sm:$0xff]
        %v2747 = vld [vmem:[%s2144 + $0xaa] sm:$0xff]
        %v2748 = vld [vmem:[%s2144 + $0xb2] sm:$0xff]
        %v2749 = vld [vmem:[%s2144 + $0xc2] sm:$0xff]
        %v2750 = vld [vmem:[%s2144 + $0xca] sm:$0xff]
        %v2751 = vld [vmem:[%s2144 + $0xda] sm:$0xff]
        %v2752 = vld [vmem:[%s2144 + $0xe2] sm:$0xff]
        %v2753 = vld [vmem:[%s2144 + $0xf2] sm:$0xff]
        %v2754 = vld [vmem:[%s2144 + $0xfa] sm:$0xff]
        %v2755 = vld [vmem:[%s2144 + $0x10a] sm:$0xff]
        %v2756 = vld [vmem:[%s2144 + $0x112] sm:$0xff]
        %v2757 = vld [vmem:[%s2144 + $0x122] sm:$0xff]
        %v2758 = vld [vmem:[%s2144 + $0x12a] sm:$0xff]
        %v2759 = vld [vmem:[%s2144 + $0x13a] sm:$0xff]
        %v2760 = vld [vmem:[%s2144 + $0x142] sm:$0xff]
        %v2761 = vld [vmem:[%s2144 + $0x152] sm:$0xff]
        %v2762 = vld [vmem:[%s2144 + $0x15a] sm:$0xff]
        %v2763 = vld [vmem:[%s2144 + $0x16a] sm:$0xff]
        %v2764 = vld [vmem:[%s2144 + $0x172] sm:$0xff]
        %v2765 = vpack.c.bf16 %v2734, %v2733
        %v2766 = vpack.c.bf16 %v2736, %v2735
        %v2767 = vpack.c.bf16 %v2738, %v2737
        %v2768 = vpack.c.bf16 %v2740, %v2739
        %v2769 = vpack.c.bf16 %v2742, %v2741
        %v2770 = vpack.c.bf16 %v2744, %v2743
        %v2771 = vpack.c.bf16 %v2746, %v2745
        %v2772 = vpack.c.bf16 %v2748, %v2747
        %v2773 = vpack.c.bf16 %v2750, %v2749
        %v2774 = vpack.c.bf16 %v2752, %v2751
        %v2775 = vpack.c.bf16 %v2754, %v2753
        %v2776 = vpack.c.bf16 %v2756, %v2755
        %v2777 = vpack.c.bf16 %v2758, %v2757
        %v2778 = vpack.c.bf16 %v2760, %v2759
        %v2779 = vpack.c.bf16 %v2762, %v2761
        %v2780 = vpack.c.bf16 %v2764, %v2763
        %s2781 = scalar_lea.vmem [#allocation5], 16
        %v2782 = vld [vmem:[%s2781] sm:$0x3]
        %v2784 = vsel %vm541, %v2765, 0
        %v2787 = vsel %vm541, %v2766, 0
        %v2790 = vsel %vm541, %v2767, 0
        %v2793 = vsel %vm541, %v2768, 0
        %v2796 = vsel %vm541, %v2769, 0
        %v2799 = vsel %vm541, %v2770, 0
        %v2802 = vsel %vm541, %v2771, 0
        %v2805 = vsel %vm541, %v2772, 0
        %v2808 = vsel %vm541, %v2773, 0
        %v2811 = vsel %vm541, %v2774, 0
        %v2814 = vsel %vm541, %v2775, 0
        %v2817 = vsel %vm541, %v2776, 0
        %v2820 = vsel %vm541, %v2777, 0
        %v2823 = vsel %vm541, %v2778, 0
        %v2826 = vsel %vm541, %v2779, 0
        %v2829 = vsel %vm541, %v2780, 0
        %v2832 = vsel %vm590, %v2782, 0
        %2834 = vmatprep.subr.bf16.mxu0 0
        %2835 = vmatpush1.bf16.msra.mxu0 %v2832
        %2836 = vmatprep.subr.bf16.mxu0 0
        %2837 = vmatpush1.bf16.msra.mxu0 0
        %2838 = vmatprep.subr.bf16.mxu0 0
        %2839 = vmatpush1.bf16.msra.mxu0 0
        %2840 = vmatprep.subr.bf16.mxu0 0
        %2841 = vmatpush1.bf16.msra.mxu0 0
        %2842 = vmatprep.subr.bf16.mxu0 0
        %2843 = vmatpush1.bf16.msra.mxu0 0
        %2844 = vmatprep.subr.bf16.mxu0 0
        %2845 = vmatpush1.bf16.msra.mxu0 0
        %2846 = vmatprep.subr.bf16.mxu0 0
        %2847 = vmatpush1.bf16.msra.mxu0 0
        %2848 = vmatprep.subr.bf16.mxu0 0
        %2849 = vmatpush1.bf16.msra.mxu0 0
        %2850 = vmatprep.subr.bf16.mxu0 0
        %2851 = vmatpush1.bf16.msra.mxu0 0
        %2852 = vmatprep.subr.bf16.mxu0 0
        %2853 = vmatpush1.bf16.msra.mxu0 0
        %2854 = vmatprep.subr.bf16.mxu0 0
        %2855 = vmatpush1.bf16.msra.mxu0 0
        %2856 = vmatprep.subr.bf16.mxu0 0
        %2857 = vmatpush1.bf16.msra.mxu0 0
        %2858 = vmatprep.subr.bf16.mxu0 0
        %2859 = vmatpush1.bf16.msra.mxu0 0
        %2860 = vmatprep.subr.bf16.mxu0 0
        %2861 = vmatpush1.bf16.msra.mxu0 0
        %2862 = vmatprep.subr.bf16.mxu0 0
        %2863 = vmatpush1.bf16.msra.mxu0 0
        %2864 = vmatprep.subr.bf16.mxu0 0
        %2865 = vmatpush1.bf16.msra.mxu0 0
        %2866 = vmatprep.mubr.bf16.mxu0 0
        %2867 = vmatmul.mubr.bf16.gmra.mrb[0].mxu0 %v2784
        %v2868 = vpop.f32.mrb[0].mxu0
        %v2869 = vadd.f32 0.0, %v2868
        %v2870 = vpop.f32.mrb[0].mxu0
        %v2871 = vpop.f32.mrb[0].mxu0
        %v2872 = vadd.f32 0.0, %v2871
        %v2873 = vpop.f32.mrb[0].mxu0
        %2874 = vmatprep.mubr.bf16.mxu0 0
        %2875 = vmatmul.mubr.bf16.gmra.mrb[0].mxu0 %v2787
        %v2876 = vpop.f32.mrb[0].mxu0
        %v2877 = vadd.f32 0.0, %v2876
        %v2878 = vpop.f32.mrb[0].mxu0
        %v2879 = vpop.f32.mrb[0].mxu0
        %v2880 = vadd.f32 0.0, %v2879
        %v2881 = vpop.f32.mrb[0].mxu0
        %2882 = vmatprep.mubr.bf16.mxu0 0
        %2883 = vmatmul.mubr.bf16.gmra.mrb[0].mxu0 %v2790
        %v2884 = vpop.f32.mrb[0].mxu0
        %v2885 = vadd.f32 0.0, %v2884
        %v2886 = vpop.f32.mrb[0].mxu0
        %v2887 = vpop.f32.mrb[0].mxu0
        %v2888 = vadd.f32 0.0, %v2887
        %v2889 = vpop.f32.mrb[0].mxu0
        %2890 = vmatprep.mubr.bf16.mxu0 0
        %2891 = vmatmul.mubr.bf16.gmra.mrb[0].mxu0 %v2793
        %v2892 = vpop.f32.mrb[0].mxu0
        %v2893 = vadd.f32 0.0, %v2892
        %v2894 = vpop.f32.mrb[0].mxu0
        %v2895 = vpop.f32.mrb[0].mxu0
        %v2896 = vadd.f32 0.0, %v2895
        %v2897 = vpop.f32.mrb[0].mxu0
        %2898 = vmatprep.mubr.bf16.mxu0 0
        %2899 = vmatmul.mubr.bf16.gmra.mrb[0].mxu0 %v2796
        %v2900 = vpop.f32.mrb[0].mxu0
        %v2901 = vadd.f32 0.0, %v2900
        %v2902 = vpop.f32.mrb[0].mxu0
        %v2903 = vpop.f32.mrb[0].mxu0
        %v2904 = vadd.f32 0.0, %v2903
        %v2905 = vpop.f32.mrb[0].mxu0
        %2906 = vmatprep.mubr.bf16.mxu0 0
        %2907 = vmatmul.mubr.bf16.gmra.mrb[0].mxu0 %v2799
        %v2908 = vpop.f32.mrb[0].mxu0
        %v2909 = vadd.f32 0.0, %v2908
        %v2910 = vpop.f32.mrb[0].mxu0
        %v2911 = vpop.f32.mrb[0].mxu0
        %v2912 = vadd.f32 0.0, %v2911
        %v2913 = vpop.f32.mrb[0].mxu0
        %2914 = vmatprep.mubr.bf16.mxu0 0
        %2915 = vmatmul.mubr.bf16.gmra.mrb[0].mxu0 %v2802
        %v2916 = vpop.f32.mrb[0].mxu0
        %v2917 = vadd.f32 0.0, %v2916
        %v2918 = vpop.f32.mrb[0].mxu0
        %v2919 = vpop.f32.mrb[0].mxu0
        %v2920 = vadd.f32 0.0, %v2919
        %v2921 = vpop.f32.mrb[0].mxu0
        %2922 = vmatprep.mubr.bf16.mxu0 0
        %2923 = vmatmul.mubr.bf16.gmra.mrb[0].mxu0 %v2805
        %v2924 = vpop.f32.mrb[0].mxu0
        %v2925 = vadd.f32 0.0, %v2924
        %v2926 = vpop.f32.mrb[0].mxu0
        %v2927 = vpop.f32.mrb[0].mxu0
        %v2928 = vadd.f32 0.0, %v2927
        %v2929 = vpop.f32.mrb[0].mxu0
        %2930 = vmatprep.mubr.bf16.mxu0 0
        %2931 = vmatmul.mubr.bf16.gmra.mrb[0].mxu0 %v2808
        %v2932 = vpop.f32.mrb[0].mxu0
        %v2933 = vadd.f32 0.0, %v2932
        %v2934 = vpop.f32.mrb[0].mxu0
        %v2935 = vpop.f32.mrb[0].mxu0
        %v2936 = vadd.f32 0.0, %v2935
        %v2937 = vpop.f32.mrb[0].mxu0
        %2938 = vmatprep.mubr.bf16.mxu0 0
        %2939 = vmatmul.mubr.bf16.gmra.mrb[0].mxu0 %v2811
        %v2940 = vpop.f32.mrb[0].mxu0
        %v2941 = vadd.f32 0.0, %v2940
        %v2942 = vpop.f32.mrb[0].mxu0
        %v2943 = vpop.f32.mrb[0].mxu0
        %v2944 = vadd.f32 0.0, %v2943
        %v2945 = vpop.f32.mrb[0].mxu0
        %2946 = vmatprep.mubr.bf16.mxu0 0
        %2947 = vmatmul.mubr.bf16.gmra.mrb[0].mxu0 %v2814
        %v2948 = vpop.f32.mrb[0].mxu0
        %v2949 = vadd.f32 0.0, %v2948
        %v2950 = vpop.f32.mrb[0].mxu0
        %v2951 = vpop.f32.mrb[0].mxu0
        %v2952 = vadd.f32 0.0, %v2951
        %v2953 = vpop.f32.mrb[0].mxu0
        %2954 = vmatprep.mubr.bf16.mxu0 0
        %2955 = vmatmul.mubr.bf16.gmra.mrb[0].mxu0 %v2817
        %v2956 = vpop.f32.mrb[0].mxu0
        %v2957 = vadd.f32 0.0, %v2956
        %v2958 = vpop.f32.mrb[0].mxu0
        %v2959 = vpop.f32.mrb[0].mxu0
        %v2960 = vadd.f32 0.0, %v2959
        %v2961 = vpop.f32.mrb[0].mxu0
        %2962 = vmatprep.mubr.bf16.mxu0 0
        %2963 = vmatmul.mubr.bf16.gmra.mrb[0].mxu0 %v2820
        %v2964 = vpop.f32.mrb[0].mxu0
        %v2965 = vadd.f32 0.0, %v2964
        %v2966 = vpop.f32.mrb[0].mxu0
        %v2967 = vpop.f32.mrb[0].mxu0
        %v2968 = vadd.f32 0.0, %v2967
        %v2969 = vpop.f32.mrb[0].mxu0
        %2970 = vmatprep.mubr.bf16.mxu0 0
        %2971 = vmatmul.mubr.bf16.gmra.mrb[0].mxu0 %v2823
        %v2972 = vpop.f32.mrb[0].mxu0
        %v2973 = vadd.f32 0.0, %v2972
        %v2974 = vpop.f32.mrb[0].mxu0
        %v2975 = vpop.f32.mrb[0].mxu0
        %v2976 = vadd.f32 0.0, %v2975
        %v2977 = vpop.f32.mrb[0].mxu0
        %2978 = vmatprep.mubr.bf16.mxu0 0
        %2979 = vmatmul.mubr.bf16.gmra.mrb[0].mxu0 %v2826
        %v2980 = vpop.f32.mrb[0].mxu0
        %v2981 = vadd.f32 0.0, %v2980
        %v2982 = vpop.f32.mrb[0].mxu0
        %v2983 = vpop.f32.mrb[0].mxu0
        %v2984 = vadd.f32 0.0, %v2983
        %v2985 = vpop.f32.mrb[0].mxu0
        %2986 = vmatprep.mubr.bf16.mxu0 0
        %2987 = vmatmul.mubr.bf16.gmra.mrb[0].mxu0 %v2829
        %v2988 = vpop.f32.mrb[0].mxu0
        %v2989 = vadd.f32 0.0, %v2988
        %v2990 = vpop.f32.mrb[0].mxu0
        %v2991 = vpop.f32.mrb[0].mxu0
        %v2992 = vadd.f32 0.0, %v2991
        %v2993 = vpop.f32.mrb[0].mxu0
        %2994 = vdwg.mxu0
        %v2995 = vadd.f32 %v2701, %v2869
        %v2996 = vadd.f32 %v2702, %v2872
        %v2997 = vadd.f32 %v2703, %v2877
        %v2998 = vadd.f32 %v2704, %v2880
        %v2999 = vadd.f32 %v2705, %v2885
        %v3000 = vadd.f32 %v2706, %v2888
        %v3001 = vadd.f32 %v2707, %v2893
        %v3002 = vadd.f32 %v2708, %v2896
        %v3003 = vadd.f32 %v2709, %v2901
        %v3004 = vadd.f32 %v2710, %v2904
        %v3005 = vadd.f32 %v2711, %v2909
        %v3006 = vadd.f32 %v2712, %v2912
        %v3007 = vadd.f32 %v2713, %v2917
        %v3008 = vadd.f32 %v2714, %v2920
        %v3009 = vadd.f32 %v2715, %v2925
        %v3010 = vadd.f32 %v2716, %v2928
        %v3011 = vadd.f32 %v2717, %v2933
        %v3012 = vadd.f32 %v2718, %v2936
        %v3013 = vadd.f32 %v2719, %v2941
        %v3014 = vadd.f32 %v2720, %v2944
        %v3015 = vadd.f32 %v2721, %v2949
        %v3016 = vadd.f32 %v2722, %v2952
        %v3017 = vadd.f32 %v2723, %v2957
        %v3018 = vadd.f32 %v2724, %v2960
        %v3019 = vadd.f32 %v2725, %v2965
        %v3020 = vadd.f32 %v2726, %v2968
        %v3021 = vadd.f32 %v2727, %v2973
        %v3022 = vadd.f32 %v2728, %v2976
        %v3023 = vadd.f32 %v2729, %v2981
        %v3024 = vadd.f32 %v2730, %v2984
        %v3025 = vadd.f32 %v2731, %v2989
        %v3026 = vadd.f32 %v2732, %v2992
        %v3027 = vld [vmem:[#allocation7] sm:$0x1]
        %v3029 = vlaneseq
        %v3030 = vshrl.u32 %v3029, 7
        %v3031 = vsub.s32 0, %v3030
        %v3032 = vrot.slane %v3027, %v3031
        %v3034 = vadd.f32 %v2995, %v3032
        %v3035 = vadd.f32 %v2996, %v3032
        %v3036 = vadd.f32 %v2997, %v3032
        %v3037 = vadd.f32 %v2998, %v3032
        %v3038 = vadd.f32 %v2999, %v3032
        %v3039 = vadd.f32 %v3000, %v3032
        %v3040 = vadd.f32 %v3001, %v3032
        %v3041 = vadd.f32 %v3002, %v3032
        %v3042 = vadd.f32 %v3003, %v3032
        %v3043 = vadd.f32 %v3004, %v3032
        %v3044 = vadd.f32 %v3005, %v3032
        %v3045 = vadd.f32 %v3006, %v3032
        %v3046 = vadd.f32 %v3007, %v3032
        %v3047 = vadd.f32 %v3008, %v3032
        %v3048 = vadd.f32 %v3009, %v3032
        %v3049 = vadd.f32 %v3010, %v3032
        %v3050 = vadd.f32 %v3011, %v3032
        %v3051 = vadd.f32 %v3012, %v3032
        %v3052 = vadd.f32 %v3013, %v3032
        %v3053 = vadd.f32 %v3014, %v3032
        %v3054 = vadd.f32 %v3015, %v3032
        %v3055 = vadd.f32 %v3016, %v3032
        %v3056 = vadd.f32 %v3017, %v3032
        %v3057 = vadd.f32 %v3018, %v3032
        %v3058 = vadd.f32 %v3019, %v3032
        %v3059 = vadd.f32 %v3020, %v3032
        %v3060 = vadd.f32 %v3021, %v3032
        %v3061 = vadd.f32 %v3022, %v3032
        %v3062 = vadd.f32 %v3023, %v3032
        %v3063 = vadd.f32 %v3024, %v3032
        %v3064 = vadd.f32 %v3025, %v3032
        %v3065 = vadd.f32 %v3026, %v3032
        %vm3066 = vcmp.ge.f32.partialorder %v3034, 0.0
        %vm3067 = vcmp.ge.f32.partialorder %v3035, 0.0
        %vm3068 = vcmp.ge.f32.partialorder %v3036, 0.0
        %vm3069 = vcmp.ge.f32.partialorder %v3037, 0.0
        %vm3070 = vcmp.ge.f32.partialorder %v3038, 0.0
        %vm3071 = vcmp.ge.f32.partialorder %v3039, 0.0
        %vm3072 = vcmp.ge.f32.partialorder %v3040, 0.0
        %vm3073 = vcmp.ge.f32.partialorder %v3041, 0.0
        %vm3074 = vcmp.ge.f32.partialorder %v3042, 0.0
        %vm3075 = vcmp.ge.f32.partialorder %v3043, 0.0
        %vm3076 = vcmp.ge.f32.partialorder %v3044, 0.0
        %vm3077 = vcmp.ge.f32.partialorder %v3045, 0.0
        %vm3078 = vcmp.ge.f32.partialorder %v3046, 0.0
        %vm3079 = vcmp.ge.f32.partialorder %v3047, 0.0
        %vm3080 = vcmp.ge.f32.partialorder %v3048, 0.0
        %vm3081 = vcmp.ge.f32.partialorder %v3049, 0.0
        %vm3082 = vcmp.ge.f32.partialorder %v3050, 0.0
        %vm3083 = vcmp.ge.f32.partialorder %v3051, 0.0
        %vm3084 = vcmp.ge.f32.partialorder %v3052, 0.0
        %vm3085 = vcmp.ge.f32.partialorder %v3053, 0.0
        %vm3086 = vcmp.ge.f32.partialorder %v3054, 0.0
        %vm3087 = vcmp.ge.f32.partialorder %v3055, 0.0
        %vm3088 = vcmp.ge.f32.partialorder %v3056, 0.0
        %vm3089 = vcmp.ge.f32.partialorder %v3057, 0.0
        %vm3090 = vcmp.ge.f32.partialorder %v3058, 0.0
        %vm3091 = vcmp.ge.f32.partialorder %v3059, 0.0
        %vm3092 = vcmp.ge.f32.partialorder %v3060, 0.0
        %vm3093 = vcmp.ge.f32.partialorder %v3061, 0.0
        %vm3094 = vcmp.ge.f32.partialorder %v3062, 0.0
        %vm3095 = vcmp.ge.f32.partialorder %v3063, 0.0
        %vm3096 = vcmp.ge.f32.partialorder %v3064, 0.0
        %vm3097 = vcmp.ge.f32.partialorder %v3065, 0.0
        %v3098 = vmul.f32 %v3034, 0.2
        %v3099 = vmul.f32 %v3035, 0.2
        %v3100 = vmul.f32 %v3036, 0.2
        %v3101 = vmul.f32 %v3037, 0.2
        %v3102 = vmul.f32 %v3038, 0.2
        %v3103 = vmul.f32 %v3039, 0.2
        %v3104 = vmul.f32 %v3040, 0.2
        %v3105 = vmul.f32 %v3041, 0.2
        %v3106 = vmul.f32 %v3042, 0.2
        %v3107 = vmul.f32 %v3043, 0.2
        %v3108 = vmul.f32 %v3044, 0.2
        %v3109 = vmul.f32 %v3045, 0.2
        %v3110 = vmul.f32 %v3046, 0.2
        %v3111 = vmul.f32 %v3047, 0.2
        %v3112 = vmul.f32 %v3048, 0.2
        %v3113 = vmul.f32 %v3049, 0.2
        %v3114 = vmul.f32 %v3050, 0.2
        %v3115 = vmul.f32 %v3051, 0.2
        %v3116 = vmul.f32 %v3052, 0.2
        %v3117 = vmul.f32 %v3053, 0.2
        %v3118 = vmul.f32 %v3054, 0.2
        %v3119 = vmul.f32 %v3055, 0.2
        %v3120 = vmul.f32 %v3056, 0.2
        %v3121 = vmul.f32 %v3057, 0.2
        %v3122 = vmul.f32 %v3058, 0.2
        %v3123 = vmul.f32 %v3059, 0.2
        %v3124 = vmul.f32 %v3060, 0.2
        %v3125 = vmul.f32 %v3061, 0.2
        %v3126 = vmul.f32 %v3062, 0.2
        %v3127 = vmul.f32 %v3063, 0.2
        %v3128 = vmul.f32 %v3064, 0.2
        %v3129 = vmul.f32 %v3065, 0.2
        %v3130 = vsel %vm3066, %v3034, %v3098
        %v3131 = vsel %vm3067, %v3035, %v3099
        %v3132 = vsel %vm3068, %v3036, %v3100
        %v3133 = vsel %vm3069, %v3037, %v3101
        %v3134 = vsel %vm3070, %v3038, %v3102
        %v3135 = vsel %vm3071, %v3039, %v3103
        %v3136 = vsel %vm3072, %v3040, %v3104
        %v3137 = vsel %vm3073, %v3041, %v3105
        %v3138 = vsel %vm3074, %v3042, %v3106
        %v3139 = vsel %vm3075, %v3043, %v3107
        %v3140 = vsel %vm3076, %v3044, %v3108
        %v3141 = vsel %vm3077, %v3045, %v3109
        %v3142 = vsel %vm3078, %v3046, %v3110
        %v3143 = vsel %vm3079, %v3047, %v3111
        %v3144 = vsel %vm3080, %v3048, %v3112
        %v3145 = vsel %vm3081, %v3049, %v3113
        %v3146 = vsel %vm3082, %v3050, %v3114
        %v3147 = vsel %vm3083, %v3051, %v3115
        %v3148 = vsel %vm3084, %v3052, %v3116
        %v3149 = vsel %vm3085, %v3053, %v3117
        %v3150 = vsel %vm3086, %v3054, %v3118
        %v3151 = vsel %vm3087, %v3055, %v3119
        %v3152 = vsel %vm3088, %v3056, %v3120
        %v3153 = vsel %vm3089, %v3057, %v3121
        %v3154 = vsel %vm3090, %v3058, %v3122
        %v3155 = vsel %vm3091, %v3059, %v3123
        %v3156 = vsel %vm3092, %v3060, %v3124
        %v3157 = vsel %vm3093, %v3061, %v3125
        %v3158 = vsel %vm3094, %v3062, %v3126
        %v3159 = vsel %vm3095, %v3063, %v3127
        %v3160 = vsel %vm3096, %v3064, %v3128
        %v3161 = vsel %vm3097, %v3065, %v3129
        %v3162 = vsel %vm541, %v3130, 0.0
        %v3163 = vsel %vm541, %v3131, 0.0
        %v3164 = vadd.f32 %v3162, %v3163
        %v3165 = vsel %vm541, %v3132, 0.0
        %v3166 = vadd.f32 %v3164, %v3165
        %v3167 = vsel %vm541, %v3133, 0.0
        %v3168 = vadd.f32 %v3166, %v3167
        %v3169 = vsel %vm541, %v3134, 0.0
        %v3170 = vadd.f32 %v3168, %v3169
        %v3171 = vsel %vm541, %v3135, 0.0
        %v3172 = vadd.f32 %v3170, %v3171
        %v3173 = vsel %vm541, %v3136, 0.0
        %v3174 = vadd.f32 %v3172, %v3173
        %v3175 = vsel %vm541, %v3137, 0.0
        %v3176 = vadd.f32 %v3174, %v3175
        %v3177 = vsel %vm541, %v3138, 0.0
        %v3178 = vadd.f32 %v3176, %v3177
        %v3179 = vsel %vm541, %v3139, 0.0
        %v3180 = vadd.f32 %v3178, %v3179
        %v3181 = vsel %vm541, %v3140, 0.0
        %v3182 = vadd.f32 %v3180, %v3181
        %v3183 = vsel %vm541, %v3141, 0.0
        %v3184 = vadd.f32 %v3182, %v3183
        %v3185 = vsel %vm541, %v3142, 0.0
        %v3186 = vadd.f32 %v3184, %v3185
        %v3187 = vsel %vm541, %v3143, 0.0
        %v3188 = vadd.f32 %v3186, %v3187
        %v3189 = vsel %vm541, %v3144, 0.0
        %v3190 = vadd.f32 %v3188, %v3189
        %v3191 = vsel %vm541, %v3145, 0.0
        %v3192 = vadd.f32 %v3190, %v3191
        %v3193 = vsel %vm541, %v3146, 0.0
        %v3194 = vadd.f32 %v3192, %v3193
        %v3195 = vsel %vm541, %v3147, 0.0
        %v3196 = vadd.f32 %v3194, %v3195
        %v3197 = vsel %vm541, %v3148, 0.0
        %v3198 = vadd.f32 %v3196, %v3197
        %v3199 = vsel %vm541, %v3149, 0.0
        %v3200 = vadd.f32 %v3198, %v3199
        %v3201 = vsel %vm541, %v3150, 0.0
        %v3202 = vadd.f32 %v3200, %v3201
        %v3203 = vsel %vm541, %v3151, 0.0
        %v3204 = vadd.f32 %v3202, %v3203
        %v3205 = vsel %vm541, %v3152, 0.0
        %v3206 = vadd.f32 %v3204, %v3205
        %v3207 = vsel %vm541, %v3153, 0.0
        %v3208 = vadd.f32 %v3206, %v3207
        %v3209 = vsel %vm541, %v3154, 0.0
        %v3210 = vadd.f32 %v3208, %v3209
        %v3211 = vsel %vm541, %v3155, 0.0
        %v3212 = vadd.f32 %v3210, %v3211
        %v3213 = vsel %vm541, %v3156, 0.0
        %v3214 = vadd.f32 %v3212, %v3213
        %v3215 = vsel %vm541, %v3157, 0.0
        %v3216 = vadd.f32 %v3214, %v3215
        %v3217 = vsel %vm541, %v3158, 0.0
        %v3218 = vadd.f32 %v3216, %v3217
        %v3219 = vsel %vm541, %v3159, 0.0
        %v3220 = vadd.f32 %v3218, %v3219
        %v3221 = vsel %vm541, %v3160, 0.0
        %v3222 = vadd.f32 %v3220, %v3221
        %v3223 = vsel %vm541, %v3161, 0.0
        %v3224 = vadd.f32 %v3222, %v3223
        %v3225 = vrot.slane %v3224, 4
        %v3226 = vadd.f32 %v3224, %v3225
        %v3227 = vrot.slane %v3226, 2
        %v3228 = vadd.f32 %v3226, %v3227
        %v3229 = vrot.slane %v3228, 1
        %v3230 = vadd.f32 %v3228, %v3229
        %v3231 = vmul.f32 %v3230, 0.00390625
        %v3232 = vmul.f32 %v3130, %v3130
        %v3233 = vmul.f32 %v3131, %v3131
        %v3234 = vmul.f32 %v3132, %v3132
        %v3235 = vmul.f32 %v3133, %v3133
        %v3236 = vmul.f32 %v3134, %v3134
        %v3237 = vmul.f32 %v3135, %v3135
        %v3238 = vmul.f32 %v3136, %v3136
        %v3239 = vmul.f32 %v3137, %v3137
        %v3240 = vmul.f32 %v3138, %v3138
        %v3241 = vmul.f32 %v3139, %v3139
        %v3242 = vmul.f32 %v3140, %v3140
        %v3243 = vmul.f32 %v3141, %v3141
        %v3244 = vmul.f32 %v3142, %v3142
        %v3245 = vmul.f32 %v3143, %v3143
        %v3246 = vmul.f32 %v3144, %v3144
        %v3247 = vmul.f32 %v3145, %v3145
        %v3248 = vmul.f32 %v3146, %v3146
        %v3249 = vmul.f32 %v3147, %v3147
        %v3250 = vmul.f32 %v3148, %v3148
        %v3251 = vmul.f32 %v3149, %v3149
        %v3252 = vmul.f32 %v3150, %v3150
        %v3253 = vmul.f32 %v3151, %v3151
        %v3254 = vmul.f32 %v3152, %v3152
        %v3255 = vmul.f32 %v3153, %v3153
        %v3256 = vmul.f32 %v3154, %v3154
        %v3257 = vmul.f32 %v3155, %v3155
        %v3258 = vmul.f32 %v3156, %v3156
        %v3259 = vmul.f32 %v3157, %v3157
        %v3260 = vmul.f32 %v3158, %v3158
        %v3261 = vmul.f32 %v3159, %v3159
        %v3262 = vmul.f32 %v3160, %v3160
        %v3263 = vmul.f32 %v3161, %v3161
        %v3264 = vsel %vm541, %v3232, 0.0
        %v3265 = vsel %vm541, %v3233, 0.0
        %v3266 = vadd.f32 %v3264, %v3265
        %v3267 = vsel %vm541, %v3234, 0.0
        %v3268 = vadd.f32 %v3266, %v3267
        %v3269 = vsel %vm541, %v3235, 0.0
        %v3270 = vadd.f32 %v3268, %v3269
        %v3271 = vsel %vm541, %v3236, 0.0
        %v3272 = vadd.f32 %v3270, %v3271
        %v3273 = vsel %vm541, %v3237, 0.0
        %v3274 = vadd.f32 %v3272, %v3273
        %v3275 = vsel %vm541, %v3238, 0.0
        %v3276 = vadd.f32 %v3274, %v3275
        %v3277 = vsel %vm541, %v3239, 0.0
        %v3278 = vadd.f32 %v3276, %v3277
        %v3279 = vsel %vm541, %v3240, 0.0
        %v3280 = vadd.f32 %v3278, %v3279
        %v3281 = vsel %vm541, %v3241, 0.0
        %v3282 = vadd.f32 %v3280, %v3281
        %v3283 = vsel %vm541, %v3242, 0.0
        %v3284 = vadd.f32 %v3282, %v3283
        %v3285 = vsel %vm541, %v3243, 0.0
        %v3286 = vadd.f32 %v3284, %v3285
        %v3287 = vsel %vm541, %v3244, 0.0
        %v3288 = vadd.f32 %v3286, %v3287
        %v3289 = vsel %vm541, %v3245, 0.0
        %v3290 = vadd.f32 %v3288, %v3289
        %v3291 = vsel %vm541, %v3246, 0.0
        %v3292 = vadd.f32 %v3290, %v3291
        %v3293 = vsel %vm541, %v3247, 0.0
        %v3294 = vadd.f32 %v3292, %v3293
        %v3295 = vsel %vm541, %v3248, 0.0
        %v3296 = vadd.f32 %v3294, %v3295
        %v3297 = vsel %vm541, %v3249, 0.0
        %v3298 = vadd.f32 %v3296, %v3297
        %v3299 = vsel %vm541, %v3250, 0.0
        %v3300 = vadd.f32 %v3298, %v3299
        %v3301 = vsel %vm541, %v3251, 0.0
        %v3302 = vadd.f32 %v3300, %v3301
        %v3303 = vsel %vm541, %v3252, 0.0
        %v3304 = vadd.f32 %v3302, %v3303
        %v3305 = vsel %vm541, %v3253, 0.0
        %v3306 = vadd.f32 %v3304, %v3305
        %v3307 = vsel %vm541, %v3254, 0.0
        %v3308 = vadd.f32 %v3306, %v3307
        %v3309 = vsel %vm541, %v3255, 0.0
        %v3310 = vadd.f32 %v3308, %v3309
        %v3311 = vsel %vm541, %v3256, 0.0
        %v3312 = vadd.f32 %v3310, %v3311
        %v3313 = vsel %vm541, %v3257, 0.0
        %v3314 = vadd.f32 %v3312, %v3313
        %v3315 = vsel %vm541, %v3258, 0.0
        %v3316 = vadd.f32 %v3314, %v3315
        %v3317 = vsel %vm541, %v3259, 0.0
        %v3318 = vadd.f32 %v3316, %v3317
        %v3319 = vsel %vm541, %v3260, 0.0
        %v3320 = vadd.f32 %v3318, %v3319
        %v3321 = vsel %vm541, %v3261, 0.0
        %v3322 = vadd.f32 %v3320, %v3321
        %v3323 = vsel %vm541, %v3262, 0.0
        %v3324 = vadd.f32 %v3322, %v3323
        %v3325 = vsel %vm541, %v3263, 0.0
        %v3326 = vadd.f32 %v3324, %v3325
        %v3327 = vrot.slane %v3326, 4
        %v3328 = vadd.f32 %v3326, %v3327
        %v3329 = vrot.slane %v3328, 2
        %v3330 = vadd.f32 %v3328, %v3329
        %v3331 = vrot.slane %v3330, 1
        %v3332 = vadd.f32 %v3330, %v3331
        %v3333 = vmul.f32 %v3332, 0.00390625
        %v3334 = vmul.f32 %v3231, %v3231
        %v3335 = vsub.f32 %v3333, %v3334
        %v3336 = vmax.f32 %v3335, 0.0
        %v3337 = vadd.f32 %v3336, 1e-08
        %v3338 = vrsqrt.pop %v3337
        %v3339 = vsub.f32 %v3130, %v3231
        %v3340 = vsub.f32 %v3131, %v3231
        %v3341 = vsub.f32 %v3132, %v3231
        %v3342 = vsub.f32 %v3133, %v3231
        %v3343 = vsub.f32 %v3134, %v3231
        %v3344 = vsub.f32 %v3135, %v3231
        %v3345 = vsub.f32 %v3136, %v3231
        %v3346 = vsub.f32 %v3137, %v3231
        %v3347 = vsub.f32 %v3138, %v3231
        %v3348 = vsub.f32 %v3139, %v3231
        %v3349 = vsub.f32 %v3140, %v3231
        %v3350 = vsub.f32 %v3141, %v3231
        %v3351 = vsub.f32 %v3142, %v3231
        %v3352 = vsub.f32 %v3143, %v3231
        %v3353 = vsub.f32 %v3144, %v3231
        %v3354 = vsub.f32 %v3145, %v3231
        %v3355 = vsub.f32 %v3146, %v3231
        %v3356 = vsub.f32 %v3147, %v3231
        %v3357 = vsub.f32 %v3148, %v3231
        %v3358 = vsub.f32 %v3149, %v3231
        %v3359 = vsub.f32 %v3150, %v3231
        %v3360 = vsub.f32 %v3151, %v3231
        %v3361 = vsub.f32 %v3152, %v3231
        %v3362 = vsub.f32 %v3153, %v3231
        %v3363 = vsub.f32 %v3154, %v3231
        %v3364 = vsub.f32 %v3155, %v3231
        %v3365 = vsub.f32 %v3156, %v3231
        %v3366 = vsub.f32 %v3157, %v3231
        %v3367 = vsub.f32 %v3158, %v3231
        %v3368 = vsub.f32 %v3159, %v3231
        %v3369 = vsub.f32 %v3160, %v3231
        %v3370 = vsub.f32 %v3161, %v3231
        %v3371 = vmul.f32 %v3339, %v3338
        %v3372 = vmul.f32 %v3340, %v3338
        %v3373 = vmul.f32 %v3341, %v3338
        %v3374 = vmul.f32 %v3342, %v3338
        %v3375 = vmul.f32 %v3343, %v3338
        %v3376 = vmul.f32 %v3344, %v3338
        %v3377 = vmul.f32 %v3345, %v3338
        %v3378 = vmul.f32 %v3346, %v3338
        %v3379 = vmul.f32 %v3347, %v3338
        %v3380 = vmul.f32 %v3348, %v3338
        %v3381 = vmul.f32 %v3349, %v3338
        %v3382 = vmul.f32 %v3350, %v3338
        %v3383 = vmul.f32 %v3351, %v3338
        %v3384 = vmul.f32 %v3352, %v3338
        %v3385 = vmul.f32 %v3353, %v3338
        %v3386 = vmul.f32 %v3354, %v3338
        %v3387 = vmul.f32 %v3355, %v3338
        %v3388 = vmul.f32 %v3356, %v3338
        %v3389 = vmul.f32 %v3357, %v3338
        %v3390 = vmul.f32 %v3358, %v3338
        %v3391 = vmul.f32 %v3359, %v3338
        %v3392 = vmul.f32 %v3360, %v3338
        %v3393 = vmul.f32 %v3361, %v3338
        %v3394 = vmul.f32 %v3362, %v3338
        %v3395 = vmul.f32 %v3363, %v3338
        %v3396 = vmul.f32 %v3364, %v3338
        %v3397 = vmul.f32 %v3365, %v3338
        %v3398 = vmul.f32 %v3366, %v3338
        %v3399 = vmul.f32 %v3367, %v3338
        %v3400 = vmul.f32 %v3368, %v3338
        %v3401 = vmul.f32 %v3369, %v3338
        %v3402 = vmul.f32 %v3370, %v3338
        %v3403 = vld [vmem:[%s376] sm:$0x1]
        %v3405 = vlaneseq
        %v3406 = vshrl.u32 %v3405, 7
        %v3407 = vsub.s32 0, %v3406
        %v3408 = vrot.slane %v3403, %v3407
        %v3410 = vmul.f32 %v3371, %v3408
        %v3411 = vmul.f32 %v3372, %v3408
        %v3412 = vmul.f32 %v3373, %v3408
        %v3413 = vmul.f32 %v3374, %v3408
        %v3414 = vmul.f32 %v3375, %v3408
        %v3415 = vmul.f32 %v3376, %v3408
        %v3416 = vmul.f32 %v3377, %v3408
        %v3417 = vmul.f32 %v3378, %v3408
        %v3418 = vmul.f32 %v3379, %v3408
        %v3419 = vmul.f32 %v3380, %v3408
        %v3420 = vmul.f32 %v3381, %v3408
        %v3421 = vmul.f32 %v3382, %v3408
        %v3422 = vmul.f32 %v3383, %v3408
        %v3423 = vmul.f32 %v3384, %v3408
        %v3424 = vmul.f32 %v3385, %v3408
        %v3425 = vmul.f32 %v3386, %v3408
        %v3426 = vmul.f32 %v3387, %v3408
        %v3427 = vmul.f32 %v3388, %v3408
        %v3428 = vmul.f32 %v3389, %v3408
        %v3429 = vmul.f32 %v3390, %v3408
        %v3430 = vmul.f32 %v3391, %v3408
        %v3431 = vmul.f32 %v3392, %v3408
        %v3432 = vmul.f32 %v3393, %v3408
        %v3433 = vmul.f32 %v3394, %v3408
        %v3434 = vmul.f32 %v3395, %v3408
        %v3435 = vmul.f32 %v3396, %v3408
        %v3436 = vmul.f32 %v3397, %v3408
        %v3437 = vmul.f32 %v3398, %v3408
        %v3438 = vmul.f32 %v3399, %v3408
        %v3439 = vmul.f32 %v3400, %v3408
        %v3440 = vmul.f32 %v3401, %v3408
        %v3441 = vmul.f32 %v3402, %v3408
        %v3442 = vld [vmem:[%s384] sm:$0x1]
        %v3444 = vlaneseq
        %v3445 = vshrl.u32 %v3444, 7
        %v3446 = vsub.s32 0, %v3445
        %v3447 = vrot.slane %v3442, %v3446
        %v3449 = vadd.f32 %v3410, %v3447
        %v3450 = vadd.f32 %v3411, %v3447
        %v3451 = vadd.f32 %v3412, %v3447
        %v3452 = vadd.f32 %v3413, %v3447
        %v3453 = vadd.f32 %v3414, %v3447
        %v3454 = vadd.f32 %v3415, %v3447
        %v3455 = vadd.f32 %v3416, %v3447
        %v3456 = vadd.f32 %v3417, %v3447
        %v3457 = vadd.f32 %v3418, %v3447
        %v3458 = vadd.f32 %v3419, %v3447
        %v3459 = vadd.f32 %v3420, %v3447
        %v3460 = vadd.f32 %v3421, %v3447
        %v3461 = vadd.f32 %v3422, %v3447
        %v3462 = vadd.f32 %v3423, %v3447
        %v3463 = vadd.f32 %v3424, %v3447
        %v3464 = vadd.f32 %v3425, %v3447
        %v3465 = vadd.f32 %v3426, %v3447
        %v3466 = vadd.f32 %v3427, %v3447
        %v3467 = vadd.f32 %v3428, %v3447
        %v3468 = vadd.f32 %v3429, %v3447
        %v3469 = vadd.f32 %v3430, %v3447
        %v3470 = vadd.f32 %v3431, %v3447
        %v3471 = vadd.f32 %v3432, %v3447
        %v3472 = vadd.f32 %v3433, %v3447
        %v3473 = vadd.f32 %v3434, %v3447
        %v3474 = vadd.f32 %v3435, %v3447
        %v3475 = vadd.f32 %v3436, %v3447
        %v3476 = vadd.f32 %v3437, %v3447
        %v3477 = vadd.f32 %v3438, %v3447
        %v3478 = vadd.f32 %v3439, %v3447
        %v3479 = vadd.f32 %v3440, %v3447
        %v3480 = vadd.f32 %v3441, %v3447
        %v3481 = vld [vmem:[%s393] sm:$0xff]
        %v3482 = vld [vmem:[%s393 + $0x8] sm:$0xff]
        %v3483 = vld [vmem:[%s393 + $0x10] sm:$0xff]
        %v3484 = vld [vmem:[%s393 + $0x18] sm:$0xff]
        %v3485 = vld [vmem:[%s393 + $0x20] sm:$0xff]
        %v3486 = vld [vmem:[%s393 + $0x28] sm:$0xff]
        %v3487 = vld [vmem:[%s393 + $0x30] sm:$0xff]
        %v3488 = vld [vmem:[%s393 + $0x38] sm:$0xff]
        %v3489 = vld [vmem:[%s393 + $0x40] sm:$0xff]
        %v3490 = vld [vmem:[%s393 + $0x48] sm:$0xff]
        %v3491 = vld [vmem:[%s393 + $0x50] sm:$0xff]
        %v3492 = vld [vmem:[%s393 + $0x58] sm:$0xff]
        %v3493 = vld [vmem:[%s393 + $0x60] sm:$0xff]
        %v3494 = vld [vmem:[%s393 + $0x68] sm:$0xff]
        %v3495 = vld [vmem:[%s393 + $0x70] sm:$0xff]
        %v3496 = vld [vmem:[%s393 + $0x78] sm:$0xff]
        %v3497 = vld [vmem:[%s393 + $0x80] sm:$0xff]
        %v3498 = vld [vmem:[%s393 + $0x88] sm:$0xff]
        %v3499 = vld [vmem:[%s393 + $0x90] sm:$0xff]
        %v3500 = vld [vmem:[%s393 + $0x98] sm:$0xff]
        %v3501 = vld [vmem:[%s393 + $0xa0] sm:$0xff]
        %v3502 = vld [vmem:[%s393 + $0xa8] sm:$0xff]
        %v3503 = vld [vmem:[%s393 + $0xb0] sm:$0xff]
        %v3504 = vld [vmem:[%s393 + $0xb8] sm:$0xff]
        %v3505 = vld [vmem:[%s393 + $0xc0] sm:$0xff]
        %v3506 = vld [vmem:[%s393 + $0xc8] sm:$0xff]
        %v3507 = vld [vmem:[%s393 + $0xd0] sm:$0xff]
        %v3508 = vld [vmem:[%s393 + $0xd8] sm:$0xff]
        %v3509 = vld [vmem:[%s393 + $0xe0] sm:$0xff]
        %v3510 = vld [vmem:[%s393 + $0xe8] sm:$0xff]
        %v3511 = vld [vmem:[%s393 + $0xf0] sm:$0xff]
        %v3512 = vld [vmem:[%s393 + $0xf8] sm:$0xff]
        %v3513 = vld [vmem:[#allocation13] sm:$0x1]
        %3515 = vset.pattern.permute.xlu0 0
        %3516 = vperm.xlu0 %3515, %v3481
        %v3517 = vpop.permute.xlu0 %3516
        %3520 = vset.pattern.permute.xlu0 0
        %3521 = vperm.xlu0 %3520, %v3482
        %v3522 = vpop.permute.xlu0 %3521
        %3525 = vset.pattern.permute.xlu0 0
        %3526 = vperm.xlu0 %3525, %v3483
        %v3527 = vpop.permute.xlu0 %3526
        %3530 = vset.pattern.permute.xlu0 0
        %3531 = vperm.xlu0 %3530, %v3484
        %v3532 = vpop.permute.xlu0 %3531
        %3535 = vset.pattern.permute.xlu0 0
        %3536 = vperm.xlu0 %3535, %v3485
        %v3537 = vpop.permute.xlu0 %3536
        %3540 = vset.pattern.permute.xlu0 0
        %3541 = vperm.xlu0 %3540, %v3486
        %v3542 = vpop.permute.xlu0 %3541
        %3545 = vset.pattern.permute.xlu0 0
        %3546 = vperm.xlu0 %3545, %v3487
        %v3547 = vpop.permute.xlu0 %3546
        %3550 = vset.pattern.permute.xlu0 0
        %3551 = vperm.xlu0 %3550, %v3488
        %v3552 = vpop.permute.xlu0 %3551
        %3555 = vset.pattern.permute.xlu0 0
        %3556 = vperm.xlu0 %3555, %v3489
        %v3557 = vpop.permute.xlu0 %3556
        %3560 = vset.pattern.permute.xlu0 0
        %3561 = vperm.xlu0 %3560, %v3490
        %v3562 = vpop.permute.xlu0 %3561
        %3565 = vset.pattern.permute.xlu0 0
        %3566 = vperm.xlu0 %3565, %v3491
        %v3567 = vpop.permute.xlu0 %3566
        %3570 = vset.pattern.permute.xlu0 0
        %3571 = vperm.xlu0 %3570, %v3492
        %v3572 = vpop.permute.xlu0 %3571
        %3575 = vset.pattern.permute.xlu0 0
        %3576 = vperm.xlu0 %3575, %v3493
        %v3577 = vpop.permute.xlu0 %3576
        %3580 = vset.pattern.permute.xlu0 0
        %3581 = vperm.xlu0 %3580, %v3494
        %v3582 = vpop.permute.xlu0 %3581
        %3585 = vset.pattern.permute.xlu0 0
        %3586 = vperm.xlu0 %3585, %v3495
        %v3587 = vpop.permute.xlu0 %3586
        %3590 = vset.pattern.permute.xlu0 0
        %3591 = vperm.xlu0 %3590, %v3496
        %v3592 = vpop.permute.xlu0 %3591
        %3595 = vset.pattern.permute.xlu0 0
        %3596 = vperm.xlu0 %3595, %v3497
        %v3597 = vpop.permute.xlu0 %3596
        %3600 = vset.pattern.permute.xlu0 0
        %3601 = vperm.xlu0 %3600, %v3498
        %v3602 = vpop.permute.xlu0 %3601
        %3605 = vset.pattern.permute.xlu0 0
        %3606 = vperm.xlu0 %3605, %v3499
        %v3607 = vpop.permute.xlu0 %3606
        %3610 = vset.pattern.permute.xlu0 0
        %3611 = vperm.xlu0 %3610, %v3500
        %v3612 = vpop.permute.xlu0 %3611
        %3615 = vset.pattern.permute.xlu0 0
        %3616 = vperm.xlu0 %3615, %v3501
        %v3617 = vpop.permute.xlu0 %3616
        %3620 = vset.pattern.permute.xlu0 0
        %3621 = vperm.xlu0 %3620, %v3502
        %v3622 = vpop.permute.xlu0 %3621
        %3625 = vset.pattern.permute.xlu0 0
        %3626 = vperm.xlu0 %3625, %v3503
        %v3627 = vpop.permute.xlu0 %3626
        %3630 = vset.pattern.permute.xlu0 0
        %3631 = vperm.xlu0 %3630, %v3504
        %v3632 = vpop.permute.xlu0 %3631
        %3635 = vset.pattern.permute.xlu0 0
        %3636 = vperm.xlu0 %3635, %v3505
        %v3637 = vpop.permute.xlu0 %3636
        %3640 = vset.pattern.permute.xlu0 0
        %3641 = vperm.xlu0 %3640, %v3506
        %v3642 = vpop.permute.xlu0 %3641
        %3645 = vset.pattern.permute.xlu0 0
        %3646 = vperm.xlu0 %3645, %v3507
        %v3647 = vpop.permute.xlu0 %3646
        %3650 = vset.pattern.permute.xlu0 0
        %3651 = vperm.xlu0 %3650, %v3508
        %v3652 = vpop.permute.xlu0 %3651
        %3655 = vset.pattern.permute.xlu0 0
        %3656 = vperm.xlu0 %3655, %v3509
        %v3657 = vpop.permute.xlu0 %3656
        %3660 = vset.pattern.permute.xlu0 0
        %3661 = vperm.xlu0 %3660, %v3510
        %v3662 = vpop.permute.xlu0 %3661
        %3665 = vset.pattern.permute.xlu0 0
        %3666 = vperm.xlu0 %3665, %v3511
        %v3667 = vpop.permute.xlu0 %3666
        %3670 = vset.pattern.permute.xlu0 0
        %3671 = vperm.xlu0 %3670, %v3512
        %v3672 = vpop.permute.xlu0 %3671
        %v3675 = vlaneseq
        %v3676 = vshrl.u32 %v3675, 7
        %v3677 = vsub.s32 0, %v3676
        %v3678 = vrot.slane %v3513, %v3677
        %v3680 = vmul.f32 %v3517, %v3678
        %v3681 = vmul.f32 %v3522, %v3678
        %v3682 = vmul.f32 %v3527, %v3678
        %v3683 = vmul.f32 %v3532, %v3678
        %v3684 = vmul.f32 %v3537, %v3678
        %v3685 = vmul.f32 %v3542, %v3678
        %v3686 = vmul.f32 %v3547, %v3678
        %v3687 = vmul.f32 %v3552, %v3678
        %v3688 = vmul.f32 %v3557, %v3678
        %v3689 = vmul.f32 %v3562, %v3678
        %v3690 = vmul.f32 %v3567, %v3678
        %v3691 = vmul.f32 %v3572, %v3678
        %v3692 = vmul.f32 %v3577, %v3678
        %v3693 = vmul.f32 %v3582, %v3678
        %v3694 = vmul.f32 %v3587, %v3678
        %v3695 = vmul.f32 %v3592, %v3678
        %v3696 = vmul.f32 %v3597, %v3678
        %v3697 = vmul.f32 %v3602, %v3678
        %v3698 = vmul.f32 %v3607, %v3678
        %v3699 = vmul.f32 %v3612, %v3678
        %v3700 = vmul.f32 %v3617, %v3678
        %v3701 = vmul.f32 %v3622, %v3678
        %v3702 = vmul.f32 %v3627, %v3678
        %v3703 = vmul.f32 %v3632, %v3678
        %v3704 = vmul.f32 %v3637, %v3678
        %v3705 = vmul.f32 %v3642, %v3678
        %v3706 = vmul.f32 %v3647, %v3678
        %v3707 = vmul.f32 %v3652, %v3678
        %v3708 = vmul.f32 %v3657, %v3678
        %v3709 = vmul.f32 %v3662, %v3678
        %v3710 = vmul.f32 %v3667, %v3678
        %v3711 = vmul.f32 %v3672, %v3678
        %v3712 = vadd.f32 %v3449, %v3680
        %v3713 = vadd.f32 %v3450, %v3681
        %v3714 = vadd.f32 %v3451, %v3682
        %v3715 = vadd.f32 %v3452, %v3683
        %v3716 = vadd.f32 %v3453, %v3684
        %v3717 = vadd.f32 %v3454, %v3685
        %v3718 = vadd.f32 %v3455, %v3686
        %v3719 = vadd.f32 %v3456, %v3687
        %v3720 = vadd.f32 %v3457, %v3688
        %v3721 = vadd.f32 %v3458, %v3689
        %v3722 = vadd.f32 %v3459, %v3690
        %v3723 = vadd.f32 %v3460, %v3691
        %v3724 = vadd.f32 %v3461, %v3692
        %v3725 = vadd.f32 %v3462, %v3693
        %v3726 = vadd.f32 %v3463, %v3694
        %v3727 = vadd.f32 %v3464, %v3695
        %v3728 = vadd.f32 %v3465, %v3696
        %v3729 = vadd.f32 %v3466, %v3697
        %v3730 = vadd.f32 %v3467, %v3698
        %v3731 = vadd.f32 %v3468, %v3699
        %v3732 = vadd.f32 %v3469, %v3700
        %v3733 = vadd.f32 %v3470, %v3701
        %v3734 = vadd.f32 %v3471, %v3702
        %v3735 = vadd.f32 %v3472, %v3703
        %v3736 = vadd.f32 %v3473, %v3704
        %v3737 = vadd.f32 %v3474, %v3705
        %v3738 = vadd.f32 %v3475, %v3706
        %v3739 = vadd.f32 %v3476, %v3707
        %v3740 = vadd.f32 %v3477, %v3708
        %v3741 = vadd.f32 %v3478, %v3709
        %v3742 = vadd.f32 %v3479, %v3710
        %v3743 = vadd.f32 %v3480, %v3711
        %v3744 = vadd.f32 %v3712, %v3032
        %v3745 = vadd.f32 %v3713, %v3032
        %v3746 = vadd.f32 %v3714, %v3032
        %v3747 = vadd.f32 %v3715, %v3032
        %v3748 = vadd.f32 %v3716, %v3032
        %v3749 = vadd.f32 %v3717, %v3032
        %v3750 = vadd.f32 %v3718, %v3032
        %v3751 = vadd.f32 %v3719, %v3032
        %v3752 = vadd.f32 %v3720, %v3032
        %v3753 = vadd.f32 %v3721, %v3032
        %v3754 = vadd.f32 %v3722, %v3032
        %v3755 = vadd.f32 %v3723, %v3032
        %v3756 = vadd.f32 %v3724, %v3032
        %v3757 = vadd.f32 %v3725, %v3032
        %v3758 = vadd.f32 %v3726, %v3032
        %v3759 = vadd.f32 %v3727, %v3032
        %v3760 = vadd.f32 %v3728, %v3032
        %v3761 = vadd.f32 %v3729, %v3032
        %v3762 = vadd.f32 %v3730, %v3032
        %v3763 = vadd.f32 %v3731, %v3032
        %v3764 = vadd.f32 %v3732, %v3032
        %v3765 = vadd.f32 %v3733, %v3032
        %v3766 = vadd.f32 %v3734, %v3032
        %v3767 = vadd.f32 %v3735, %v3032
        %v3768 = vadd.f32 %v3736, %v3032
        %v3769 = vadd.f32 %v3737, %v3032
        %v3770 = vadd.f32 %v3738, %v3032
        %v3771 = vadd.f32 %v3739, %v3032
        %v3772 = vadd.f32 %v3740, %v3032
        %v3773 = vadd.f32 %v3741, %v3032
        %v3774 = vadd.f32 %v3742, %v3032
        %v3775 = vadd.f32 %v3743, %v3032
        %3776 = vst.msk [vmem:[%s440] sm:$0xff] %vm541, %v3744
        %3777 = vst.msk [vmem:[%s440 + $0x8] sm:$0xff] %vm541, %v3745
        %3778 = vst.msk [vmem:[%s440 + $0x10] sm:$0xff] %vm541, %v3746
        %3779 = vst.msk [vmem:[%s440 + $0x18] sm:$0xff] %vm541, %v3747
        %3780 = vst.msk [vmem:[%s440 + $0x20] sm:$0xff] %vm541, %v3748
        %3781 = vst.msk [vmem:[%s440 + $0x28] sm:$0xff] %vm541, %v3749
        %3782 = vst.msk [vmem:[%s440 + $0x30] sm:$0xff] %vm541, %v3750
        %3783 = vst.msk [vmem:[%s440 + $0x38] sm:$0xff] %vm541, %v3751
        %3784 = vst.msk [vmem:[%s440 + $0x40] sm:$0xff] %vm541, %v3752
        %3785 = vst.msk [vmem:[%s440 + $0x48] sm:$0xff] %vm541, %v3753
        %3786 = vst.msk [vmem:[%s440 + $0x50] sm:$0xff] %vm541, %v3754
        %3787 = vst.msk [vmem:[%s440 + $0x58] sm:$0xff] %vm541, %v3755
        %3788 = vst.msk [vmem:[%s440 + $0x60] sm:$0xff] %vm541, %v3756
        %3789 = vst.msk [vmem:[%s440 + $0x68] sm:$0xff] %vm541, %v3757
        %3790 = vst.msk [vmem:[%s440 + $0x70] sm:$0xff] %vm541, %v3758
        %3791 = vst.msk [vmem:[%s440 + $0x78] sm:$0xff] %vm541, %v3759
        %3792 = vst.msk [vmem:[%s440 + $0x80] sm:$0xff] %vm541, %v3760
        %3793 = vst.msk [vmem:[%s440 + $0x88] sm:$0xff] %vm541, %v3761
        %3794 = vst.msk [vmem:[%s440 + $0x90] sm:$0xff] %vm541, %v3762
        %3795 = vst.msk [vmem:[%s440 + $0x98] sm:$0xff] %vm541, %v3763
        %3796 = vst.msk [vmem:[%s440 + $0xa0] sm:$0xff] %vm541, %v3764
        %3797 = vst.msk [vmem:[%s440 + $0xa8] sm:$0xff] %vm541, %v3765
        %3798 = vst.msk [vmem:[%s440 + $0xb0] sm:$0xff] %vm541, %v3766
        %3799 = vst.msk [vmem:[%s440 + $0xb8] sm:$0xff] %vm541, %v3767
        %3800 = vst.msk [vmem:[%s440 + $0xc0] sm:$0xff] %vm541, %v3768
        %3801 = vst.msk [vmem:[%s440 + $0xc8] sm:$0xff] %vm541, %v3769
        %3802 = vst.msk [vmem:[%s440 + $0xd0] sm:$0xff] %vm541, %v3770
        %3803 = vst.msk [vmem:[%s440 + $0xd8] sm:$0xff] %vm541, %v3771
        %3804 = vst.msk [vmem:[%s440 + $0xe0] sm:$0xff] %vm541, %v3772
        %3805 = vst.msk [vmem:[%s440 + $0xe8] sm:$0xff] %vm541, %v3773
        %3806 = vst.msk [vmem:[%s440 + $0xf0] sm:$0xff] %vm541, %v3774
        %3807 = vst.msk [vmem:[%s440 + $0xf8] sm:$0xff] %vm541, %v3775
        %s3808 = sand.u32 %s206, 1
        %s3809 = scalar_lea.sflag [#allocation4], %s3808
        %s3810 = sand.u32 %s206, 1
        %s3811 = smul.addr %s3810, 256
        %s3812 = scalar_lea.vmem [#allocation14], %s3811
        // Predicated region
        $region77: #{style_block_forward.2} parent=47 // pred_check
          %p3813 = pneg %p216
        $region78: #{style_block_forward.2} parent=47 // pred_check_branch
          %3815 = sbr.rel (%p3813) target = $region80
        $region79: #{style_block_forward.2} parent=47 // pred_region
          %s3817 = ssub.s32 4096, 4096
          %3818 = vsyncadd %s3809, %s3817
          %s3819 = smul.addr %s31, 32
          %s3820 = smul.addr %s3819, 128
          %s3821 = scalar_lea.hbm %s7, %s3820
          %s3822 = sshll.u32 %s3812, 4
          %s3823 = int_to_ptr.vmem [resolvable:$true] %s3822
          %3828 = dma.vmem_to_hbm [thread:$0]  %s3823, 4096, %s3821, %s3809, 128, 128, 8
        $region80: #{style_block_forward.2} parent=47 // pred_fallthru
          _
      $region48: #{style_block_forward.2} parent=5 // pred_fallthru
        _
      %p3829 = scmp.le.s32.totalorder 2, %s26
      // Predicated region
      $region81: #{style_block_forward.2} parent=5 // pred_check
        %p3830 = pneg %p3829
      $region82: #{style_block_forward.2} parent=5 // pred_check_branch
        %3832 = sbr.rel (%p3830) target = $region84
      $region83: #{style_block_forward.2} parent=5 // pred_region
        %s3833 = ssub.s32 %s26, 2
        // Predicated region
        $region85: #{style_block_forward.2} parent=83 // pred_check
          %p3834 = pneg %p222
        $region86: #{style_block_forward.2} parent=83 // pred_check_branch
          %3836 = sbr.rel (%p3834) target = $region88
        $region87: #{style_block_forward.2} parent=83 // pred_region
          %s3837 = sand.u32 %s207, 1
          %s3838 = scalar_lea.sflag [#allocation4], %s3837
          %s3839 = sand.u32 %s207, 1
          %s3840 = smul.addr %s3839, 256
          %s3841 = scalar_lea.vmem [#allocation14], %s3840
          %3842 = dma.done %s3838, 4096
        $region88: #{style_block_forward.2} parent=83 // pred_fallthru
          _
      $region84: #{style_block_forward.2} parent=5 // pred_fallthru
        _
    $region6: #{style_block_forward.2} parent=1 // loop_footer
      %s30 = sadd.s32 1, %s26
    $region7: #{style_block_forward.2} parent=1 // loop_footer_branch
      %25 = sbr.rel target = $region3
    $region8: #{style_block_forward.2} parent=1 // loop_exit
      _
    %3843 = vsyncpa [#allocation3], 1
    %s3844 = scalar_lea.sflag [#allocation3], 1
    %3845 = vsyncpa %s3844, 1
    %3846 = vsyncpa [#allocation6], 1
    %3847 = vsyncpa [#allocation9], 1
    %s3848 = scalar_lea.sflag [#allocation9], 1
    %3849 = vsyncpa %s3848, 1
    %3850 = vsyncpa [#allocation12], 1
    %s3851 = scalar_lea.sflag [#allocation12], 1
    %3852 = vsyncpa %s3851, 1
    %3853 = vsyncpa [#allocation4], 1
    %s3854 = scalar_lea.sflag [#allocation4], 1
    %3855 = vsyncpa %s3854, 1

</llo_original>
